<compile_context>
chip_gen: v7x
topology: tpu7x:2x2x1
jax: 0.10.0
libtpu: 0.0.40
codegen_flags: <defaults>
</compile_context>

<pallas_src>
import jax
import jax.numpy as jnp
from jax.experimental import pallas as pl
from jax.experimental.pallas import tpu as pltpu


def _round_up(x, m):
    return (x + m - 1) // m * m


def _vmem_bytes(shape, itemsize):
    """Rough VMEM footprint of a buffer after (8, 128) layout padding."""
    s = list(shape)
    if len(s) >= 1:
        s[-1] = _round_up(s[-1], 128)
    if len(s) >= 2:
        s[-2] = _round_up(s[-2], 8)
    n = 1
    for d in s:
        n *= d
    return n * itemsize


def _invariant_spec(block_shape, index_map):
    """BlockSpec for a grid-invariant operand: single-buffered (saves VMEM)."""
    try:
        return pl.BlockSpec(block_shape, index_map, pipeline_mode=pl.Buffered(1))
    except (AttributeError, TypeError):
        # Older JAX without pipeline_mode: fall back to default buffering.
        return pl.BlockSpec(block_shape, index_map)


def _choose_row_tile(H, W, Cin, Cmid, Cpad, budget_bytes):
    """Largest divisor of H whose per-tile working set fits the budget."""
    cands = [d for d in range(H, 0, -1)
             if H % d == 0 and (d == H or (d * W) % 8 == 0)]
    for d in cands:
        per_tile = ((d * W) * (2 * Cin + 6 * Cmid + 8 * Cpad)
                    + (d + 2) * (W + 2) * 2 * Cin)
        if per_tile <= budget_bytes:
            return d
    return cands[-1]


def _scale_pred_kernel(x_ref, w1_ref, bias_ref, w2_ref, b2_ref, out_ref, xpad_ref):
    # x_ref    : (H, W, Cin)        bf16  full NHWC image (batch dim squeezed)
    # w1_ref   : (9, Cin, Cmid)     bf16  3x3 taps, BN scale pre-folded
    # bias_ref : (1, Cmid)          f32   folded BN bias
    # w2_ref   : (Cmid, Cpad)       bf16  1x1 weights, channel-padded to lanes
    # b2_ref   : (1, Cpad)          f32   1x1 bias, channel-padded
    # out_ref  : (TH*W, Cpad)       f32   output slab for this row tile
    # xpad_ref : (TH+2, W+2, Cin)   bf16  per-tile zero-padded input scratch
    _, W, Cin = x_ref.shape
    TH = xpad_ref.shape[0] - 2
    r = pl.program_id(1)
    nr = pl.num_programs(1)
    row0 = pl.multiple_of(r * TH, TH)

    # ---- build the (TH+2, W+2) zero-padded tile (conv padding=1 fused) ----
    # Only the 1-element halo border is zeroed; the interior is copied from x.
    zrow = jnp.zeros((1, W + 2, Cin), jnp.bfloat16)
    zcol = jnp.zeros((TH + 2, 1, Cin), jnp.bfloat16)
    xpad_ref[pl.ds(0, 1), :, :] = zrow           # top halo default (image edge)
    xpad_ref[pl.ds(TH + 1, 1), :, :] = zrow      # bottom halo default

    @pl.when(r > 0)                              # real top halo row
    def _():
        xpad_ref[pl.ds(0, 1), pl.ds(1, W), :] = x_ref[pl.ds(row0 - 1, 1), :, :]

    @pl.when(r < nr - 1)                         # real bottom halo row
    def _():
        xpad_ref[pl.ds(TH + 1, 1), pl.ds(1, W), :] = x_ref[pl.ds(row0 + TH, 1), :, :]

    xpad_ref[:, pl.ds(0, 1), :] = zcol           # left halo column (zero)
    xpad_ref[:, pl.ds(W + 1, 1), :] = zcol       # right halo column (zero)
    xpad_ref[pl.ds(1, TH), pl.ds(1, W), :] = x_ref[pl.ds(row0, TH), :, :]

    # ---- 3x3 conv as 9 tap-accumulating MXU matmuls (f32 accumulation) ----
    acc = None
    for kh in range(3):
        for kw in range(3):
            tap = xpad_ref[pl.ds(kh, TH), pl.ds(kw, W), :].reshape(TH * W, Cin)
            part = jnp.dot(tap, w1_ref[kh * 3 + kw],
                           preferred_element_type=jnp.float32)
            acc = part if acc is None else acc + part

    # ---- folded-BN bias + LeakyReLU(0.1), f32 on the VPU ----
    y = acc + bias_ref[...]
    y = jnp.maximum(y, 0.1 * y)

    # ---- 1x1 conv + bias: one bf16 MXU matmul, f32 accumulate, lane-dense ----
    z = jnp.dot(y.astype(jnp.bfloat16), w2_ref[...],
                preferred_element_type=jnp.float32)
    out_ref[...] = z + b2_ref[...]


def init_params(key, in_channels, num_classes):
    cmid = 2 * in_channels
    cout = 3 * (num_classes + 5)
    k1, k2, k3, k4, k5 = jax.random.split(key, 5)
    return dict(
        w1=jax.random.normal(k1, (3, 3, in_channels, cmid), jnp.float32) * 0.1,
        gamma=jax.random.uniform(k2, (cmid,), jnp.float32, 0.5, 1.5),
        beta=jax.random.normal(k3, (cmid,), jnp.float32) * 0.1,
        running_mean=jnp.zeros((cmid,), jnp.float32),
        running_var=jnp.ones((cmid,), jnp.float32),
        w2=jax.random.normal(k4, (cmid, cout), jnp.float32) * 0.1,
        b2=jax.random.normal(k5, (cout,), jnp.float32) * 0.1,
    )


def scale_prediction_forward(x_nchw, p, num_classes, *, row_tile=None):
    """x_nchw: (N, Cin, H, W) float32 -> (N, 3, H, W, num_classes + 5)."""
    N, Cin, H, W = x_nchw.shape
    Cmid = p["w1"].shape[-1]
    ncp5 = num_classes + 5
    cout = 3 * ncp5
    Cpad = _round_up(cout, 128)          # lane-dense output channel pad
    eps = 1e-5

    # Fold BatchNorm (inference running stats): y = conv * scale + bias.
    # The per-channel scale is folded into the 3x3 weights (f32 fold -> bf16).
    scale = p["gamma"] / jnp.sqrt(p["running_var"] + eps)
    bias = (p["beta"] - p["running_mean"] * scale).reshape(1, Cmid).astype(jnp.float32)
    w1f = (p["w1"] * scale).reshape(9, Cin, Cmid).astype(jnp.bfloat16)

    # 1x1 conv weights/bias, channel dim zero-padded up to Cpad lanes.
    w2p = jnp.pad(p["w2"], ((0, 0), (0, Cpad - cout))).astype(jnp.bfloat16)
    b2p = jnp.pad(p["b2"], (0, Cpad - cout)).reshape(1, Cpad).astype(jnp.float32)

    # NCHW -> NHWC and bf16 (matmul inputs are bf16 anyway): halves input DMA.
    x = jnp.transpose(x_nchw, (0, 2, 3, 1)).astype(jnp.bfloat16)

    # Per-generation VMEM capacity (v5e/v6e: 128 MiB, v7x: 64 MiB per core).
    try:
        vmem_cap = int(pltpu.get_tpu_info().vmem_capacity_bytes)
    except Exception:
        vmem_cap = 64 * 1024 * 1024      # conservative fallback

    if row_tile is None:
        row_tile = _choose_row_tile(H, W, Cin, Cmid, Cpad,
                                    budget_bytes=vmem_cap // 4)
    assert H % row_tile == 0, (H, row_tile)
    TH = row_tile
    R = H // TH

    # Actual buffer footprint + ~30% margin (no double-counted headroom).
    buf_bytes = (
        2 * _vmem_bytes((H, W, Cin), 2)            # x block (bf16, double-buffered)
        + _vmem_bytes((9, Cin, Cmid), 2)           # w1 (bf16, single-buffered)
        + _vmem_bytes((1, Cmid), 4)                # BN bias
        + _vmem_bytes((Cmid, Cpad), 2)             # w2 (bf16, single-buffered)
        + _vmem_bytes((1, Cpad), 4)                # 1x1 bias
        + 2 * _vmem_bytes((TH * W, Cpad), 4)       # out block (f32, double-buffered)
        + _vmem_bytes((TH + 2, W + 2, Cin), 2)     # padded-tile scratch (bf16)
        + _vmem_bytes((TH * W, Cin), 2)            # transient: one conv tap
        + _vmem_bytes((TH * W, Cmid), 4)           # transient: f32 accumulator
        + _vmem_bytes((TH * W, Cmid), 2)           # transient: bf16 activations
        + _vmem_bytes((TH * W, Cpad), 4)           # transient: f32 head output
    )
    vmem_limit = int(min(max(buf_bytes * 13 // 10, 16 * 1024 * 1024),
                         vmem_cap * 85 // 100))

    out_pad = pl.pallas_call(
        _scale_pred_kernel,
        out_shape=jax.ShapeDtypeStruct((N, H * W, Cpad), jnp.float32),
        grid_spec=pltpu.PrefetchScalarGridSpec(
            num_scalar_prefetch=0,
            grid=(N, R),
            in_specs=[
                # Full image per batch element; block index is constant over
                # the row axis, so it is DMA'd once per image and reused.
                pl.BlockSpec((None, H, W, Cin), lambda n, r: (n, 0, 0, 0)),
                _invariant_spec((9, Cin, Cmid), lambda n, r: (0, 0, 0)),
                _invariant_spec((1, Cmid), lambda n, r: (0, 0)),
                _invariant_spec((Cmid, Cpad), lambda n, r: (0, 0)),
                _invariant_spec((1, Cpad), lambda n, r: (0, 0)),
            ],
            out_specs=pl.BlockSpec((None, TH * W, Cpad), lambda n, r: (n, r, 0)),
            scratch_shapes=[pltpu.VMEM((TH + 2, W + 2, Cin), jnp.bfloat16)],
        ),
        compiler_params=pltpu.CompilerParams(
            dimension_semantics=("parallel", "parallel"),
            vmem_limit_bytes=vmem_limit),
    )(x, w1f, bias, w2p, b2p)

    # Anchor split, (H, W) split and the final permute happen on the small
    # sliced output here; in-kernel stores stay lane-dense and unmasked.
    out = out_pad[..., :cout].reshape(N, H, W, 3, ncp5)
    return jnp.transpose(out, (0, 3, 1, 2, 4))


def _reference(x_nchw, p, num_classes):
    """Pure-JAX f32 reference with identical semantics (for validation)."""
    eps = 1e-5
    x = jnp.transpose(x_nchw, (0, 2, 3, 1))
    y = jax.lax.conv_general_dilated(
        x, p["w1"], window_strides=(1, 1), padding=((1, 1), (1, 1)),
        dimension_numbers=("NHWC", "HWIO", "NHWC"),
        precision=jax.lax.Precision.HIGHEST)
    scale = p["gamma"] / jnp.sqrt(p["running_var"] + eps)
    bias = p["beta"] - p["running_mean"] * scale
    y = y * scale + bias
    y = jnp.where(y > 0, y, 0.1 * y)
    z = jnp.einsum("nhwc,cd->nhwd", y, p["w2"],
                   precision=jax.lax.Precision.HIGHEST) + p["b2"]
    N, H, W, _ = z.shape
    out = z.reshape(N, H, W, 3, num_classes + 5)
    return jnp.transpose(out, (0, 3, 1, 2, 4))


if __name__ == "__main__":
    key = jax.random.PRNGKey(0)
    in_channels, num_classes = 4, 3
    N, H, W = 2, 16, 16

    kx, kp = jax.random.split(key)
    x = jax.random.normal(kx, (N, in_channels, H, W), jnp.float32)
    params = init_params(kp, in_channels, num_classes)

    ref = _reference(x, params, num_classes)

    # Row-tiled path (grid = (N, 2), exercises halo handling).
    out = jax.block_until_ready(
        scale_prediction_forward(x, params, num_classes, row_tile=8))
    assert out.shape == (N, 3, H, W, num_classes + 5), out.shape
    # bf16 matmul operands (f32 accumulation) vs the f32 reference -> loosened
    # tolerance.
    assert jnp.allclose(out, ref, atol=5e-2, rtol=5e-2), float(
        jnp.max(jnp.abs(out - ref)))

    # Whole-image path (auto row tile -> grid = (N, 1)).
    out_full = jax.block_until_ready(
        scale_prediction_forward(x, params, num_classes))
    assert jnp.allclose(out_full, ref, atol=5e-2, rtol=5e-2), float(
        jnp.max(jnp.abs(out_full - ref)))

    print("KERNEL_OK")
</pallas_src>

<mosaic_0001>
module attributes {stable_mosaic.version = 11 : i64} {
  func.func @_scale_pred_kernel(%arg0: i32, %arg1: i32, %arg2: memref<1x16x16x4xbf16, #tpu.memory_space<vmem>>, %arg3: memref<9x4x8xbf16, #tpu.memory_space<vmem>>, %arg4: memref<1x8xf32, #tpu.memory_space<vmem>>, %arg5: memref<8x128xbf16, #tpu.memory_space<vmem>>, %arg6: memref<1x128xf32, #tpu.memory_space<vmem>>, %arg7: memref<1x128x128xf32, #tpu.memory_space<vmem>>, %arg8: memref<10x18x4xbf16, #tpu.memory_space<vmem>>) attributes {dimension_semantics = [#tpu.dimension_semantics<parallel>, #tpu.dimension_semantics<parallel>], iteration_bounds = array<i64: 2, 2>, scalar_prefetch = 0 : i64, scratch_operands = 1 : i64, tpu.core_type = #tpu.core_type<tc>, window_params = [{transform_indices = @transform_0, window_bounds = array<i64: 1, 16, 16, 4>}, {pipeline_mode = #tpu.pipeline_mode<synchronous>, transform_indices = @transform_1, window_bounds = array<i64: 9, 4, 8>}, {pipeline_mode = #tpu.pipeline_mode<synchronous>, transform_indices = @transform_2, window_bounds = array<i64: 1, 8>}, {pipeline_mode = #tpu.pipeline_mode<synchronous>, transform_indices = @transform_3, window_bounds = array<i64: 8, 128>}, {pipeline_mode = #tpu.pipeline_mode<synchronous>, transform_indices = @transform_4, window_bounds = array<i64: 1, 128>}, {transform_indices = @transform_5, window_bounds = array<i64: 1, 128, 128>}]} {
    %c8_i32 = arith.constant 8 : i32
    %0 = arith.muli %arg1, %c8_i32 : i32
    %1 = tpu.assume_multiple %0, 8 : i32
    %cst = arith.constant 0.000000e+00 : bf16
    %2 = vector.broadcast %cst : bf16 to vector<1x18x4xbf16>
    %cst_0 = arith.constant 0.000000e+00 : bf16
    %3 = vector.broadcast %cst_0 : bf16 to vector<10x1x4xbf16>
    %c0 = arith.constant 0 : index
    %c0_1 = arith.constant 0 : index
    %c0_2 = arith.constant 0 : index
    %4 = vector.load %arg8[%c0, %c0_1, %c0_2] : memref<10x18x4xbf16, #tpu.memory_space<vmem>>, vector<1x18x4xbf16>
    tpu.vector_store %arg8[%c0, %c0_1, %c0_2], %2 {strides = array<i32>} : memref<10x18x4xbf16, #tpu.memory_space<vmem>>, vector<1x18x4xbf16>,
    %c9 = arith.constant 9 : index
    %c0_3 = arith.constant 0 : index
    %c0_4 = arith.constant 0 : index
    %5 = vector.load %arg8[%c9, %c0_3, %c0_4] : memref<10x18x4xbf16, #tpu.memory_space<vmem>>, vector<1x18x4xbf16>
    tpu.vector_store %arg8[%c9, %c0_3, %c0_4], %2 {strides = array<i32>} : memref<10x18x4xbf16, #tpu.memory_space<vmem>>, vector<1x18x4xbf16>,
    %c0_i32 = arith.constant 0 : i32
    %6 = arith.cmpi sgt, %arg1, %c0_i32 : i32
    %7 = arith.extui %6 : i1 to i32
    %c0_i32_5 = arith.constant 0 : i32
    %8 = arith.cmpi ne, %7, %c0_i32_5 : i32
    scf.if %8 {
      %c1_i32_84 = arith.constant 1 : i32
      %86 = arith.subi %1, %c1_i32_84 : i32
      %c0_85 = arith.constant 0 : index
      %87 = arith.index_cast %86 : i32 to index
      %c0_86 = arith.constant 0 : index
      %c0_87 = arith.constant 0 : index
      %88 = vector.load %arg2[%c0_85, %87, %c0_86, %c0_87] : memref<1x16x16x4xbf16, #tpu.memory_space<vmem>>, vector<1x1x16x4xbf16>
      %89 = vector.shape_cast %88 : vector<1x1x16x4xbf16> to vector<1x16x4xbf16>
      %c0_88 = arith.constant 0 : index
      %c1_89 = arith.constant 1 : index
      %c0_90 = arith.constant 0 : index
      %90 = vector.load %arg8[%c0_88, %c1_89, %c0_90] : memref<10x18x4xbf16, #tpu.memory_space<vmem>>, vector<1x16x4xbf16>
      tpu.vector_store %arg8[%c0_88, %c1_89, %c0_90], %89 {strides = array<i32>} : memref<10x18x4xbf16, #tpu.memory_space<vmem>>, vector<1x16x4xbf16>,
    } else {
    }
    %c1_i32 = arith.constant 1 : i32
    %9 = arith.cmpi slt, %arg1, %c1_i32 : i32
    %10 = arith.extui %9 : i1 to i32
    %c0_i32_6 = arith.constant 0 : i32
    %11 = arith.cmpi ne, %10, %c0_i32_6 : i32
    scf.if %11 {
      %c8_i32_84 = arith.constant 8 : i32
      %86 = arith.addi %1, %c8_i32_84 : i32
      %c0_85 = arith.constant 0 : index
      %87 = arith.index_cast %86 : i32 to index
      %c0_86 = arith.constant 0 : index
      %c0_87 = arith.constant 0 : index
      %88 = vector.load %arg2[%c0_85, %87, %c0_86, %c0_87] : memref<1x16x16x4xbf16, #tpu.memory_space<vmem>>, vector<1x1x16x4xbf16>
      %89 = vector.shape_cast %88 : vector<1x1x16x4xbf16> to vector<1x16x4xbf16>
      %c9_88 = arith.constant 9 : index
      %c1_89 = arith.constant 1 : index
      %c0_90 = arith.constant 0 : index
      %90 = vector.load %arg8[%c9_88, %c1_89, %c0_90] : memref<10x18x4xbf16, #tpu.memory_space<vmem>>, vector<1x16x4xbf16>
      tpu.vector_store %arg8[%c9_88, %c1_89, %c0_90], %89 {strides = array<i32>} : memref<10x18x4xbf16, #tpu.memory_space<vmem>>, vector<1x16x4xbf16>,
    } else {
    }
    %c0_7 = arith.constant 0 : index
    %c0_8 = arith.constant 0 : index
    %c0_9 = arith.constant 0 : index
    %12 = vector.load %arg8[%c0_7, %c0_8, %c0_9] : memref<10x18x4xbf16, #tpu.memory_space<vmem>>, vector<10x1x4xbf16>
    tpu.vector_store %arg8[%c0_7, %c0_8, %c0_9], %3 {strides = array<i32>} : memref<10x18x4xbf16, #tpu.memory_space<vmem>>, vector<10x1x4xbf16>,
    %c0_10 = arith.constant 0 : index
    %c17 = arith.constant 17 : index
    %c0_11 = arith.constant 0 : index
    %13 = vector.load %arg8[%c0_10, %c17, %c0_11] : memref<10x18x4xbf16, #tpu.memory_space<vmem>>, vector<10x1x4xbf16>
    tpu.vector_store %arg8[%c0_10, %c17, %c0_11], %3 {strides = array<i32>} : memref<10x18x4xbf16, #tpu.memory_space<vmem>>, vector<10x1x4xbf16>,
    %c0_12 = arith.constant 0 : index
    %14 = arith.index_cast %1 : i32 to index
    %c0_13 = arith.constant 0 : index
    %c0_14 = arith.constant 0 : index
    %15 = vector.load %arg2[%c0_12, %14, %c0_13, %c0_14] : memref<1x16x16x4xbf16, #tpu.memory_space<vmem>>, vector<1x8x16x4xbf16>
    %16 = vector.shape_cast %15 : vector<1x8x16x4xbf16> to vector<8x16x4xbf16>
    %c1 = arith.constant 1 : index
    %c1_15 = arith.constant 1 : index
    %c0_16 = arith.constant 0 : index
    %17 = vector.load %arg8[%c1, %c1_15, %c0_16] : memref<10x18x4xbf16, #tpu.memory_space<vmem>>, vector<8x16x4xbf16>
    tpu.vector_store %arg8[%c1, %c1_15, %c0_16], %16 {strides = array<i32>} : memref<10x18x4xbf16, #tpu.memory_space<vmem>>, vector<8x16x4xbf16>,
    %c0_17 = arith.constant 0 : index
    %c0_18 = arith.constant 0 : index
    %c0_19 = arith.constant 0 : index
    %18 = vector.load %arg8[%c0_17, %c0_18, %c0_19] : memref<10x18x4xbf16, #tpu.memory_space<vmem>>, vector<8x16x4xbf16>
    %19 = vector.shape_cast %18 : vector<8x16x4xbf16> to vector<128x4xbf16>
    %c0_20 = arith.constant 0 : index
    %c0_21 = arith.constant 0 : index
    %c0_22 = arith.constant 0 : index
    %20 = vector.load %arg3[%c0_20, %c0_21, %c0_22] : memref<9x4x8xbf16, #tpu.memory_space<vmem>>, vector<1x4x8xbf16>
    %21 = vector.shape_cast %20 : vector<1x4x8xbf16> to vector<4x8xbf16>
    %cst_23 = arith.constant dense<0.000000e+00> : vector<128x8xf32>
    %22 = tpu.matmul %19, %21, %cst_23 {dimension_numbers = #tpu.dot_dimension_numbers<[1], [0], [0], [1], [0, 0, 1, 1], [], []>} : vector<128x4xbf16>, vector<4x8xbf16>, vector<128x8xf32> -> vector<128x8xf32>
    %c0_24 = arith.constant 0 : index
    %c1_25 = arith.constant 1 : index
    %c0_26 = arith.constant 0 : index
    %23 = vector.load %arg8[%c0_24, %c1_25, %c0_26] : memref<10x18x4xbf16, #tpu.memory_space<vmem>>, vector<8x16x4xbf16>
    %24 = vector.shape_cast %23 : vector<8x16x4xbf16> to vector<128x4xbf16>
    %c1_27 = arith.constant 1 : index
    %c0_28 = arith.constant 0 : index
    %c0_29 = arith.constant 0 : index
    %25 = vector.load %arg3[%c1_27, %c0_28, %c0_29] : memref<9x4x8xbf16, #tpu.memory_space<vmem>>, vector<1x4x8xbf16>
    %26 = vector.shape_cast %25 : vector<1x4x8xbf16> to vector<4x8xbf16>
    %cst_30 = arith.constant dense<0.000000e+00> : vector<128x8xf32>
    %27 = tpu.matmul %24, %26, %cst_30 {dimension_numbers = #tpu.dot_dimension_numbers<[1], [0], [0], [1], [0, 0, 1, 1], [], []>} : vector<128x4xbf16>, vector<4x8xbf16>, vector<128x8xf32> -> vector<128x8xf32>
    %28 = arith.addf %22, %27 : vector<128x8xf32>
    %c0_31 = arith.constant 0 : index
    %c2 = arith.constant 2 : index
    %c0_32 = arith.constant 0 : index
    %29 = vector.load %arg8[%c0_31, %c2, %c0_32] : memref<10x18x4xbf16, #tpu.memory_space<vmem>>, vector<8x16x4xbf16>
    %30 = vector.shape_cast %29 : vector<8x16x4xbf16> to vector<128x4xbf16>
    %c2_33 = arith.constant 2 : index
    %c0_34 = arith.constant 0 : index
    %c0_35 = arith.constant 0 : index
    %31 = vector.load %arg3[%c2_33, %c0_34, %c0_35] : memref<9x4x8xbf16, #tpu.memory_space<vmem>>, vector<1x4x8xbf16>
    %32 = vector.shape_cast %31 : vector<1x4x8xbf16> to vector<4x8xbf16>
    %cst_36 = arith.constant dense<0.000000e+00> : vector<128x8xf32>
    %33 = tpu.matmul %30, %32, %cst_36 {dimension_numbers = #tpu.dot_dimension_numbers<[1], [0], [0], [1], [0, 0, 1, 1], [], []>} : vector<128x4xbf16>, vector<4x8xbf16>, vector<128x8xf32> -> vector<128x8xf32>
    %34 = arith.addf %28, %33 : vector<128x8xf32>
    %c1_37 = arith.constant 1 : index
    %c0_38 = arith.constant 0 : index
    %c0_39 = arith.constant 0 : index
    %35 = vector.load %arg8[%c1_37, %c0_38, %c0_39] : memref<10x18x4xbf16, #tpu.memory_space<vmem>>, vector<8x16x4xbf16>
    %36 = vector.shape_cast %35 : vector<8x16x4xbf16> to vector<128x4xbf16>
    %c3 = arith.constant 3 : index
    %c0_40 = arith.constant 0 : index
    %c0_41 = arith.constant 0 : index
    %37 = vector.load %arg3[%c3, %c0_40, %c0_41] : memref<9x4x8xbf16, #tpu.memory_space<vmem>>, vector<1x4x8xbf16>
    %38 = vector.shape_cast %37 : vector<1x4x8xbf16> to vector<4x8xbf16>
    %cst_42 = arith.constant dense<0.000000e+00> : vector<128x8xf32>
    %39 = tpu.matmul %36, %38, %cst_42 {dimension_numbers = #tpu.dot_dimension_numbers<[1], [0], [0], [1], [0, 0, 1, 1], [], []>} : vector<128x4xbf16>, vector<4x8xbf16>, vector<128x8xf32> -> vector<128x8xf32>
    %40 = arith.addf %34, %39 : vector<128x8xf32>
    %c1_43 = arith.constant 1 : index
    %c1_44 = arith.constant 1 : index
    %c0_45 = arith.constant 0 : index
    %41 = vector.load %arg8[%c1_43, %c1_44, %c0_45] : memref<10x18x4xbf16, #tpu.memory_space<vmem>>, vector<8x16x4xbf16>
    %42 = vector.shape_cast %41 : vector<8x16x4xbf16> to vector<128x4xbf16>
    %c4 = arith.constant 4 : index
    %c0_46 = arith.constant 0 : index
    %c0_47 = arith.constant 0 : index
    %43 = vector.load %arg3[%c4, %c0_46, %c0_47] : memref<9x4x8xbf16, #tpu.memory_space<vmem>>, vector<1x4x8xbf16>
    %44 = vector.shape_cast %43 : vector<1x4x8xbf16> to vector<4x8xbf16>
    %cst_48 = arith.constant dense<0.000000e+00> : vector<128x8xf32>
    %45 = tpu.matmul %42, %44, %cst_48 {dimension_numbers = #tpu.dot_dimension_numbers<[1], [0], [0], [1], [0, 0, 1, 1], [], []>} : vector<128x4xbf16>, vector<4x8xbf16>, vector<128x8xf32> -> vector<128x8xf32>
    %46 = arith.addf %40, %45 : vector<128x8xf32>
    %c1_49 = arith.constant 1 : index
    %c2_50 = arith.constant 2 : index
    %c0_51 = arith.constant 0 : index
    %47 = vector.load %arg8[%c1_49, %c2_50, %c0_51] : memref<10x18x4xbf16, #tpu.memory_space<vmem>>, vector<8x16x4xbf16>
    %48 = vector.shape_cast %47 : vector<8x16x4xbf16> to vector<128x4xbf16>
    %c5 = arith.constant 5 : index
    %c0_52 = arith.constant 0 : index
    %c0_53 = arith.constant 0 : index
    %49 = vector.load %arg3[%c5, %c0_52, %c0_53] : memref<9x4x8xbf16, #tpu.memory_space<vmem>>, vector<1x4x8xbf16>
    %50 = vector.shape_cast %49 : vector<1x4x8xbf16> to vector<4x8xbf16>
    %cst_54 = arith.constant dense<0.000000e+00> : vector<128x8xf32>
    %51 = tpu.matmul %48, %50, %cst_54 {dimension_numbers = #tpu.dot_dimension_numbers<[1], [0], [0], [1], [0, 0, 1, 1], [], []>} : vector<128x4xbf16>, vector<4x8xbf16>, vector<128x8xf32> -> vector<128x8xf32>
    %52 = arith.addf %46, %51 : vector<128x8xf32>
    %c2_55 = arith.constant 2 : index
    %c0_56 = arith.constant 0 : index
    %c0_57 = arith.constant 0 : index
    %53 = vector.load %arg8[%c2_55, %c0_56, %c0_57] : memref<10x18x4xbf16, #tpu.memory_space<vmem>>, vector<8x16x4xbf16>
    %54 = vector.shape_cast %53 : vector<8x16x4xbf16> to vector<128x4xbf16>
    %c6 = arith.constant 6 : index
    %c0_58 = arith.constant 0 : index
    %c0_59 = arith.constant 0 : index
    %55 = vector.load %arg3[%c6, %c0_58, %c0_59] : memref<9x4x8xbf16, #tpu.memory_space<vmem>>, vector<1x4x8xbf16>
    %56 = vector.shape_cast %55 : vector<1x4x8xbf16> to vector<4x8xbf16>
    %cst_60 = arith.constant dense<0.000000e+00> : vector<128x8xf32>
    %57 = tpu.matmul %54, %56, %cst_60 {dimension_numbers = #tpu.dot_dimension_numbers<[1], [0], [0], [1], [0, 0, 1, 1], [], []>} : vector<128x4xbf16>, vector<4x8xbf16>, vector<128x8xf32> -> vector<128x8xf32>
    %58 = arith.addf %52, %57 : vector<128x8xf32>
    %c2_61 = arith.constant 2 : index
    %c1_62 = arith.constant 1 : index
    %c0_63 = arith.constant 0 : index
    %59 = vector.load %arg8[%c2_61, %c1_62, %c0_63] : memref<10x18x4xbf16, #tpu.memory_space<vmem>>, vector<8x16x4xbf16>
    %60 = vector.shape_cast %59 : vector<8x16x4xbf16> to vector<128x4xbf16>
    %c7 = arith.constant 7 : index
    %c0_64 = arith.constant 0 : index
    %c0_65 = arith.constant 0 : index
    %61 = vector.load %arg3[%c7, %c0_64, %c0_65] : memref<9x4x8xbf16, #tpu.memory_space<vmem>>, vector<1x4x8xbf16>
    %62 = vector.shape_cast %61 : vector<1x4x8xbf16> to vector<4x8xbf16>
    %cst_66 = arith.constant dense<0.000000e+00> : vector<128x8xf32>
    %63 = tpu.matmul %60, %62, %cst_66 {dimension_numbers = #tpu.dot_dimension_numbers<[1], [0], [0], [1], [0, 0, 1, 1], [], []>} : vector<128x4xbf16>, vector<4x8xbf16>, vector<128x8xf32> -> vector<128x8xf32>
    %64 = arith.addf %58, %63 : vector<128x8xf32>
    %c2_67 = arith.constant 2 : index
    %c2_68 = arith.constant 2 : index
    %c0_69 = arith.constant 0 : index
    %65 = vector.load %arg8[%c2_67, %c2_68, %c0_69] : memref<10x18x4xbf16, #tpu.memory_space<vmem>>, vector<8x16x4xbf16>
    %66 = vector.shape_cast %65 : vector<8x16x4xbf16> to vector<128x4xbf16>
    %c8 = arith.constant 8 : index
    %c0_70 = arith.constant 0 : index
    %c0_71 = arith.constant 0 : index
    %67 = vector.load %arg3[%c8, %c0_70, %c0_71] : memref<9x4x8xbf16, #tpu.memory_space<vmem>>, vector<1x4x8xbf16>
    %68 = vector.shape_cast %67 : vector<1x4x8xbf16> to vector<4x8xbf16>
    %cst_72 = arith.constant dense<0.000000e+00> : vector<128x8xf32>
    %69 = tpu.matmul %66, %68, %cst_72 {dimension_numbers = #tpu.dot_dimension_numbers<[1], [0], [0], [1], [0, 0, 1, 1], [], []>} : vector<128x4xbf16>, vector<4x8xbf16>, vector<128x8xf32> -> vector<128x8xf32>
    %70 = arith.addf %64, %69 : vector<128x8xf32>
    %c0_73 = arith.constant 0 : index
    %c0_74 = arith.constant 0 : index
    %71 = vector.load %arg4[%c0_73, %c0_74] : memref<1x8xf32, #tpu.memory_space<vmem>>, vector<1x8xf32>
    %72 = vector.broadcast %71 : vector<1x8xf32> to vector<128x8xf32>
    %73 = arith.addf %70, %72 : vector<128x8xf32>
    %cst_75 = arith.constant 1.000000e-01 : f32
    %74 = vector.broadcast %cst_75 : f32 to vector<128x8xf32>
    %75 = arith.mulf %74, %73 : vector<128x8xf32>
    %76 = arith.maximumf %73, %75 : vector<128x8xf32>
    %77 = arith.truncf %76 : vector<128x8xf32> to vector<128x8xbf16>
    %c0_76 = arith.constant 0 : index
    %c0_77 = arith.constant 0 : index
    %78 = vector.load %arg5[%c0_76, %c0_77] : memref<8x128xbf16, #tpu.memory_space<vmem>>, vector<8x128xbf16>
    %cst_78 = arith.constant dense<0.000000e+00> : vector<128x128xf32>
    %79 = tpu.matmul %77, %78, %cst_78 {dimension_numbers = #tpu.dot_dimension_numbers<[1], [0], [0], [1], [0, 0, 1, 1], [], []>} : vector<128x8xbf16>, vector<8x128xbf16>, vector<128x128xf32> -> vector<128x128xf32>
    %c0_79 = arith.constant 0 : index
    %c0_80 = arith.constant 0 : index
    %80 = vector.load %arg6[%c0_79, %c0_80] : memref<1x128xf32, #tpu.memory_space<vmem>>, vector<1x128xf32>
    %81 = vector.broadcast %80 : vector<1x128xf32> to vector<128x128xf32>
    %82 = arith.addf %79, %81 : vector<128x128xf32>
    %c0_81 = arith.constant 0 : index
    %c0_82 = arith.constant 0 : index
    %c0_83 = arith.constant 0 : index
    %83 = vector.load %arg7[%c0_81, %c0_82, %c0_83] : memref<1x128x128xf32, #tpu.memory_space<vmem>>, vector<1x128x128xf32>
    %84 = vector.shape_cast %83 : vector<1x128x128xf32> to vector<128x128xf32>
    %85 = vector.shape_cast %82 : vector<128x128xf32> to vector<1x128x128xf32>
    tpu.vector_store %arg7[%c0_81, %c0_82, %c0_83], %85 {strides = array<i32>} : memref<1x128x128xf32, #tpu.memory_space<vmem>>, vector<1x128x128xf32>,
    return
  }
  func.func @transform_0(%arg0: i32, %arg1: i32) -> (i32, i32, i32, i32) {
    %c0_i32 = arith.constant 0 : i32
    %c0_i32_0 = arith.constant 0 : i32
    %c0_i32_1 = arith.constant 0 : i32
    %c0_i32_2 = arith.constant 0 : i32
    return %arg0, %c0_i32, %c0_i32_0, %c0_i32_1 : i32, i32, i32, i32
  }
  func.func @transform_1(%arg0: i32, %arg1: i32) -> (i32, i32, i32) {
    %c0_i32 = arith.constant 0 : i32
    %c0_i32_0 = arith.constant 0 : i32
    %c0_i32_1 = arith.constant 0 : i32
    %c0_i32_2 = arith.constant 0 : i32
    return %c0_i32, %c0_i32_0, %c0_i32_1 : i32, i32, i32
  }
  func.func @transform_2(%arg0: i32, %arg1: i32) -> (i32, i32) {
    %c0_i32 = arith.constant 0 : i32
    %c0_i32_0 = arith.constant 0 : i32
    %c0_i32_1 = arith.constant 0 : i32
    return %c0_i32, %c0_i32_0 : i32, i32
  }
  func.func @transform_3(%arg0: i32, %arg1: i32) -> (i32, i32) {
    %c0_i32 = arith.constant 0 : i32
    %c0_i32_0 = arith.constant 0 : i32
    %c0_i32_1 = arith.constant 0 : i32
    return %c0_i32, %c0_i32_0 : i32, i32
  }
  func.func @transform_4(%arg0: i32, %arg1: i32) -> (i32, i32) {
    %c0_i32 = arith.constant 0 : i32
    %c0_i32_0 = arith.constant 0 : i32
    %c0_i32_1 = arith.constant 0 : i32
    return %c0_i32, %c0_i32_0 : i32, i32
  }
  func.func @transform_5(%arg0: i32, %arg1: i32) -> (i32, i32, i32) {
    %c0_i32 = arith.constant 0 : i32
    %c0_i32_0 = arith.constant 0 : i32
    return %arg0, %arg1, %c0_i32 : i32, i32, i32
  }
}

</mosaic_0001>

<llo_original>
// kernel: tpu_custom_call.1
$region0: #{tpu_custom_call.1}
  #allocation0 [shape = 'u32[]', space=smem, size = 0x4, offset = 0x4, fixed_abs, tag = 'smem constant byte address 0x4 - core index']
  #allocation1 [shape = 'u32[144,128]{1,0:T(1,128)}', space=vmem, size = 0x12000, scoped, tag = 'internal scratch']
  #allocation2 [shape = 'bf16[10,18,4]{2,1,0:T(8,128)(2,1)}', space=vmem, size = 0xf000, scoped, tag = 'scratch operand']
  %s0 = inlined_call_operand.vmem [shape: bf16[2,16,16,4], index: 0, kind: input, shape index: {}]
  %s1 = inlined_call_operand.vmem [shape: bf16[9,4,8], index: 1, kind: input, shape index: {}]
  %s2 = inlined_call_operand.vmem [shape: f32[1,8], index: 2, kind: input, shape index: {}]
  %s3 = inlined_call_operand.vmem [shape: bf16[8,128], index: 3, kind: input, shape index: {}]
  %s4 = inlined_call_operand.vmem [shape: f32[1,128], index: 4, kind: input, shape index: {}]
  %s5 = inlined_call_operand.hbm [shape: f32[2,256,128], index: 5, kind: output, shape index: {}]
  %s6 = sld [smem:[#allocation0]]
  $region61: #{tpu_custom_call.1} parent=0
    _
  %s8 = ssub.s32 1, %s6
  %s9 = scalar_select 0, %s8, %s6
  $region1: #{tpu_custom_call.1} parent=0
    #allocation3 [shape = 'u8[131072]{0}', space=vmem, size = 0x20000, scoped, tag = 'output window, operand 0']
    #allocation4 [shape = 's32[2]{0}', space=sflag, size = 0x8, scoped, tag = 'scoped memory for tpu_custom_call.1']
    %10 = vsyncpa [#allocation4], 0
    %s11 = scalar_lea.sflag [#allocation4], 1
    %12 = vsyncpa %s11, 0
    loop: start=0, step=1, limit=6
    $region2: #{tpu_custom_call.1} parent=1 // loop_pre_header
      _
    $region3: #{tpu_custom_call.1} parent=1 // loop_header
      %s14 = sphi 0, %s18
      %p15 = scmp.ge.s32.totalorder %s14, 6
      %s21 = sphi 0, %s33
      %s22 = sphi 0, %s29
      %s23 = sphi 0, %s21
      %s24 = sphi 0, %s22
      %s25 = sphi 0, %s23
      %s26 = sphi 0, %s24
      %s36 = sphi 0, %s38
      %s39 = sphi 0, %s36
      %s40 = sphi 0, %s39
      %s56 = sphi 0, %s40
      %s60 = sphi 0, %s60
      %s62 = sphi 0, %s60
      %s63 = sphi 0, %s62
      %s77 = sphi 0, %s63
      %s81 = sphi 0, %s81
      %s83 = sphi 0, %s81
      %s84 = sphi 0, %s83
      %s98 = sphi 0, %s84
      %s102 = sphi 0, %s102
      %s104 = sphi 0, %s102
      %s105 = sphi 0, %s104
      %s119 = sphi 0, %s105
      %s123 = sphi 0, %s123
      %s125 = sphi 0, %s123
      %s126 = sphi 0, %s125
      %s140 = sphi 0, %s126
      %s148 = sphi 0, %s150
      %s151 = sphi 0, %s148
      %s152 = sphi 0, %s151
      %s168 = sphi 0, %s152
    $region4: #{tpu_custom_call.1} parent=1 // loop_header_branch
      %17 = sbr.rel (%p15) target = $region8
    $region5: #{tpu_custom_call.1} parent=1 // loop_body
      %s19 = ssub.s32 %s14, 1
      %s20 = ssub.s32 %s14, 2
      %s27 = sadd.s32 1, %s22
      %p28 = scmp.ge.s32.totalorder %s27, 2
      %s29 = scalar_select %p28, 0, %s27
      %s30 = sadd.s32 1, %s21
      %s31 = scalar_select %p28, %s30, %s21
      %p32 = scmp.ge.s32.totalorder %s31, 2
      %s33 = scalar_select %p32, 0, %s31
      %s34 = ssub.s32 %s21, %s33
      %p35 = scmp.eq.s32.totalorder %s34, 0
      %s37 = sadd.s32 %s36, 1
      %s38 = scalar_select %p35, %s36, %s37
      %p41 = pneg %p35
      %p42 = scmp.eq.s32.totalorder %s14, 3
      %p43 = por %p41, %p42
      %p44 = scmp.ne.s32.totalorder %s36, %s39
      %p45 = scmp.eq.s32.totalorder %s14, 0
      %p46 = por %p44, %p45
      %p47 = scmp.ne.s32.totalorder %s36, %s39
      %p48 = scmp.eq.s32.totalorder %s19, 3
      %p49 = por %p47, %p48
      %p50 = scmp.ne.s32.totalorder %s39, %s40
      %p51 = scmp.eq.s32.totalorder %s19, 0
      %p52 = por %p50, %p51
      %p53 = scmp.ne.s32.totalorder %s39, %s40
      %p54 = scmp.eq.s32.totalorder %s20, 3
      %p55 = por %p53, %p54
      %p57 = scmp.ne.s32.totalorder %s40, %s56
      %p58 = scmp.eq.s32.totalorder %s20, 0
      %p59 = por %p57, %p58
      %s61 = sadd.s32 %s60, 1
      %p64 = scmp.eq.s32.totalorder %s14, 3
      %p65 = scmp.ne.s32.totalorder %s60, %s62
      %p66 = scmp.eq.s32.totalorder %s14, 0
      %p67 = por %p65, %p66
      %p68 = scmp.ne.s32.totalorder %s60, %s62
      %p69 = scmp.eq.s32.totalorder %s19, 3
      %p70 = por %p68, %p69
      %p71 = scmp.ne.s32.totalorder %s62, %s63
      %p72 = scmp.eq.s32.totalorder %s19, 0
      %p73 = por %p71, %p72
      %p74 = scmp.ne.s32.totalorder %s62, %s63
      %p75 = scmp.eq.s32.totalorder %s20, 3
      %p76 = por %p74, %p75
      %p78 = scmp.ne.s32.totalorder %s63, %s77
      %p79 = scmp.eq.s32.totalorder %s20, 0
      %p80 = por %p78, %p79
      %s82 = sadd.s32 %s81, 1
      %p85 = scmp.eq.s32.totalorder %s14, 3
      %p86 = scmp.ne.s32.totalorder %s81, %s83
      %p87 = scmp.eq.s32.totalorder %s14, 0
      %p88 = por %p86, %p87
      %p89 = scmp.ne.s32.totalorder %s81, %s83
      %p90 = scmp.eq.s32.totalorder %s19, 3
      %p91 = por %p89, %p90
      %p92 = scmp.ne.s32.totalorder %s83, %s84
      %p93 = scmp.eq.s32.totalorder %s19, 0
      %p94 = por %p92, %p93
      %p95 = scmp.ne.s32.totalorder %s83, %s84
      %p96 = scmp.eq.s32.totalorder %s20, 3
      %p97 = por %p95, %p96
      %p99 = scmp.ne.s32.totalorder %s84, %s98
      %p100 = scmp.eq.s32.totalorder %s20, 0
      %p101 = por %p99, %p100
      %s103 = sadd.s32 %s102, 1
      %p106 = scmp.eq.s32.totalorder %s14, 3
      %p107 = scmp.ne.s32.totalorder %s102, %s104
      %p108 = scmp.eq.s32.totalorder %s14, 0
      %p109 = por %p107, %p108
      %p110 = scmp.ne.s32.totalorder %s102, %s104
      %p111 = scmp.eq.s32.totalorder %s19, 3
      %p112 = por %p110, %p111
      %p113 = scmp.ne.s32.totalorder %s104, %s105
      %p114 = scmp.eq.s32.totalorder %s19, 0
      %p115 = por %p113, %p114
      %p116 = scmp.ne.s32.totalorder %s104, %s105
      %p117 = scmp.eq.s32.totalorder %s20, 3
      %p118 = por %p116, %p117
      %p120 = scmp.ne.s32.totalorder %s105, %s119
      %p121 = scmp.eq.s32.totalorder %s20, 0
      %p122 = por %p120, %p121
      %s124 = sadd.s32 %s123, 1
      %p127 = scmp.eq.s32.totalorder %s14, 3
      %p128 = scmp.ne.s32.totalorder %s123, %s125
      %p129 = scmp.eq.s32.totalorder %s14, 0
      %p130 = por %p128, %p129
      %p131 = scmp.ne.s32.totalorder %s123, %s125
      %p132 = scmp.eq.s32.totalorder %s19, 3
      %p133 = por %p131, %p132
      %p134 = scmp.ne.s32.totalorder %s125, %s126
      %p135 = scmp.eq.s32.totalorder %s19, 0
      %p136 = por %p134, %p135
      %p137 = scmp.ne.s32.totalorder %s125, %s126
      %p138 = scmp.eq.s32.totalorder %s20, 3
      %p139 = por %p137, %p138
      %p141 = scmp.ne.s32.totalorder %s126, %s140
      %p142 = scmp.eq.s32.totalorder %s20, 0
      %p143 = por %p141, %p142
      %s144 = ssub.s32 %s21, %s33
      %s145 = ssub.s32 %s22, %s29
      %s146 = sor.u32 %s144, %s145
      %p147 = scmp.eq.s32.totalorder %s146, 0
      %s149 = sadd.s32 %s148, 1
      %s150 = scalar_select %p147, %s148, %s149
      %p153 = pneg %p147
      %p154 = scmp.eq.s32.totalorder %s14, 3
      %p155 = por %p153, %p154
      %p156 = scmp.ne.s32.totalorder %s148, %s151
      %p157 = scmp.eq.s32.totalorder %s14, 0
      %p158 = por %p156, %p157
      %p159 = scmp.ne.s32.totalorder %s148, %s151
      %p160 = scmp.eq.s32.totalorder %s19, 3
      %p161 = por %p159, %p160
      %p162 = scmp.ne.s32.totalorder %s151, %s152
      %p163 = scmp.eq.s32.totalorder %s19, 0
      %p164 = por %p162, %p163
      %p165 = scmp.ne.s32.totalorder %s151, %s152
      %p166 = scmp.eq.s32.totalorder %s20, 3
      %p167 = por %p165, %p166
      %p169 = scmp.ne.s32.totalorder %s152, %s168
      %p170 = scmp.eq.s32.totalorder %s20, 0
      %p171 = por %p169, %p170
      %p172 = scmp.le.s32.totalorder 1, %s14
      %p173 = scmp.lt.s32.totalorder %s14, 5
      %p174 = pnand %p172, %p173
      %p175 = pneg %p174
      // Predicated region
      $region9: #{tpu_custom_call.1} parent=5 // pred_check
        _
      $region10: #{tpu_custom_call.1} parent=5 // pred_check_branch
        %177 = sbr.rel (%p174) target = $region12
      $region11: #{tpu_custom_call.1} parent=5 // pred_region
        %s178 = ssub.s32 %s14, 1
        // Predicated region
        $region13: #{tpu_custom_call.1} parent=11 // pred_check
          %p179 = pneg %p73
        $region14: #{tpu_custom_call.1} parent=11 // pred_check_branch
          %181 = sbr.rel (%p179) target = $region16
        $region15: #{tpu_custom_call.1} parent=11 // pred_region
          _
        $region16: #{tpu_custom_call.1} parent=11 // pred_fallthru
          _
        // Predicated region
        $region17: #{tpu_custom_call.1} parent=11 // pred_check
          %p182 = pneg %p94
        $region18: #{tpu_custom_call.1} parent=11 // pred_check_branch
          %184 = sbr.rel (%p182) target = $region20
        $region19: #{tpu_custom_call.1} parent=11 // pred_region
          _
        $region20: #{tpu_custom_call.1} parent=11 // pred_fallthru
          _
        // Predicated region
        $region21: #{tpu_custom_call.1} parent=11 // pred_check
          %p185 = pneg %p115
        $region22: #{tpu_custom_call.1} parent=11 // pred_check_branch
          %187 = sbr.rel (%p185) target = $region24
        $region23: #{tpu_custom_call.1} parent=11 // pred_region
          _
        $region24: #{tpu_custom_call.1} parent=11 // pred_fallthru
          _
        // Predicated region
        $region25: #{tpu_custom_call.1} parent=11 // pred_check
          %p188 = pneg %p136
        $region26: #{tpu_custom_call.1} parent=11 // pred_check_branch
          %190 = sbr.rel (%p188) target = $region28
        $region27: #{tpu_custom_call.1} parent=11 // pred_region
          _
        $region28: #{tpu_custom_call.1} parent=11 // pred_fallthru
          _
      $region12: #{tpu_custom_call.1} parent=5 // pred_fallthru
        _
      %p191 = scmp.lt.s32.totalorder %s14, 4
      // Predicated region
      $region29: #{tpu_custom_call.1} parent=5 // pred_check
        %p192 = pneg %p191
      $region30: #{tpu_custom_call.1} parent=5 // pred_check_branch
        %194 = sbr.rel (%p192) target = $region32
      $region31: #{tpu_custom_call.1} parent=5 // pred_region
        // Predicated region
        $region33: #{tpu_custom_call.1} parent=31 // pred_check
          %p195 = pneg %p46
        $region34: #{tpu_custom_call.1} parent=31 // pred_check_branch
          %197 = sbr.rel (%p195) target = $region36
        $region35: #{tpu_custom_call.1} parent=31 // pred_region
          %p198 = scmp.lt.s32.totalorder %s21, 1
          %s199 = scalar_select %p198, %s21, 1
          %s200 = smul.addr %s199, 32
          %s201 = smul.addr %s200, 4
          %s202 = scalar_lea.vmem %s0, %s201
        $region36: #{tpu_custom_call.1} parent=31 // pred_fallthru
          _
      $region32: #{tpu_custom_call.1} parent=5 // pred_fallthru
        _
      %p203 = scmp.le.s32.totalorder 1, %s14
      %p204 = scmp.lt.s32.totalorder %s14, 5
      %p205 = pnand %p203, %p204
      %p206 = pneg %p205
      // Predicated region
      $region37: #{tpu_custom_call.1} parent=5 // pred_check
        _
      $region38: #{tpu_custom_call.1} parent=5 // pred_check_branch
        %208 = sbr.rel (%p205) target = $region40
      $region39: #{tpu_custom_call.1} parent=5 // pred_region
        %s209 = ssub.s32 %s14, 1
        %p210 = scmp.lt.s32.totalorder %s23, 1
        %s211 = scalar_select %p210, %s23, 1
        %s212 = smul.addr %s211, 32
        %s213 = smul.addr %s212, 4
        %s214 = scalar_lea.vmem %s0, %s213
        %p215 = pneg %p52
        %p216 = pneg %p49
        %p217 = pneg %p73
        %p218 = pneg %p70
        %p219 = pneg %p94
        %p220 = pneg %p91
        %p221 = pneg %p115
        %p222 = pneg %p112
        %p223 = pneg %p136
        %p224 = pneg %p133
        %p225 = pneg %p164
        %p226 = pneg %p161
        %s227 = sand.u32 %s151, 1
        %s228 = scalar_lea.sflag [#allocation4], %s227
        %s229 = sand.u32 %s151, 1
        %s230 = smul.addr %s229, 128
        %s231 = scalar_lea.vmem [#allocation3], %s230
        %p232 = scmp.lt.s32.totalorder %s23, 1
        %s233 = scalar_select %p232, %s23, 1
        %s234 = smul.addr %s233, 32
        %s235 = smul.addr %s234, 4
        %s236 = scalar_lea.vmem %s0, %s235
        %s237 = smul.u32 16, %s24
        %s239 = smul.u32 %s24, 8
        %vm240 = vcmask 27648
        %241 = vst.msk [vmem:[#allocation2] sm:$0xf] %vm240, 0
        %242 = vst.msk [vmem:[#allocation2 + $0x4] sm:$0xf] %vm240, 0
        %vm243 = vcmask 24576
        %244 = vst.msk [vmem:[#allocation2 + $0x8] sm:$0x1] %vm243, 0
        %s245 = scalar_lea.vmem [#allocation2], 108
        %246 = vst.msk [vmem:[%s245] sm:$0xf] %vm240, 0
        %247 = vst.msk [vmem:[%s245 + $0x4] sm:$0xf] %vm240, 0
        %248 = vst.msk [vmem:[%s245 + $0x8] sm:$0x1] %vm243, 0
        %p249 = scmp.gt.s32.totalorder %s24, 0
        // Predicated region
        $region41: #{tpu_custom_call.1} parent=39 // pred_check
          %p250 = pneg %p249
        $region42: #{tpu_custom_call.1} parent=39 // pred_check_branch
          %252 = sbr.rel (%p250) target = $region44
        $region43: #{tpu_custom_call.1} parent=39 // pred_region
          %s253 = ssub.s32 %s239, 1
          %s254 = smul.u32 %s253, 2
          %s255 = smul.addr %s254, 4
          %s256 = scalar_lea.vmem %s236, %s255
          %v257 = vld [vmem:[%s256] sm:$0xf]
          %v258 = vld [vmem:[%s256 + $0x4] sm:$0xf]
          %vm259 = vsmask.f32 256
          %vm260 = vsmask.f32 4368
          %vm261 = vmor %vm259, %vm260
          %v263 = vshrl.u32 %v257, 16
          %v265 = vrot.slane %v263, 7
          %v266 = vshll.u32 %v257, 16
          %v268 = vor.u32 %v265, %v266
          %v269 = vrot.slane %v265, 4
          %v271 = vshrl.u32 %v258, 16
          %v273 = vrot.slane %v271, 7
          %v274 = vshll.u32 %v258, 16
          %v276 = vor.u32 %v273, %v274
          %v277 = vsel %vm261, %v269, %v276
          %v278 = vrot.slane %v273, 4
          %vm282 = vcmask 27648
          %vm283 = vsmask.f32 7938
          %vm284 = vmand %vm282, %vm283
          %v285 = vld [vmem:[#allocation2] sm:$0xf]
          %v286 = vsel %vm284, %v268, %v285
          %287 = vst [vmem:[#allocation2] sm:$0xf] %v286
          %288 = vst.msk [vmem:[#allocation2 + $0x4] sm:$0xf] %vm240, %v277
          %vm289 = vcmask 24576
          %vm290 = vmand %vm289, %vm259
          %v291 = vld [vmem:[#allocation2 + $0x8] sm:$0x1]
          %v292 = vsel %vm290, %v278, %v291
          %293 = vst [vmem:[#allocation2 + $0x8] sm:$0x1] %v292
        $region44: #{tpu_custom_call.1} parent=39 // pred_fallthru
          _
        %p294 = scmp.lt.s32.totalorder %s24, 1
        // Predicated region
        $region45: #{tpu_custom_call.1} parent=39 // pred_check
          %p295 = pneg %p294
        $region46: #{tpu_custom_call.1} parent=39 // pred_check_branch
          %297 = sbr.rel (%p295) target = $region48
        $region47: #{tpu_custom_call.1} parent=39 // pred_region
          %s298 = sadd.s32 %s239, 8
          %s299 = smul.u32 %s298, 2
          %s300 = smul.addr %s299, 4
          %s301 = scalar_lea.vmem %s236, %s300
          %v302 = vld [vmem:[%s301] sm:$0xf]
          %v303 = vld [vmem:[%s301 + $0x4] sm:$0xf]
          %vm304 = vsmask.f32 256
          %vm305 = vsmask.f32 4368
          %vm306 = vmor %vm304, %vm305
          %v308 = vshrl.u32 %v302, 16
          %v310 = vrot.slane %v308, 7
          %v311 = vshll.u32 %v302, 16
          %v313 = vor.u32 %v310, %v311
          %v314 = vrot.slane %v310, 4
          %v316 = vshrl.u32 %v303, 16
          %v318 = vrot.slane %v316, 7
          %v319 = vshll.u32 %v303, 16
          %v321 = vor.u32 %v318, %v319
          %v322 = vsel %vm306, %v314, %v321
          %v323 = vrot.slane %v318, 4
          %vm327 = vcmask 27648
          %vm328 = vsmask.f32 7938
          %vm329 = vmand %vm327, %vm328
          %v330 = vld [vmem:[%s245] sm:$0xf]
          %v331 = vsel %vm329, %v313, %v330
          %332 = vst [vmem:[%s245] sm:$0xf] %v331
          %333 = vst.msk [vmem:[%s245 + $0x4] sm:$0xf] %vm240, %v322
          %vm334 = vcmask 24576
          %vm335 = vmand %vm334, %vm304
          %v336 = vld [vmem:[%s245 + $0x8] sm:$0x1]
          %v337 = vsel %vm335, %v323, %v336
          %338 = vst [vmem:[%s245 + $0x8] sm:$0x1] %v337
        $region48: #{tpu_custom_call.1} parent=39 // pred_fallthru
          _
        %vm339 = vcmask 24576
        %vm340 = vsmask.f32 256
        %vm341 = vmand %vm339, %vm340
        %v342 = vld [vmem:[#allocation2] sm:$0x1]
        %v343 = vsel %vm341, 0, %v342
        %344 = vst [vmem:[#allocation2] sm:$0x1] %v343
        %v345 = vld [vmem:[#allocation2 + $0xc] sm:$0x1]
        %v346 = vsel %vm341, 0, %v345
        %347 = vst [vmem:[#allocation2 + $0xc] sm:$0x1] %v346
        %v348 = vld [vmem:[#allocation2 + $0x18] sm:$0x1]
        %v349 = vsel %vm341, 0, %v348
        %350 = vst [vmem:[#allocation2 + $0x18] sm:$0x1] %v349
        %v351 = vld [vmem:[#allocation2 + $0x24] sm:$0x1]
        %v352 = vsel %vm341, 0, %v351
        %353 = vst [vmem:[#allocation2 + $0x24] sm:$0x1] %v352
        %v354 = vld [vmem:[#allocation2 + $0x30] sm:$0x1]
        %v355 = vsel %vm341, 0, %v354
        %356 = vst [vmem:[#allocation2 + $0x30] sm:$0x1] %v355
        %v357 = vld [vmem:[#allocation2 + $0x3c] sm:$0x1]
        %v358 = vsel %vm341, 0, %v357
        %359 = vst [vmem:[#allocation2 + $0x3c] sm:$0x1] %v358
        %v360 = vld [vmem:[#allocation2 + $0x48] sm:$0x1]
        %v361 = vsel %vm341, 0, %v360
        %362 = vst [vmem:[#allocation2 + $0x48] sm:$0x1] %v361
        %v363 = vld [vmem:[#allocation2 + $0x54] sm:$0x1]
        %v364 = vsel %vm341, 0, %v363
        %365 = vst [vmem:[#allocation2 + $0x54] sm:$0x1] %v364
        %v366 = vld [vmem:[#allocation2 + $0x60] sm:$0x1]
        %v367 = vsel %vm341, 0, %v366
        %368 = vst [vmem:[#allocation2 + $0x60] sm:$0x1] %v367
        %v369 = vld [vmem:[#allocation2 + $0x6c] sm:$0x1]
        %v370 = vsel %vm341, 0, %v369
        %371 = vst [vmem:[#allocation2 + $0x6c] sm:$0x1] %v370
        %vm372 = vsmask.f32 7938
        %vm373 = vmand %vm339, %vm372
        %v374 = vld [vmem:[#allocation2 + $0x8] sm:$0x1]
        %v375 = vsel %vm373, 0, %v374
        %376 = vst [vmem:[#allocation2 + $0x8] sm:$0x1] %v375
        %v377 = vld [vmem:[#allocation2 + $0x14] sm:$0x1]
        %v378 = vsel %vm373, 0, %v377
        %379 = vst [vmem:[#allocation2 + $0x14] sm:$0x1] %v378
        %v380 = vld [vmem:[#allocation2 + $0x20] sm:$0x1]
        %v381 = vsel %vm373, 0, %v380
        %382 = vst [vmem:[#allocation2 + $0x20] sm:$0x1] %v381
        %v383 = vld [vmem:[#allocation2 + $0x2c] sm:$0x1]
        %v384 = vsel %vm373, 0, %v383
        %385 = vst [vmem:[#allocation2 + $0x2c] sm:$0x1] %v384
        %v386 = vld [vmem:[#allocation2 + $0x38] sm:$0x1]
        %v387 = vsel %vm373, 0, %v386
        %388 = vst [vmem:[#allocation2 + $0x38] sm:$0x1] %v387
        %v389 = vld [vmem:[#allocation2 + $0x44] sm:$0x1]
        %v390 = vsel %vm373, 0, %v389
        %391 = vst [vmem:[#allocation2 + $0x44] sm:$0x1] %v390
        %v392 = vld [vmem:[#allocation2 + $0x50] sm:$0x1]
        %v393 = vsel %vm373, 0, %v392
        %394 = vst [vmem:[#allocation2 + $0x50] sm:$0x1] %v393
        %v395 = vld [vmem:[#allocation2 + $0x5c] sm:$0x1]
        %v396 = vsel %vm373, 0, %v395
        %397 = vst [vmem:[#allocation2 + $0x5c] sm:$0x1] %v396
        %v398 = vld [vmem:[#allocation2 + $0x68] sm:$0x1]
        %v399 = vsel %vm373, 0, %v398
        %400 = vst [vmem:[#allocation2 + $0x68] sm:$0x1] %v399
        %v401 = vld [vmem:[#allocation2 + $0x74] sm:$0x1]
        %v402 = vsel %vm373, 0, %v401
        %403 = vst [vmem:[#allocation2 + $0x74] sm:$0x1] %v402
        %s404 = smul.u32 %s239, 2
        %s405 = smul.addr %s404, 4
        %s406 = scalar_lea.vmem %s236, %s405
        %v407 = vld [vmem:[%s406] sm:$0xf]
        %v408 = vld [vmem:[%s406 + $0x4] sm:$0xf]
        %v409 = vld [vmem:[%s406 + $0x8] sm:$0xf]
        %v410 = vld [vmem:[%s406 + $0xc] sm:$0xf]
        %v411 = vld [vmem:[%s406 + $0x10] sm:$0xf]
        %v412 = vld [vmem:[%s406 + $0x14] sm:$0xf]
        %v413 = vld [vmem:[%s406 + $0x18] sm:$0xf]
        %v414 = vld [vmem:[%s406 + $0x1c] sm:$0xf]
        %v415 = vld [vmem:[%s406 + $0x20] sm:$0xf]
        %v416 = vld [vmem:[%s406 + $0x24] sm:$0xf]
        %v417 = vld [vmem:[%s406 + $0x28] sm:$0xf]
        %v418 = vld [vmem:[%s406 + $0x2c] sm:$0xf]
        %v419 = vld [vmem:[%s406 + $0x30] sm:$0xf]
        %v420 = vld [vmem:[%s406 + $0x34] sm:$0xf]
        %v421 = vld [vmem:[%s406 + $0x38] sm:$0xf]
        %v422 = vld [vmem:[%s406 + $0x3c] sm:$0xf]
        %vm423 = vsmask.f32 4368
        %vm424 = vmor %vm340, %vm423
        %v426 = vshrl.u32 %v407, 16
        %v428 = vrot.slane %v426, 7
        %v429 = vshll.u32 %v407, 16
        %v431 = vor.u32 %v428, %v429
        %v432 = vrot.slane %v428, 4
        %v434 = vshrl.u32 %v408, 16
        %v436 = vrot.slane %v434, 7
        %v437 = vshll.u32 %v408, 16
        %v439 = vor.u32 %v436, %v437
        %v440 = vsel %vm424, %v432, %v439
        %v441 = vrot.slane %v436, 4
        %v443 = vshrl.u32 %v409, 16
        %v445 = vrot.slane %v443, 7
        %v446 = vshll.u32 %v409, 16
        %v448 = vor.u32 %v445, %v446
        %v449 = vrot.slane %v445, 4
        %v451 = vshrl.u32 %v410, 16
        %v453 = vrot.slane %v451, 7
        %v454 = vshll.u32 %v410, 16
        %v456 = vor.u32 %v453, %v454
        %v457 = vsel %vm424, %v449, %v456
        %v458 = vrot.slane %v453, 4
        %v460 = vshrl.u32 %v411, 16
        %v462 = vrot.slane %v460, 7
        %v463 = vshll.u32 %v411, 16
        %v465 = vor.u32 %v462, %v463
        %v466 = vrot.slane %v462, 4
        %v468 = vshrl.u32 %v412, 16
        %v470 = vrot.slane %v468, 7
        %v471 = vshll.u32 %v412, 16
        %v473 = vor.u32 %v470, %v471
        %v474 = vsel %vm424, %v466, %v473
        %v475 = vrot.slane %v470, 4
        %v477 = vshrl.u32 %v413, 16
        %v479 = vrot.slane %v477, 7
        %v480 = vshll.u32 %v413, 16
        %v482 = vor.u32 %v479, %v480
        %v483 = vrot.slane %v479, 4
        %v485 = vshrl.u32 %v414, 16
        %v487 = vrot.slane %v485, 7
        %v488 = vshll.u32 %v414, 16
        %v490 = vor.u32 %v487, %v488
        %v491 = vsel %vm424, %v483, %v490
        %v492 = vrot.slane %v487, 4
        %v494 = vshrl.u32 %v415, 16
        %v496 = vrot.slane %v494, 7
        %v497 = vshll.u32 %v415, 16
        %v499 = vor.u32 %v496, %v497
        %v500 = vrot.slane %v496, 4
        %v502 = vshrl.u32 %v416, 16
        %v504 = vrot.slane %v502, 7
        %v505 = vshll.u32 %v416, 16
        %v507 = vor.u32 %v504, %v505
        %v508 = vsel %vm424, %v500, %v507
        %v509 = vrot.slane %v504, 4
        %v511 = vshrl.u32 %v417, 16
        %v513 = vrot.slane %v511, 7
        %v514 = vshll.u32 %v417, 16
        %v516 = vor.u32 %v513, %v514
        %v517 = vrot.slane %v513, 4
        %v519 = vshrl.u32 %v418, 16
        %v521 = vrot.slane %v519, 7
        %v522 = vshll.u32 %v418, 16
        %v524 = vor.u32 %v521, %v522
        %v525 = vsel %vm424, %v517, %v524
        %v526 = vrot.slane %v521, 4
        %v528 = vshrl.u32 %v419, 16
        %v530 = vrot.slane %v528, 7
        %v531 = vshll.u32 %v419, 16
        %v533 = vor.u32 %v530, %v531
        %v534 = vrot.slane %v530, 4
        %v536 = vshrl.u32 %v420, 16
        %v538 = vrot.slane %v536, 7
        %v539 = vshll.u32 %v420, 16
        %v541 = vor.u32 %v538, %v539
        %v542 = vsel %vm424, %v534, %v541
        %v543 = vrot.slane %v538, 4
        %v545 = vshrl.u32 %v421, 16
        %v547 = vrot.slane %v545, 7
        %v548 = vshll.u32 %v421, 16
        %v550 = vor.u32 %v547, %v548
        %v551 = vrot.slane %v547, 4
        %v553 = vshrl.u32 %v422, 16
        %v555 = vrot.slane %v553, 7
        %v556 = vshll.u32 %v422, 16
        %v558 = vor.u32 %v555, %v556
        %v559 = vsel %vm424, %v551, %v558
        %v560 = vrot.slane %v555, 4
        %s585 = scalar_lea.vmem [#allocation2], 12
        %vm586 = vcmask 27648
        %vm587 = vmand %vm586, %vm372
        %v588 = vld [vmem:[%s585] sm:$0xf]
        %v589 = vsel %vm587, %v431, %v588
        %590 = vst [vmem:[%s585] sm:$0xf] %v589
        %591 = vst.msk [vmem:[%s585 + $0x4] sm:$0xf] %vm240, %v440
        %v592 = vld [vmem:[%s585 + $0x8] sm:$0x1]
        %v593 = vsel %vm341, %v441, %v592
        %594 = vst [vmem:[%s585 + $0x8] sm:$0x1] %v593
        %v595 = vld [vmem:[%s585 + $0xc] sm:$0xf]
        %v596 = vsel %vm587, %v448, %v595
        %597 = vst [vmem:[%s585 + $0xc] sm:$0xf] %v596
        %598 = vst.msk [vmem:[%s585 + $0x10] sm:$0xf] %vm240, %v457
        %v599 = vld [vmem:[%s585 + $0x14] sm:$0x1]
        %v600 = vsel %vm341, %v458, %v599
        %601 = vst [vmem:[%s585 + $0x14] sm:$0x1] %v600
        %v602 = vld [vmem:[%s585 + $0x18] sm:$0xf]
        %v603 = vsel %vm587, %v465, %v602
        %604 = vst [vmem:[%s585 + $0x18] sm:$0xf] %v603
        %605 = vst.msk [vmem:[%s585 + $0x1c] sm:$0xf] %vm240, %v474
        %v606 = vld [vmem:[%s585 + $0x20] sm:$0x1]
        %v607 = vsel %vm341, %v475, %v606
        %608 = vst [vmem:[%s585 + $0x20] sm:$0x1] %v607
        %v609 = vld [vmem:[%s585 + $0x24] sm:$0xf]
        %v610 = vsel %vm587, %v482, %v609
        %611 = vst [vmem:[%s585 + $0x24] sm:$0xf] %v610
        %612 = vst.msk [vmem:[%s585 + $0x28] sm:$0xf] %vm240, %v491
        %v613 = vld [vmem:[%s585 + $0x2c] sm:$0x1]
        %v614 = vsel %vm341, %v492, %v613
        %615 = vst [vmem:[%s585 + $0x2c] sm:$0x1] %v614
        %v616 = vld [vmem:[%s585 + $0x30] sm:$0xf]
        %v617 = vsel %vm587, %v499, %v616
        %618 = vst [vmem:[%s585 + $0x30] sm:$0xf] %v617
        %619 = vst.msk [vmem:[%s585 + $0x34] sm:$0xf] %vm240, %v508
        %v620 = vld [vmem:[%s585 + $0x38] sm:$0x1]
        %v621 = vsel %vm341, %v509, %v620
        %622 = vst [vmem:[%s585 + $0x38] sm:$0x1] %v621
        %v623 = vld [vmem:[%s585 + $0x3c] sm:$0xf]
        %v624 = vsel %vm587, %v516, %v623
        %625 = vst [vmem:[%s585 + $0x3c] sm:$0xf] %v624
        %626 = vst.msk [vmem:[%s585 + $0x40] sm:$0xf] %vm240, %v525
        %v627 = vld [vmem:[%s585 + $0x44] sm:$0x1]
        %v628 = vsel %vm341, %v526, %v627
        %629 = vst [vmem:[%s585 + $0x44] sm:$0x1] %v628
        %v630 = vld [vmem:[%s585 + $0x48] sm:$0xf]
        %v631 = vsel %vm587, %v533, %v630
        %632 = vst [vmem:[%s585 + $0x48] sm:$0xf] %v631
        %633 = vst.msk [vmem:[%s585 + $0x4c] sm:$0xf] %vm240, %v542
        %v634 = vld [vmem:[%s585 + $0x50] sm:$0x1]
        %v635 = vsel %vm341, %v543, %v634
        %636 = vst [vmem:[%s585 + $0x50] sm:$0x1] %v635
        %v637 = vld [vmem:[%s585 + $0x54] sm:$0xf]
        %v638 = vsel %vm587, %v550, %v637
        %639 = vst [vmem:[%s585 + $0x54] sm:$0xf] %v638
        %640 = vst.msk [vmem:[%s585 + $0x58] sm:$0xf] %vm240, %v559
        %v641 = vld [vmem:[%s585 + $0x5c] sm:$0x1]
        %v642 = vsel %vm341, %v560, %v641
        %643 = vst [vmem:[%s585 + $0x5c] sm:$0x1] %v642
        %v644 = vld [vmem:[#allocation2] sm:$0xf]
        %v645 = vld [vmem:[#allocation2 + $0x4] sm:$0xf]
        %v646 = vld [vmem:[#allocation2 + $0xc] sm:$0xf]
        %v647 = vld [vmem:[#allocation2 + $0x10] sm:$0xf]
        %v648 = vld [vmem:[#allocation2 + $0x18] sm:$0xf]
        %v649 = vld [vmem:[#allocation2 + $0x1c] sm:$0xf]
        %v650 = vld [vmem:[#allocation2 + $0x24] sm:$0xf]
        %v651 = vld [vmem:[#allocation2 + $0x28] sm:$0xf]
        %v652 = vld [vmem:[#allocation2 + $0x30] sm:$0xf]
        %v653 = vld [vmem:[#allocation2 + $0x34] sm:$0xf]
        %v654 = vld [vmem:[#allocation2 + $0x3c] sm:$0xf]
        %v655 = vld [vmem:[#allocation2 + $0x40] sm:$0xf]
        %v656 = vld [vmem:[#allocation2 + $0x48] sm:$0xf]
        %v657 = vld [vmem:[#allocation2 + $0x4c] sm:$0xf]
        %v658 = vld [vmem:[#allocation2 + $0x54] sm:$0xf]
        %v659 = vld [vmem:[#allocation2 + $0x58] sm:$0xf]
        %v660 = vld [vmem:[%s1] sm:$0x3]
        %v661 = vld [vmem:[#allocation2 + $0x8] sm:$0x1]
        %v662 = vld [vmem:[#allocation2 + $0x14] sm:$0x1]
        %v663 = vld [vmem:[#allocation2 + $0x20] sm:$0x1]
        %v664 = vld [vmem:[#allocation2 + $0x2c] sm:$0x1]
        %v665 = vld [vmem:[#allocation2 + $0x38] sm:$0x1]
        %v666 = vld [vmem:[#allocation2 + $0x44] sm:$0x1]
        %v667 = vld [vmem:[#allocation2 + $0x50] sm:$0x1]
        %v668 = vld [vmem:[#allocation2 + $0x5c] sm:$0x1]
        %vm669 = vsmask.f32 3328
        %vm670 = vsmask.f32 7440
        %vm671 = vmor %vm669, %vm670
        %v673 = vshrl.u32 %v644, 16
        %v675 = vrot.slane %v673, 4
        %v676 = vshll.u32 %v644, 16
        %v678 = vrot.slane %v676, 5
        %v679 = vor.u32 %v675, %v678
        %v680 = vrot.slane %v679, 4
        %v682 = vshll.u32 %v645, 16
        %v684 = vrot.slane %v682, 5
        %v685 = vsel %vm671, %v680, %v684
        %v686 = vshrl.u32 %v645, 16
        %v688 = vrot.slane %v686, 4
        %v689 = vor.u32 %v688, %v684
        %v690 = vrot.slane %v689, 4
        %v692 = vshll.u32 %v661, 16
        %v694 = vrot.slane %v692, 5
        %v695 = vsel %vm671, %v690, %v694
        %v697 = vshrl.u32 %v646, 16
        %v699 = vrot.slane %v697, 4
        %v700 = vshll.u32 %v646, 16
        %v702 = vrot.slane %v700, 5
        %v703 = vor.u32 %v699, %v702
        %v704 = vrot.slane %v703, 4
        %v706 = vshll.u32 %v647, 16
        %v708 = vrot.slane %v706, 5
        %v709 = vsel %vm671, %v704, %v708
        %v710 = vshrl.u32 %v647, 16
        %v712 = vrot.slane %v710, 4
        %v713 = vor.u32 %v712, %v708
        %v714 = vrot.slane %v713, 4
        %v716 = vshll.u32 %v662, 16
        %v718 = vrot.slane %v716, 5
        %v719 = vsel %vm671, %v714, %v718
        %v721 = vshrl.u32 %v648, 16
        %v723 = vrot.slane %v721, 4
        %v724 = vshll.u32 %v648, 16
        %v726 = vrot.slane %v724, 5
        %v727 = vor.u32 %v723, %v726
        %v728 = vrot.slane %v727, 4
        %v730 = vshll.u32 %v649, 16
        %v732 = vrot.slane %v730, 5
        %v733 = vsel %vm671, %v728, %v732
        %v734 = vshrl.u32 %v649, 16
        %v736 = vrot.slane %v734, 4
        %v737 = vor.u32 %v736, %v732
        %v738 = vrot.slane %v737, 4
        %v740 = vshll.u32 %v663, 16
        %v742 = vrot.slane %v740, 5
        %v743 = vsel %vm671, %v738, %v742
        %v745 = vshrl.u32 %v650, 16
        %v747 = vrot.slane %v745, 4
        %v748 = vshll.u32 %v650, 16
        %v750 = vrot.slane %v748, 5
        %v751 = vor.u32 %v747, %v750
        %v752 = vrot.slane %v751, 4
        %v754 = vshll.u32 %v651, 16
        %v756 = vrot.slane %v754, 5
        %v757 = vsel %vm671, %v752, %v756
        %v758 = vshrl.u32 %v651, 16
        %v760 = vrot.slane %v758, 4
        %v761 = vor.u32 %v760, %v756
        %v762 = vrot.slane %v761, 4
        %v764 = vshll.u32 %v664, 16
        %v766 = vrot.slane %v764, 5
        %v767 = vsel %vm671, %v762, %v766
        %v769 = vshrl.u32 %v652, 16
        %v771 = vrot.slane %v769, 4
        %v772 = vshll.u32 %v652, 16
        %v774 = vrot.slane %v772, 5
        %v775 = vor.u32 %v771, %v774
        %v776 = vrot.slane %v775, 4
        %v778 = vshll.u32 %v653, 16
        %v780 = vrot.slane %v778, 5
        %v781 = vsel %vm671, %v776, %v780
        %v782 = vshrl.u32 %v653, 16
        %v784 = vrot.slane %v782, 4
        %v785 = vor.u32 %v784, %v780
        %v786 = vrot.slane %v785, 4
        %v788 = vshll.u32 %v665, 16
        %v790 = vrot.slane %v788, 5
        %v791 = vsel %vm671, %v786, %v790
        %v793 = vshrl.u32 %v654, 16
        %v795 = vrot.slane %v793, 4
        %v796 = vshll.u32 %v654, 16
        %v798 = vrot.slane %v796, 5
        %v799 = vor.u32 %v795, %v798
        %v800 = vrot.slane %v799, 4
        %v802 = vshll.u32 %v655, 16
        %v804 = vrot.slane %v802, 5
        %v805 = vsel %vm671, %v800, %v804
        %v806 = vshrl.u32 %v655, 16
        %v808 = vrot.slane %v806, 4
        %v809 = vor.u32 %v808, %v804
        %v810 = vrot.slane %v809, 4
        %v812 = vshll.u32 %v666, 16
        %v814 = vrot.slane %v812, 5
        %v815 = vsel %vm671, %v810, %v814
        %v817 = vshrl.u32 %v656, 16
        %v819 = vrot.slane %v817, 4
        %v820 = vshll.u32 %v656, 16
        %v822 = vrot.slane %v820, 5
        %v823 = vor.u32 %v819, %v822
        %v824 = vrot.slane %v823, 4
        %v826 = vshll.u32 %v657, 16
        %v828 = vrot.slane %v826, 5
        %v829 = vsel %vm671, %v824, %v828
        %v830 = vshrl.u32 %v657, 16
        %v832 = vrot.slane %v830, 4
        %v833 = vor.u32 %v832, %v828
        %v834 = vrot.slane %v833, 4
        %v836 = vshll.u32 %v667, 16
        %v838 = vrot.slane %v836, 5
        %v839 = vsel %vm671, %v834, %v838
        %v841 = vshrl.u32 %v658, 16
        %v843 = vrot.slane %v841, 4
        %v844 = vshll.u32 %v658, 16
        %v846 = vrot.slane %v844, 5
        %v847 = vor.u32 %v843, %v846
        %v848 = vrot.slane %v847, 4
        %v850 = vshll.u32 %v659, 16
        %v852 = vrot.slane %v850, 5
        %v853 = vsel %vm671, %v848, %v852
        %v854 = vshrl.u32 %v659, 16
        %v856 = vrot.slane %v854, 4
        %v857 = vor.u32 %v856, %v852
        %v858 = vrot.slane %v857, 4
        %v860 = vshll.u32 %v668, 16
        %v862 = vrot.slane %v860, 5
        %v863 = vsel %vm671, %v858, %v862
        %s864 = scalar_lea.vmem %s1, 2
        %v865 = vld [vmem:[%s864] sm:$0x3]
        %v866 = vunpack.c.l.b16 %v685
        %v867 = vunpack.c.l.b16 %v695
        %v868 = vunpack.c.l.b16 %v709
        %v869 = vunpack.c.l.b16 %v719
        %v870 = vunpack.c.l.b16 %v733
        %v871 = vunpack.c.l.b16 %v743
        %v872 = vunpack.c.l.b16 %v757
        %v873 = vunpack.c.l.b16 %v767
        %v874 = vunpack.c.l.b16 %v781
        %v875 = vunpack.c.l.b16 %v791
        %v876 = vunpack.c.l.b16 %v805
        %v877 = vunpack.c.l.b16 %v815
        %v878 = vunpack.c.l.b16 %v829
        %v879 = vunpack.c.l.b16 %v839
        %v880 = vunpack.c.l.b16 %v853
        %v881 = vunpack.c.l.b16 %v863
        %v882 = vpack.c.b16 %v867, %v866
        %v883 = vpack.c.b16 %v869, %v868
        %v884 = vpack.c.b16 %v871, %v870
        %v885 = vpack.c.b16 %v873, %v872
        %v886 = vpack.c.b16 %v875, %v874
        %v887 = vpack.c.b16 %v877, %v876
        %v888 = vpack.c.b16 %v879, %v878
        %v889 = vpack.c.b16 %v881, %v880
        %vm890 = vcmask 31744
        %v892 = vsel %vm890, %v882, 0
        %v895 = vsel %vm890, %v883, 0
        %v898 = vsel %vm890, %v884, 0
        %v901 = vsel %vm890, %v885, 0
        %v904 = vsel %vm890, %v886, 0
        %v907 = vsel %vm890, %v887, 0
        %v910 = vsel %vm890, %v888, 0
        %v913 = vsel %vm890, %v889, 0
        %vm915 = vcmask 1041408
        %v917 = vsel %vm915, %v865, 0
        %919 = vmatprep.subr.bf16.mxu0 0
        %920 = vmatpush1.bf16.msra.mxu0 %v917
        %921 = vmatprep.subr.bf16.mxu0 0
        %922 = vmatpush1.bf16.msra.mxu0 0
        %923 = vmatprep.subr.bf16.mxu0 0
        %924 = vmatpush1.bf16.msra.mxu0 0
        %925 = vmatprep.subr.bf16.mxu0 0
        %926 = vmatpush1.bf16.msra.mxu0 0
        %927 = vmatprep.subr.bf16.mxu0 0
        %928 = vmatpush1.bf16.msra.mxu0 0
        %929 = vmatprep.subr.bf16.mxu0 0
        %930 = vmatpush1.bf16.msra.mxu0 0
        %931 = vmatprep.subr.bf16.mxu0 0
        %932 = vmatpush1.bf16.msra.mxu0 0
        %933 = vmatprep.subr.bf16.mxu0 0
        %934 = vmatpush1.bf16.msra.mxu0 0
        %935 = vmatprep.subr.bf16.mxu0 0
        %936 = vmatpush1.bf16.msra.mxu0 0
        %937 = vmatprep.subr.bf16.mxu0 0
        %938 = vmatpush1.bf16.msra.mxu0 0
        %939 = vmatprep.subr.bf16.mxu0 0
        %940 = vmatpush1.bf16.msra.mxu0 0
        %941 = vmatprep.subr.bf16.mxu0 0
        %942 = vmatpush1.bf16.msra.mxu0 0
        %943 = vmatprep.subr.bf16.mxu0 0
        %944 = vmatpush1.bf16.msra.mxu0 0
        %945 = vmatprep.subr.bf16.mxu0 0
        %946 = vmatpush1.bf16.msra.mxu0 0
        %947 = vmatprep.subr.bf16.mxu0 0
        %948 = vmatpush1.bf16.msra.mxu0 0
        %949 = vmatprep.subr.bf16.mxu0 0
        %950 = vmatpush1.bf16.msra.mxu0 0
        %951 = vmatprep.mubr.bf16.mxu0 0
        %952 = vmatmul.mubr.bf16.gmra.mrb[0].mxu0 %v892
        %v953 = vpop.f32.mrb[0].mxu0
        %v954 = vadd.f32 0.0, %v953
        %v955 = vpop.f32.mrb[0].mxu0
        %v956 = vpop.f32.mrb[0].mxu0
        %v957 = vadd.f32 0.0, %v956
        %v958 = vpop.f32.mrb[0].mxu0
        %959 = vmatprep.mubr.bf16.mxu0 0
        %960 = vmatmul.mubr.bf16.gmra.mrb[0].mxu0 %v895
        %v961 = vpop.f32.mrb[0].mxu0
        %v962 = vadd.f32 0.0, %v961
        %v963 = vpop.f32.mrb[0].mxu0
        %v964 = vpop.f32.mrb[0].mxu0
        %v965 = vadd.f32 0.0, %v964
        %v966 = vpop.f32.mrb[0].mxu0
        %967 = vmatprep.mubr.bf16.mxu0 0
        %968 = vmatmul.mubr.bf16.gmra.mrb[0].mxu0 %v898
        %v969 = vpop.f32.mrb[0].mxu0
        %v970 = vadd.f32 0.0, %v969
        %v971 = vpop.f32.mrb[0].mxu0
        %v972 = vpop.f32.mrb[0].mxu0
        %v973 = vadd.f32 0.0, %v972
        %v974 = vpop.f32.mrb[0].mxu0
        %975 = vmatprep.mubr.bf16.mxu0 0
        %976 = vmatmul.mubr.bf16.gmra.mrb[0].mxu0 %v901
        %v977 = vpop.f32.mrb[0].mxu0
        %v978 = vadd.f32 0.0, %v977
        %v979 = vpop.f32.mrb[0].mxu0
        %v980 = vpop.f32.mrb[0].mxu0
        %v981 = vadd.f32 0.0, %v980
        %v982 = vpop.f32.mrb[0].mxu0
        %983 = vmatprep.mubr.bf16.mxu0 0
        %984 = vmatmul.mubr.bf16.gmra.mrb[0].mxu0 %v904
        %v985 = vpop.f32.mrb[0].mxu0
        %v986 = vadd.f32 0.0, %v985
        %v987 = vpop.f32.mrb[0].mxu0
        %v988 = vpop.f32.mrb[0].mxu0
        %v989 = vadd.f32 0.0, %v988
        %v990 = vpop.f32.mrb[0].mxu0
        %991 = vmatprep.mubr.bf16.mxu0 0
        %992 = vmatmul.mubr.bf16.gmra.mrb[0].mxu0 %v907
        %v993 = vpop.f32.mrb[0].mxu0
        %v994 = vadd.f32 0.0, %v993
        %v995 = vpop.f32.mrb[0].mxu0
        %v996 = vpop.f32.mrb[0].mxu0
        %v997 = vadd.f32 0.0, %v996
        %v998 = vpop.f32.mrb[0].mxu0
        %999 = vmatprep.mubr.bf16.mxu0 0
        %1000 = vmatmul.mubr.bf16.gmra.mrb[0].mxu0 %v910
        %v1001 = vpop.f32.mrb[0].mxu0
        %v1002 = vadd.f32 0.0, %v1001
        %v1003 = vpop.f32.mrb[0].mxu0
        %v1004 = vpop.f32.mrb[0].mxu0
        %v1005 = vadd.f32 0.0, %v1004
        %v1006 = vpop.f32.mrb[0].mxu0
        %1007 = vmatprep.mubr.bf16.mxu0 0
        %1008 = vmatmul.mubr.bf16.gmra.mrb[0].mxu0 %v913
        %v1009 = vpop.f32.mrb[0].mxu0
        %v1010 = vadd.f32 0.0, %v1009
        %v1011 = vpop.f32.mrb[0].mxu0
        %v1012 = vpop.f32.mrb[0].mxu0
        %v1013 = vadd.f32 0.0, %v1012
        %v1014 = vpop.f32.mrb[0].mxu0
        %1015 = vdwg.mxu0
        %v1032 = vunpack.c.l.b16 %v644
        %v1033 = vunpack.c.l.b16 %v645
        %v1034 = vunpack.c.l.b16 %v646
        %v1035 = vunpack.c.l.b16 %v647
        %v1036 = vunpack.c.l.b16 %v648
        %v1037 = vunpack.c.l.b16 %v649
        %v1038 = vunpack.c.l.b16 %v650
        %v1039 = vunpack.c.l.b16 %v651
        %v1040 = vunpack.c.l.b16 %v652
        %v1041 = vunpack.c.l.b16 %v653
        %v1042 = vunpack.c.l.b16 %v654
        %v1043 = vunpack.c.l.b16 %v655
        %v1044 = vunpack.c.l.b16 %v656
        %v1045 = vunpack.c.l.b16 %v657
        %v1046 = vunpack.c.l.b16 %v658
        %v1047 = vunpack.c.l.b16 %v659
        %v1048 = vpack.c.b16 %v1033, %v1032
        %v1049 = vpack.c.b16 %v1035, %v1034
        %v1050 = vpack.c.b16 %v1037, %v1036
        %v1051 = vpack.c.b16 %v1039, %v1038
        %v1052 = vpack.c.b16 %v1041, %v1040
        %v1053 = vpack.c.b16 %v1043, %v1042
        %v1054 = vpack.c.b16 %v1045, %v1044
        %v1055 = vpack.c.b16 %v1047, %v1046
        %v1057 = vsel %vm890, %v1048, 0
        %v1060 = vsel %vm890, %v1049, 0
        %v1063 = vsel %vm890, %v1050, 0
        %v1066 = vsel %vm890, %v1051, 0
        %v1069 = vsel %vm890, %v1052, 0
        %v1072 = vsel %vm890, %v1053, 0
        %v1075 = vsel %vm890, %v1054, 0
        %v1078 = vsel %vm890, %v1055, 0
        %v1081 = vsel %vm915, %v660, 0
        %1083 = vmatprep.subr.bf16.mxu0 0
        %1084 = vmatpush1.bf16.msra.mxu0 %v1081
        %1085 = vmatprep.subr.bf16.mxu0 0
        %1086 = vmatpush1.bf16.msra.mxu0 0
        %1087 = vmatprep.subr.bf16.mxu0 0
        %1088 = vmatpush1.bf16.msra.mxu0 0
        %1089 = vmatprep.subr.bf16.mxu0 0
        %1090 = vmatpush1.bf16.msra.mxu0 0
        %1091 = vmatprep.subr.bf16.mxu0 0
        %1092 = vmatpush1.bf16.msra.mxu0 0
        %1093 = vmatprep.subr.bf16.mxu0 0
        %1094 = vmatpush1.bf16.msra.mxu0 0
        %1095 = vmatprep.subr.bf16.mxu0 0
        %1096 = vmatpush1.bf16.msra.mxu0 0
        %1097 = vmatprep.subr.bf16.mxu0 0
        %1098 = vmatpush1.bf16.msra.mxu0 0
        %1099 = vmatprep.subr.bf16.mxu0 0
        %1100 = vmatpush1.bf16.msra.mxu0 0
        %1101 = vmatprep.subr.bf16.mxu0 0
        %1102 = vmatpush1.bf16.msra.mxu0 0
        %1103 = vmatprep.subr.bf16.mxu0 0
        %1104 = vmatpush1.bf16.msra.mxu0 0
        %1105 = vmatprep.subr.bf16.mxu0 0
        %1106 = vmatpush1.bf16.msra.mxu0 0
        %1107 = vmatprep.subr.bf16.mxu0 0
        %1108 = vmatpush1.bf16.msra.mxu0 0
        %1109 = vmatprep.subr.bf16.mxu0 0
        %1110 = vmatpush1.bf16.msra.mxu0 0
        %1111 = vmatprep.subr.bf16.mxu0 0
        %1112 = vmatpush1.bf16.msra.mxu0 0
        %1113 = vmatprep.subr.bf16.mxu0 0
        %1114 = vmatpush1.bf16.msra.mxu0 0
        %1115 = vmatprep.mubr.bf16.mxu0 0
        %1116 = vmatmul.mubr.bf16.gmra.mrb[0].mxu0 %v1057
        %v1117 = vpop.f32.mrb[0].mxu0
        %v1118 = vadd.f32 %v954, %v1117
        %v1119 = vpop.f32.mrb[0].mxu0
        %v1120 = vpop.f32.mrb[0].mxu0
        %v1121 = vadd.f32 %v957, %v1120
        %v1122 = vpop.f32.mrb[0].mxu0
        %1123 = vmatprep.mubr.bf16.mxu0 0
        %1124 = vmatmul.mubr.bf16.gmra.mrb[0].mxu0 %v1060
        %v1125 = vpop.f32.mrb[0].mxu0
        %v1126 = vadd.f32 %v962, %v1125
        %v1127 = vpop.f32.mrb[0].mxu0
        %v1128 = vpop.f32.mrb[0].mxu0
        %v1129 = vadd.f32 %v965, %v1128
        %v1130 = vpop.f32.mrb[0].mxu0
        %1131 = vmatprep.mubr.bf16.mxu0 0
        %1132 = vmatmul.mubr.bf16.gmra.mrb[0].mxu0 %v1063
        %v1133 = vpop.f32.mrb[0].mxu0
        %v1134 = vadd.f32 %v970, %v1133
        %v1135 = vpop.f32.mrb[0].mxu0
        %v1136 = vpop.f32.mrb[0].mxu0
        %v1137 = vadd.f32 %v973, %v1136
        %v1138 = vpop.f32.mrb[0].mxu0
        %1139 = vmatprep.mubr.bf16.mxu0 0
        %1140 = vmatmul.mubr.bf16.gmra.mrb[0].mxu0 %v1066
        %v1141 = vpop.f32.mrb[0].mxu0
        %v1142 = vadd.f32 %v978, %v1141
        %v1143 = vpop.f32.mrb[0].mxu0
        %v1144 = vpop.f32.mrb[0].mxu0
        %v1145 = vadd.f32 %v981, %v1144
        %v1146 = vpop.f32.mrb[0].mxu0
        %1147 = vmatprep.mubr.bf16.mxu0 0
        %1148 = vmatmul.mubr.bf16.gmra.mrb[0].mxu0 %v1069
        %v1149 = vpop.f32.mrb[0].mxu0
        %v1150 = vadd.f32 %v986, %v1149
        %v1151 = vpop.f32.mrb[0].mxu0
        %v1152 = vpop.f32.mrb[0].mxu0
        %v1153 = vadd.f32 %v989, %v1152
        %v1154 = vpop.f32.mrb[0].mxu0
        %1155 = vmatprep.mubr.bf16.mxu0 0
        %1156 = vmatmul.mubr.bf16.gmra.mrb[0].mxu0 %v1072
        %v1157 = vpop.f32.mrb[0].mxu0
        %v1158 = vadd.f32 %v994, %v1157
        %v1159 = vpop.f32.mrb[0].mxu0
        %v1160 = vpop.f32.mrb[0].mxu0
        %v1161 = vadd.f32 %v997, %v1160
        %v1162 = vpop.f32.mrb[0].mxu0
        %1163 = vmatprep.mubr.bf16.mxu0 0
        %1164 = vmatmul.mubr.bf16.gmra.mrb[0].mxu0 %v1075
        %v1165 = vpop.f32.mrb[0].mxu0
        %v1166 = vadd.f32 %v1002, %v1165
        %v1167 = vpop.f32.mrb[0].mxu0
        %v1168 = vpop.f32.mrb[0].mxu0
        %v1169 = vadd.f32 %v1005, %v1168
        %v1170 = vpop.f32.mrb[0].mxu0
        %1171 = vmatprep.mubr.bf16.mxu0 0
        %1172 = vmatmul.mubr.bf16.gmra.mrb[0].mxu0 %v1078
        %v1173 = vpop.f32.mrb[0].mxu0
        %v1174 = vadd.f32 %v1010, %v1173
        %v1175 = vpop.f32.mrb[0].mxu0
        %v1176 = vpop.f32.mrb[0].mxu0
        %v1177 = vadd.f32 %v1013, %v1176
        %v1178 = vpop.f32.mrb[0].mxu0
        %1179 = vdwg.mxu0
        %v1180 = vld [vmem:[#allocation2] sm:$0xe]
        %v1181 = vld [vmem:[#allocation2 + $0xc] sm:$0xe]
        %v1182 = vld [vmem:[#allocation2 + $0x18] sm:$0xe]
        %v1183 = vld [vmem:[#allocation2 + $0x24] sm:$0xe]
        %v1184 = vld [vmem:[#allocation2 + $0x30] sm:$0xe]
        %v1185 = vld [vmem:[#allocation2 + $0x3c] sm:$0xe]
        %v1186 = vld [vmem:[#allocation2 + $0x48] sm:$0xe]
        %v1187 = vld [vmem:[#allocation2 + $0x54] sm:$0xe]
        %vm1204 = vcmask 1042432
        %vm1205 = vcmask 1046532
        %vm1206 = vmor %vm1204, %vm1205
        %v1207 = vrot.slane %v1180, 5
        %v1208 = vrot.slane %v1207, 4
        %v1209 = vrot.slane %v645, 5
        %v1210 = vsel %vm1206, %v1208, %v1209
        %v1211 = vrot.slane %v1209, 4
        %v1212 = vrot.slane %v661, 5
        %v1213 = vsel %vm1206, %v1211, %v1212
        %v1214 = vrot.slane %v1181, 5
        %v1215 = vrot.slane %v1214, 4
        %v1216 = vrot.slane %v647, 5
        %v1217 = vsel %vm1206, %v1215, %v1216
        %v1218 = vrot.slane %v1216, 4
        %v1219 = vrot.slane %v662, 5
        %v1220 = vsel %vm1206, %v1218, %v1219
        %v1221 = vrot.slane %v1182, 5
        %v1222 = vrot.slane %v1221, 4
        %v1223 = vrot.slane %v649, 5
        %v1224 = vsel %vm1206, %v1222, %v1223
        %v1225 = vrot.slane %v1223, 4
        %v1226 = vrot.slane %v663, 5
        %v1227 = vsel %vm1206, %v1225, %v1226
        %v1228 = vrot.slane %v1183, 5
        %v1229 = vrot.slane %v1228, 4
        %v1230 = vrot.slane %v651, 5
        %v1231 = vsel %vm1206, %v1229, %v1230
        %v1232 = vrot.slane %v1230, 4
        %v1233 = vrot.slane %v664, 5
        %v1234 = vsel %vm1206, %v1232, %v1233
        %v1235 = vrot.slane %v1184, 5
        %v1236 = vrot.slane %v1235, 4
        %v1237 = vrot.slane %v653, 5
        %v1238 = vsel %vm1206, %v1236, %v1237
        %v1239 = vrot.slane %v1237, 4
        %v1240 = vrot.slane %v665, 5
        %v1241 = vsel %vm1206, %v1239, %v1240
        %v1242 = vrot.slane %v1185, 5
        %v1243 = vrot.slane %v1242, 4
        %v1244 = vrot.slane %v655, 5
        %v1245 = vsel %vm1206, %v1243, %v1244
        %v1246 = vrot.slane %v1244, 4
        %v1247 = vrot.slane %v666, 5
        %v1248 = vsel %vm1206, %v1246, %v1247
        %v1249 = vrot.slane %v1186, 5
        %v1250 = vrot.slane %v1249, 4
        %v1251 = vrot.slane %v657, 5
        %v1252 = vsel %vm1206, %v1250, %v1251
        %v1253 = vrot.slane %v1251, 4
        %v1254 = vrot.slane %v667, 5
        %v1255 = vsel %vm1206, %v1253, %v1254
        %v1256 = vrot.slane %v1187, 5
        %v1257 = vrot.slane %v1256, 4
        %v1258 = vrot.slane %v659, 5
        %v1259 = vsel %vm1206, %v1257, %v1258
        %v1260 = vrot.slane %v1258, 4
        %v1261 = vrot.slane %v668, 5
        %v1262 = vsel %vm1206, %v1260, %v1261
        %s1263 = scalar_lea.vmem %s1, 4
        %v1264 = vld [vmem:[%s1263] sm:$0x3]
        %v1265 = vunpack.c.l.b16 %v1210
        %v1266 = vunpack.c.l.b16 %v1213
        %v1267 = vunpack.c.l.b16 %v1217
        %v1268 = vunpack.c.l.b16 %v1220
        %v1269 = vunpack.c.l.b16 %v1224
        %v1270 = vunpack.c.l.b16 %v1227
        %v1271 = vunpack.c.l.b16 %v1231
        %v1272 = vunpack.c.l.b16 %v1234
        %v1273 = vunpack.c.l.b16 %v1238
        %v1274 = vunpack.c.l.b16 %v1241
        %v1275 = vunpack.c.l.b16 %v1245
        %v1276 = vunpack.c.l.b16 %v1248
        %v1277 = vunpack.c.l.b16 %v1252
        %v1278 = vunpack.c.l.b16 %v1255
        %v1279 = vunpack.c.l.b16 %v1259
        %v1280 = vunpack.c.l.b16 %v1262
        %v1281 = vpack.c.b16 %v1266, %v1265
        %v1282 = vpack.c.b16 %v1268, %v1267
        %v1283 = vpack.c.b16 %v1270, %v1269
        %v1284 = vpack.c.b16 %v1272, %v1271
        %v1285 = vpack.c.b16 %v1274, %v1273
        %v1286 = vpack.c.b16 %v1276, %v1275
        %v1287 = vpack.c.b16 %v1278, %v1277
        %v1288 = vpack.c.b16 %v1280, %v1279
        %v1290 = vsel %vm890, %v1281, 0
        %v1293 = vsel %vm890, %v1282, 0
        %v1296 = vsel %vm890, %v1283, 0
        %v1299 = vsel %vm890, %v1284, 0
        %v1302 = vsel %vm890, %v1285, 0
        %v1305 = vsel %vm890, %v1286, 0
        %v1308 = vsel %vm890, %v1287, 0
        %v1311 = vsel %vm890, %v1288, 0
        %v1314 = vsel %vm915, %v1264, 0
        %1316 = vmatprep.subr.bf16.mxu0 0
        %1317 = vmatpush1.bf16.msra.mxu0 %v1314
        %1318 = vmatprep.subr.bf16.mxu0 0
        %1319 = vmatpush1.bf16.msra.mxu0 0
        %1320 = vmatprep.subr.bf16.mxu0 0
        %1321 = vmatpush1.bf16.msra.mxu0 0
        %1322 = vmatprep.subr.bf16.mxu0 0
        %1323 = vmatpush1.bf16.msra.mxu0 0
        %1324 = vmatprep.subr.bf16.mxu0 0
        %1325 = vmatpush1.bf16.msra.mxu0 0
        %1326 = vmatprep.subr.bf16.mxu0 0
        %1327 = vmatpush1.bf16.msra.mxu0 0
        %1328 = vmatprep.subr.bf16.mxu0 0
        %1329 = vmatpush1.bf16.msra.mxu0 0
        %1330 = vmatprep.subr.bf16.mxu0 0
        %1331 = vmatpush1.bf16.msra.mxu0 0
        %1332 = vmatprep.subr.bf16.mxu0 0
        %1333 = vmatpush1.bf16.msra.mxu0 0
        %1334 = vmatprep.subr.bf16.mxu0 0
        %1335 = vmatpush1.bf16.msra.mxu0 0
        %1336 = vmatprep.subr.bf16.mxu0 0
        %1337 = vmatpush1.bf16.msra.mxu0 0
        %1338 = vmatprep.subr.bf16.mxu0 0
        %1339 = vmatpush1.bf16.msra.mxu0 0
        %1340 = vmatprep.subr.bf16.mxu0 0
        %1341 = vmatpush1.bf16.msra.mxu0 0
        %1342 = vmatprep.subr.bf16.mxu0 0
        %1343 = vmatpush1.bf16.msra.mxu0 0
        %1344 = vmatprep.subr.bf16.mxu0 0
        %1345 = vmatpush1.bf16.msra.mxu0 0
        %1346 = vmatprep.subr.bf16.mxu0 0
        %1347 = vmatpush1.bf16.msra.mxu0 0
        %1348 = vmatprep.mubr.bf16.mxu0 0
        %1349 = vmatmul.mubr.bf16.gmra.mrb[0].mxu0 %v1290
        %v1350 = vpop.f32.mrb[0].mxu0
        %v1351 = vadd.f32 0.0, %v1350
        %v1352 = vpop.f32.mrb[0].mxu0
        %v1353 = vpop.f32.mrb[0].mxu0
        %v1354 = vadd.f32 0.0, %v1353
        %v1355 = vpop.f32.mrb[0].mxu0
        %1356 = vmatprep.mubr.bf16.mxu0 0
        %1357 = vmatmul.mubr.bf16.gmra.mrb[0].mxu0 %v1293
        %v1358 = vpop.f32.mrb[0].mxu0
        %v1359 = vadd.f32 0.0, %v1358
        %v1360 = vpop.f32.mrb[0].mxu0
        %v1361 = vpop.f32.mrb[0].mxu0
        %v1362 = vadd.f32 0.0, %v1361
        %v1363 = vpop.f32.mrb[0].mxu0
        %1364 = vmatprep.mubr.bf16.mxu0 0
        %1365 = vmatmul.mubr.bf16.gmra.mrb[0].mxu0 %v1296
        %v1366 = vpop.f32.mrb[0].mxu0
        %v1367 = vadd.f32 0.0, %v1366
        %v1368 = vpop.f32.mrb[0].mxu0
        %v1369 = vpop.f32.mrb[0].mxu0
        %v1370 = vadd.f32 0.0, %v1369
        %v1371 = vpop.f32.mrb[0].mxu0
        %1372 = vmatprep.mubr.bf16.mxu0 0
        %1373 = vmatmul.mubr.bf16.gmra.mrb[0].mxu0 %v1299
        %v1374 = vpop.f32.mrb[0].mxu0
        %v1375 = vadd.f32 0.0, %v1374
        %v1376 = vpop.f32.mrb[0].mxu0
        %v1377 = vpop.f32.mrb[0].mxu0
        %v1378 = vadd.f32 0.0, %v1377
        %v1379 = vpop.f32.mrb[0].mxu0
        %1380 = vmatprep.mubr.bf16.mxu0 0
        %1381 = vmatmul.mubr.bf16.gmra.mrb[0].mxu0 %v1302
        %v1382 = vpop.f32.mrb[0].mxu0
        %v1383 = vadd.f32 0.0, %v1382
        %v1384 = vpop.f32.mrb[0].mxu0
        %v1385 = vpop.f32.mrb[0].mxu0
        %v1386 = vadd.f32 0.0, %v1385
        %v1387 = vpop.f32.mrb[0].mxu0
        %1388 = vmatprep.mubr.bf16.mxu0 0
        %1389 = vmatmul.mubr.bf16.gmra.mrb[0].mxu0 %v1305
        %v1390 = vpop.f32.mrb[0].mxu0
        %v1391 = vadd.f32 0.0, %v1390
        %v1392 = vpop.f32.mrb[0].mxu0
        %v1393 = vpop.f32.mrb[0].mxu0
        %v1394 = vadd.f32 0.0, %v1393
        %v1395 = vpop.f32.mrb[0].mxu0
        %1396 = vmatprep.mubr.bf16.mxu0 0
        %1397 = vmatmul.mubr.bf16.gmra.mrb[0].mxu0 %v1308
        %v1398 = vpop.f32.mrb[0].mxu0
        %v1399 = vadd.f32 0.0, %v1398
        %v1400 = vpop.f32.mrb[0].mxu0
        %v1401 = vpop.f32.mrb[0].mxu0
        %v1402 = vadd.f32 0.0, %v1401
        %v1403 = vpop.f32.mrb[0].mxu0
        %1404 = vmatprep.mubr.bf16.mxu0 0
        %1405 = vmatmul.mubr.bf16.gmra.mrb[0].mxu0 %v1311
        %v1406 = vpop.f32.mrb[0].mxu0
        %v1407 = vadd.f32 0.0, %v1406
        %v1408 = vpop.f32.mrb[0].mxu0
        %v1409 = vpop.f32.mrb[0].mxu0
        %v1410 = vadd.f32 0.0, %v1409
        %v1411 = vpop.f32.mrb[0].mxu0
        %1412 = vdwg.mxu0
        %v1413 = vadd.f32 %v1118, %v1351
        %v1414 = vadd.f32 %v1121, %v1354
        %v1415 = vadd.f32 %v1126, %v1359
        %v1416 = vadd.f32 %v1129, %v1362
        %v1417 = vadd.f32 %v1134, %v1367
        %v1418 = vadd.f32 %v1137, %v1370
        %v1419 = vadd.f32 %v1142, %v1375
        %v1420 = vadd.f32 %v1145, %v1378
        %v1421 = vadd.f32 %v1150, %v1383
        %v1422 = vadd.f32 %v1153, %v1386
        %v1423 = vadd.f32 %v1158, %v1391
        %v1424 = vadd.f32 %v1161, %v1394
        %v1425 = vadd.f32 %v1166, %v1399
        %v1426 = vadd.f32 %v1169, %v1402
        %v1427 = vadd.f32 %v1174, %v1407
        %v1428 = vadd.f32 %v1177, %v1410
        %v1429 = vld [vmem:[%s585] sm:$0xf]
        %v1430 = vld [vmem:[%s585 + $0x4] sm:$0xf]
        %v1431 = vld [vmem:[%s585 + $0xc] sm:$0xf]
        %v1432 = vld [vmem:[%s585 + $0x10] sm:$0xf]
        %v1433 = vld [vmem:[%s585 + $0x18] sm:$0xf]
        %v1434 = vld [vmem:[%s585 + $0x1c] sm:$0xf]
        %v1435 = vld [vmem:[%s585 + $0x24] sm:$0xf]
        %v1436 = vld [vmem:[%s585 + $0x28] sm:$0xf]
        %v1437 = vld [vmem:[%s585 + $0x30] sm:$0xf]
        %v1438 = vld [vmem:[%s585 + $0x34] sm:$0xf]
        %v1439 = vld [vmem:[%s585 + $0x3c] sm:$0xf]
        %v1440 = vld [vmem:[%s585 + $0x40] sm:$0xf]
        %v1441 = vld [vmem:[%s585 + $0x48] sm:$0xf]
        %v1442 = vld [vmem:[%s585 + $0x4c] sm:$0xf]
        %v1443 = vld [vmem:[%s585 + $0x54] sm:$0xf]
        %v1444 = vld [vmem:[%s585 + $0x58] sm:$0xf]
        %s1445 = scalar_lea.vmem %s1, 6
        %v1446 = vld [vmem:[%s1445] sm:$0x3]
        %v1463 = vunpack.c.l.b16 %v1429
        %v1464 = vunpack.c.l.b16 %v1430
        %v1465 = vunpack.c.l.b16 %v1431
        %v1466 = vunpack.c.l.b16 %v1432
        %v1467 = vunpack.c.l.b16 %v1433
        %v1468 = vunpack.c.l.b16 %v1434
        %v1469 = vunpack.c.l.b16 %v1435
        %v1470 = vunpack.c.l.b16 %v1436
        %v1471 = vunpack.c.l.b16 %v1437
        %v1472 = vunpack.c.l.b16 %v1438
        %v1473 = vunpack.c.l.b16 %v1439
        %v1474 = vunpack.c.l.b16 %v1440
        %v1475 = vunpack.c.l.b16 %v1441
        %v1476 = vunpack.c.l.b16 %v1442
        %v1477 = vunpack.c.l.b16 %v1443
        %v1478 = vunpack.c.l.b16 %v1444
        %v1479 = vpack.c.b16 %v1464, %v1463
        %v1480 = vpack.c.b16 %v1466, %v1465
        %v1481 = vpack.c.b16 %v1468, %v1467
        %v1482 = vpack.c.b16 %v1470, %v1469
        %v1483 = vpack.c.b16 %v1472, %v1471
        %v1484 = vpack.c.b16 %v1474, %v1473
        %v1485 = vpack.c.b16 %v1476, %v1475
        %v1486 = vpack.c.b16 %v1478, %v1477
        %v1488 = vsel %vm890, %v1479, 0
        %v1491 = vsel %vm890, %v1480, 0
        %v1494 = vsel %vm890, %v1481, 0
        %v1497 = vsel %vm890, %v1482, 0
        %v1500 = vsel %vm890, %v1483, 0
        %v1503 = vsel %vm890, %v1484, 0
        %v1506 = vsel %vm890, %v1485, 0
        %v1509 = vsel %vm890, %v1486, 0
        %v1512 = vsel %vm915, %v1446, 0
        %1514 = vmatprep.subr.bf16.mxu0 0
        %1515 = vmatpush1.bf16.msra.mxu0 %v1512
        %1516 = vmatprep.subr.bf16.mxu0 0
        %1517 = vmatpush1.bf16.msra.mxu0 0
        %1518 = vmatprep.subr.bf16.mxu0 0
        %1519 = vmatpush1.bf16.msra.mxu0 0
        %1520 = vmatprep.subr.bf16.mxu0 0
        %1521 = vmatpush1.bf16.msra.mxu0 0
        %1522 = vmatprep.subr.bf16.mxu0 0
        %1523 = vmatpush1.bf16.msra.mxu0 0
        %1524 = vmatprep.subr.bf16.mxu0 0
        %1525 = vmatpush1.bf16.msra.mxu0 0
        %1526 = vmatprep.subr.bf16.mxu0 0
        %1527 = vmatpush1.bf16.msra.mxu0 0
        %1528 = vmatprep.subr.bf16.mxu0 0
        %1529 = vmatpush1.bf16.msra.mxu0 0
        %1530 = vmatprep.subr.bf16.mxu0 0
        %1531 = vmatpush1.bf16.msra.mxu0 0
        %1532 = vmatprep.subr.bf16.mxu0 0
        %1533 = vmatpush1.bf16.msra.mxu0 0
        %1534 = vmatprep.subr.bf16.mxu0 0
        %1535 = vmatpush1.bf16.msra.mxu0 0
        %1536 = vmatprep.subr.bf16.mxu0 0
        %1537 = vmatpush1.bf16.msra.mxu0 0
        %1538 = vmatprep.subr.bf16.mxu0 0
        %1539 = vmatpush1.bf16.msra.mxu0 0
        %1540 = vmatprep.subr.bf16.mxu0 0
        %1541 = vmatpush1.bf16.msra.mxu0 0
        %1542 = vmatprep.subr.bf16.mxu0 0
        %1543 = vmatpush1.bf16.msra.mxu0 0
        %1544 = vmatprep.subr.bf16.mxu0 0
        %1545 = vmatpush1.bf16.msra.mxu0 0
        %1546 = vmatprep.mubr.bf16.mxu0 0
        %1547 = vmatmul.mubr.bf16.gmra.mrb[0].mxu0 %v1488
        %v1548 = vpop.f32.mrb[0].mxu0
        %v1549 = vadd.f32 0.0, %v1548
        %v1550 = vpop.f32.mrb[0].mxu0
        %v1551 = vpop.f32.mrb[0].mxu0
        %v1552 = vadd.f32 0.0, %v1551
        %v1553 = vpop.f32.mrb[0].mxu0
        %1554 = vmatprep.mubr.bf16.mxu0 0
        %1555 = vmatmul.mubr.bf16.gmra.mrb[0].mxu0 %v1491
        %v1556 = vpop.f32.mrb[0].mxu0
        %v1557 = vadd.f32 0.0, %v1556
        %v1558 = vpop.f32.mrb[0].mxu0
        %v1559 = vpop.f32.mrb[0].mxu0
        %v1560 = vadd.f32 0.0, %v1559
        %v1561 = vpop.f32.mrb[0].mxu0
        %1562 = vmatprep.mubr.bf16.mxu0 0
        %1563 = vmatmul.mubr.bf16.gmra.mrb[0].mxu0 %v1494
        %v1564 = vpop.f32.mrb[0].mxu0
        %v1565 = vadd.f32 0.0, %v1564
        %v1566 = vpop.f32.mrb[0].mxu0
        %v1567 = vpop.f32.mrb[0].mxu0
        %v1568 = vadd.f32 0.0, %v1567
        %v1569 = vpop.f32.mrb[0].mxu0
        %1570 = vmatprep.mubr.bf16.mxu0 0
        %1571 = vmatmul.mubr.bf16.gmra.mrb[0].mxu0 %v1497
        %v1572 = vpop.f32.mrb[0].mxu0
        %v1573 = vadd.f32 0.0, %v1572
        %v1574 = vpop.f32.mrb[0].mxu0
        %v1575 = vpop.f32.mrb[0].mxu0
        %v1576 = vadd.f32 0.0, %v1575
        %v1577 = vpop.f32.mrb[0].mxu0
        %1578 = vmatprep.mubr.bf16.mxu0 0
        %1579 = vmatmul.mubr.bf16.gmra.mrb[0].mxu0 %v1500
        %v1580 = vpop.f32.mrb[0].mxu0
        %v1581 = vadd.f32 0.0, %v1580
        %v1582 = vpop.f32.mrb[0].mxu0
        %v1583 = vpop.f32.mrb[0].mxu0
        %v1584 = vadd.f32 0.0, %v1583
        %v1585 = vpop.f32.mrb[0].mxu0
        %1586 = vmatprep.mubr.bf16.mxu0 0
        %1587 = vmatmul.mubr.bf16.gmra.mrb[0].mxu0 %v1503
        %v1588 = vpop.f32.mrb[0].mxu0
        %v1589 = vadd.f32 0.0, %v1588
        %v1590 = vpop.f32.mrb[0].mxu0
        %v1591 = vpop.f32.mrb[0].mxu0
        %v1592 = vadd.f32 0.0, %v1591
        %v1593 = vpop.f32.mrb[0].mxu0
        %1594 = vmatprep.mubr.bf16.mxu0 0
        %1595 = vmatmul.mubr.bf16.gmra.mrb[0].mxu0 %v1506
        %v1596 = vpop.f32.mrb[0].mxu0
        %v1597 = vadd.f32 0.0, %v1596
        %v1598 = vpop.f32.mrb[0].mxu0
        %v1599 = vpop.f32.mrb[0].mxu0
        %v1600 = vadd.f32 0.0, %v1599
        %v1601 = vpop.f32.mrb[0].mxu0
        %1602 = vmatprep.mubr.bf16.mxu0 0
        %1603 = vmatmul.mubr.bf16.gmra.mrb[0].mxu0 %v1509
        %v1604 = vpop.f32.mrb[0].mxu0
        %v1605 = vadd.f32 0.0, %v1604
        %v1606 = vpop.f32.mrb[0].mxu0
        %v1607 = vpop.f32.mrb[0].mxu0
        %v1608 = vadd.f32 0.0, %v1607
        %v1609 = vpop.f32.mrb[0].mxu0
        %1610 = vdwg.mxu0
        %v1611 = vadd.f32 %v1413, %v1549
        %v1612 = vadd.f32 %v1414, %v1552
        %v1613 = vadd.f32 %v1415, %v1557
        %v1614 = vadd.f32 %v1416, %v1560
        %v1615 = vadd.f32 %v1417, %v1565
        %v1616 = vadd.f32 %v1418, %v1568
        %v1617 = vadd.f32 %v1419, %v1573
        %v1618 = vadd.f32 %v1420, %v1576
        %v1619 = vadd.f32 %v1421, %v1581
        %v1620 = vadd.f32 %v1422, %v1584
        %v1621 = vadd.f32 %v1423, %v1589
        %v1622 = vadd.f32 %v1424, %v1592
        %v1623 = vadd.f32 %v1425, %v1597
        %v1624 = vadd.f32 %v1426, %v1600
        %v1625 = vadd.f32 %v1427, %v1605
        %v1626 = vadd.f32 %v1428, %v1608
        %v1627 = vld [vmem:[%s585] sm:$0xf]
        %v1628 = vld [vmem:[%s585 + $0x4] sm:$0xf]
        %v1629 = vld [vmem:[%s585 + $0x8] sm:$0x1]
        %v1630 = vld [vmem:[%s585 + $0xc] sm:$0xf]
        %v1631 = vld [vmem:[%s585 + $0x10] sm:$0xf]
        %v1632 = vld [vmem:[%s585 + $0x14] sm:$0x1]
        %v1633 = vld [vmem:[%s585 + $0x18] sm:$0xf]
        %v1634 = vld [vmem:[%s585 + $0x1c] sm:$0xf]
        %v1635 = vld [vmem:[%s585 + $0x20] sm:$0x1]
        %v1636 = vld [vmem:[%s585 + $0x24] sm:$0xf]
        %v1637 = vld [vmem:[%s585 + $0x28] sm:$0xf]
        %v1638 = vld [vmem:[%s585 + $0x2c] sm:$0x1]
        %v1639 = vld [vmem:[%s585 + $0x30] sm:$0xf]
        %v1640 = vld [vmem:[%s585 + $0x34] sm:$0xf]
        %v1641 = vld [vmem:[%s585 + $0x38] sm:$0x1]
        %v1642 = vld [vmem:[%s585 + $0x3c] sm:$0xf]
        %v1643 = vld [vmem:[%s585 + $0x40] sm:$0xf]
        %v1644 = vld [vmem:[%s585 + $0x44] sm:$0x1]
        %v1645 = vld [vmem:[%s585 + $0x48] sm:$0xf]
        %v1646 = vld [vmem:[%s585 + $0x4c] sm:$0xf]
        %v1647 = vld [vmem:[%s585 + $0x50] sm:$0x1]
        %v1648 = vld [vmem:[%s585 + $0x54] sm:$0xf]
        %v1649 = vld [vmem:[%s585 + $0x58] sm:$0xf]
        %v1650 = vld [vmem:[%s585 + $0x5c] sm:$0x1]
        %v1652 = vshrl.u32 %v1627, 16
        %v1654 = vrot.slane %v1652, 4
        %v1655 = vshll.u32 %v1627, 16
        %v1657 = vrot.slane %v1655, 5
        %v1658 = vor.u32 %v1654, %v1657
        %v1659 = vrot.slane %v1658, 4
        %v1661 = vshll.u32 %v1628, 16
        %v1663 = vrot.slane %v1661, 5
        %v1664 = vsel %vm671, %v1659, %v1663
        %v1665 = vshrl.u32 %v1628, 16
        %v1667 = vrot.slane %v1665, 4
        %v1668 = vor.u32 %v1667, %v1663
        %v1669 = vrot.slane %v1668, 4
        %v1671 = vshll.u32 %v1629, 16
        %v1673 = vrot.slane %v1671, 5
        %v1674 = vsel %vm671, %v1669, %v1673
        %v1676 = vshrl.u32 %v1630, 16
        %v1678 = vrot.slane %v1676, 4
        %v1679 = vshll.u32 %v1630, 16
        %v1681 = vrot.slane %v1679, 5
        %v1682 = vor.u32 %v1678, %v1681
        %v1683 = vrot.slane %v1682, 4
        %v1685 = vshll.u32 %v1631, 16
        %v1687 = vrot.slane %v1685, 5
        %v1688 = vsel %vm671, %v1683, %v1687
        %v1689 = vshrl.u32 %v1631, 16
        %v1691 = vrot.slane %v1689, 4
        %v1692 = vor.u32 %v1691, %v1687
        %v1693 = vrot.slane %v1692, 4
        %v1695 = vshll.u32 %v1632, 16
        %v1697 = vrot.slane %v1695, 5
        %v1698 = vsel %vm671, %v1693, %v1697
        %v1700 = vshrl.u32 %v1633, 16
        %v1702 = vrot.slane %v1700, 4
        %v1703 = vshll.u32 %v1633, 16
        %v1705 = vrot.slane %v1703, 5
        %v1706 = vor.u32 %v1702, %v1705
        %v1707 = vrot.slane %v1706, 4
        %v1709 = vshll.u32 %v1634, 16
        %v1711 = vrot.slane %v1709, 5
        %v1712 = vsel %vm671, %v1707, %v1711
        %v1713 = vshrl.u32 %v1634, 16
        %v1715 = vrot.slane %v1713, 4
        %v1716 = vor.u32 %v1715, %v1711
        %v1717 = vrot.slane %v1716, 4
        %v1719 = vshll.u32 %v1635, 16
        %v1721 = vrot.slane %v1719, 5
        %v1722 = vsel %vm671, %v1717, %v1721
        %v1724 = vshrl.u32 %v1636, 16
        %v1726 = vrot.slane %v1724, 4
        %v1727 = vshll.u32 %v1636, 16
        %v1729 = vrot.slane %v1727, 5
        %v1730 = vor.u32 %v1726, %v1729
        %v1731 = vrot.slane %v1730, 4
        %v1733 = vshll.u32 %v1637, 16
        %v1735 = vrot.slane %v1733, 5
        %v1736 = vsel %vm671, %v1731, %v1735
        %v1737 = vshrl.u32 %v1637, 16
        %v1739 = vrot.slane %v1737, 4
        %v1740 = vor.u32 %v1739, %v1735
        %v1741 = vrot.slane %v1740, 4
        %v1743 = vshll.u32 %v1638, 16
        %v1745 = vrot.slane %v1743, 5
        %v1746 = vsel %vm671, %v1741, %v1745
        %v1748 = vshrl.u32 %v1639, 16
        %v1750 = vrot.slane %v1748, 4
        %v1751 = vshll.u32 %v1639, 16
        %v1753 = vrot.slane %v1751, 5
        %v1754 = vor.u32 %v1750, %v1753
        %v1755 = vrot.slane %v1754, 4
        %v1757 = vshll.u32 %v1640, 16
        %v1759 = vrot.slane %v1757, 5
        %v1760 = vsel %vm671, %v1755, %v1759
        %v1761 = vshrl.u32 %v1640, 16
        %v1763 = vrot.slane %v1761, 4
        %v1764 = vor.u32 %v1763, %v1759
        %v1765 = vrot.slane %v1764, 4
        %v1767 = vshll.u32 %v1641, 16
        %v1769 = vrot.slane %v1767, 5
        %v1770 = vsel %vm671, %v1765, %v1769
        %v1772 = vshrl.u32 %v1642, 16
        %v1774 = vrot.slane %v1772, 4
        %v1775 = vshll.u32 %v1642, 16
        %v1777 = vrot.slane %v1775, 5
        %v1778 = vor.u32 %v1774, %v1777
        %v1779 = vrot.slane %v1778, 4
        %v1781 = vshll.u32 %v1643, 16
        %v1783 = vrot.slane %v1781, 5
        %v1784 = vsel %vm671, %v1779, %v1783
        %v1785 = vshrl.u32 %v1643, 16
        %v1787 = vrot.slane %v1785, 4
        %v1788 = vor.u32 %v1787, %v1783
        %v1789 = vrot.slane %v1788, 4
        %v1791 = vshll.u32 %v1644, 16
        %v1793 = vrot.slane %v1791, 5
        %v1794 = vsel %vm671, %v1789, %v1793
        %v1796 = vshrl.u32 %v1645, 16
        %v1798 = vrot.slane %v1796, 4
        %v1799 = vshll.u32 %v1645, 16
        %v1801 = vrot.slane %v1799, 5
        %v1802 = vor.u32 %v1798, %v1801
        %v1803 = vrot.slane %v1802, 4
        %v1805 = vshll.u32 %v1646, 16
        %v1807 = vrot.slane %v1805, 5
        %v1808 = vsel %vm671, %v1803, %v1807
        %v1809 = vshrl.u32 %v1646, 16
        %v1811 = vrot.slane %v1809, 4
        %v1812 = vor.u32 %v1811, %v1807
        %v1813 = vrot.slane %v1812, 4
        %v1815 = vshll.u32 %v1647, 16
        %v1817 = vrot.slane %v1815, 5
        %v1818 = vsel %vm671, %v1813, %v1817
        %v1820 = vshrl.u32 %v1648, 16
        %v1822 = vrot.slane %v1820, 4
        %v1823 = vshll.u32 %v1648, 16
        %v1825 = vrot.slane %v1823, 5
        %v1826 = vor.u32 %v1822, %v1825
        %v1827 = vrot.slane %v1826, 4
        %v1829 = vshll.u32 %v1649, 16
        %v1831 = vrot.slane %v1829, 5
        %v1832 = vsel %vm671, %v1827, %v1831
        %v1833 = vshrl.u32 %v1649, 16
        %v1835 = vrot.slane %v1833, 4
        %v1836 = vor.u32 %v1835, %v1831
        %v1837 = vrot.slane %v1836, 4
        %v1839 = vshll.u32 %v1650, 16
        %v1841 = vrot.slane %v1839, 5
        %v1842 = vsel %vm671, %v1837, %v1841
        %s1843 = scalar_lea.vmem %s1, 8
        %v1844 = vld [vmem:[%s1843] sm:$0x3]
        %v1845 = vunpack.c.l.b16 %v1664
        %v1846 = vunpack.c.l.b16 %v1674
        %v1847 = vunpack.c.l.b16 %v1688
        %v1848 = vunpack.c.l.b16 %v1698
        %v1849 = vunpack.c.l.b16 %v1712
        %v1850 = vunpack.c.l.b16 %v1722
        %v1851 = vunpack.c.l.b16 %v1736
        %v1852 = vunpack.c.l.b16 %v1746
        %v1853 = vunpack.c.l.b16 %v1760
        %v1854 = vunpack.c.l.b16 %v1770
        %v1855 = vunpack.c.l.b16 %v1784
        %v1856 = vunpack.c.l.b16 %v1794
        %v1857 = vunpack.c.l.b16 %v1808
        %v1858 = vunpack.c.l.b16 %v1818
        %v1859 = vunpack.c.l.b16 %v1832
        %v1860 = vunpack.c.l.b16 %v1842
        %v1861 = vpack.c.b16 %v1846, %v1845
        %v1862 = vpack.c.b16 %v1848, %v1847
        %v1863 = vpack.c.b16 %v1850, %v1849
        %v1864 = vpack.c.b16 %v1852, %v1851
        %v1865 = vpack.c.b16 %v1854, %v1853
        %v1866 = vpack.c.b16 %v1856, %v1855
        %v1867 = vpack.c.b16 %v1858, %v1857
        %v1868 = vpack.c.b16 %v1860, %v1859
        %v1870 = vsel %vm890, %v1861, 0
        %v1873 = vsel %vm890, %v1862, 0
        %v1876 = vsel %vm890, %v1863, 0
        %v1879 = vsel %vm890, %v1864, 0
        %v1882 = vsel %vm890, %v1865, 0
        %v1885 = vsel %vm890, %v1866, 0
        %v1888 = vsel %vm890, %v1867, 0
        %v1891 = vsel %vm890, %v1868, 0
        %v1894 = vsel %vm915, %v1844, 0
        %1896 = vmatprep.subr.bf16.mxu0 0
        %1897 = vmatpush1.bf16.msra.mxu0 %v1894
        %1898 = vmatprep.subr.bf16.mxu0 0
        %1899 = vmatpush1.bf16.msra.mxu0 0
        %1900 = vmatprep.subr.bf16.mxu0 0
        %1901 = vmatpush1.bf16.msra.mxu0 0
        %1902 = vmatprep.subr.bf16.mxu0 0
        %1903 = vmatpush1.bf16.msra.mxu0 0
        %1904 = vmatprep.subr.bf16.mxu0 0
        %1905 = vmatpush1.bf16.msra.mxu0 0
        %1906 = vmatprep.subr.bf16.mxu0 0
        %1907 = vmatpush1.bf16.msra.mxu0 0
        %1908 = vmatprep.subr.bf16.mxu0 0
        %1909 = vmatpush1.bf16.msra.mxu0 0
        %1910 = vmatprep.subr.bf16.mxu0 0
        %1911 = vmatpush1.bf16.msra.mxu0 0
        %1912 = vmatprep.subr.bf16.mxu0 0
        %1913 = vmatpush1.bf16.msra.mxu0 0
        %1914 = vmatprep.subr.bf16.mxu0 0
        %1915 = vmatpush1.bf16.msra.mxu0 0
        %1916 = vmatprep.subr.bf16.mxu0 0
        %1917 = vmatpush1.bf16.msra.mxu0 0
        %1918 = vmatprep.subr.bf16.mxu0 0
        %1919 = vmatpush1.bf16.msra.mxu0 0
        %1920 = vmatprep.subr.bf16.mxu0 0
        %1921 = vmatpush1.bf16.msra.mxu0 0
        %1922 = vmatprep.subr.bf16.mxu0 0
        %1923 = vmatpush1.bf16.msra.mxu0 0
        %1924 = vmatprep.subr.bf16.mxu0 0
        %1925 = vmatpush1.bf16.msra.mxu0 0
        %1926 = vmatprep.subr.bf16.mxu0 0
        %1927 = vmatpush1.bf16.msra.mxu0 0
        %1928 = vmatprep.mubr.bf16.mxu0 0
        %1929 = vmatmul.mubr.bf16.gmra.mrb[0].mxu0 %v1870
        %v1930 = vpop.f32.mrb[0].mxu0
        %v1931 = vadd.f32 0.0, %v1930
        %v1932 = vpop.f32.mrb[0].mxu0
        %v1933 = vpop.f32.mrb[0].mxu0
        %v1934 = vadd.f32 0.0, %v1933
        %v1935 = vpop.f32.mrb[0].mxu0
        %1936 = vmatprep.mubr.bf16.mxu0 0
        %1937 = vmatmul.mubr.bf16.gmra.mrb[0].mxu0 %v1873
        %v1938 = vpop.f32.mrb[0].mxu0
        %v1939 = vadd.f32 0.0, %v1938
        %v1940 = vpop.f32.mrb[0].mxu0
        %v1941 = vpop.f32.mrb[0].mxu0
        %v1942 = vadd.f32 0.0, %v1941
        %v1943 = vpop.f32.mrb[0].mxu0
        %1944 = vmatprep.mubr.bf16.mxu0 0
        %1945 = vmatmul.mubr.bf16.gmra.mrb[0].mxu0 %v1876
        %v1946 = vpop.f32.mrb[0].mxu0
        %v1947 = vadd.f32 0.0, %v1946
        %v1948 = vpop.f32.mrb[0].mxu0
        %v1949 = vpop.f32.mrb[0].mxu0
        %v1950 = vadd.f32 0.0, %v1949
        %v1951 = vpop.f32.mrb[0].mxu0
        %1952 = vmatprep.mubr.bf16.mxu0 0
        %1953 = vmatmul.mubr.bf16.gmra.mrb[0].mxu0 %v1879
        %v1954 = vpop.f32.mrb[0].mxu0
        %v1955 = vadd.f32 0.0, %v1954
        %v1956 = vpop.f32.mrb[0].mxu0
        %v1957 = vpop.f32.mrb[0].mxu0
        %v1958 = vadd.f32 0.0, %v1957
        %v1959 = vpop.f32.mrb[0].mxu0
        %1960 = vmatprep.mubr.bf16.mxu0 0
        %1961 = vmatmul.mubr.bf16.gmra.mrb[0].mxu0 %v1882
        %v1962 = vpop.f32.mrb[0].mxu0
        %v1963 = vadd.f32 0.0, %v1962
        %v1964 = vpop.f32.mrb[0].mxu0
        %v1965 = vpop.f32.mrb[0].mxu0
        %v1966 = vadd.f32 0.0, %v1965
        %v1967 = vpop.f32.mrb[0].mxu0
        %1968 = vmatprep.mubr.bf16.mxu0 0
        %1969 = vmatmul.mubr.bf16.gmra.mrb[0].mxu0 %v1885
        %v1970 = vpop.f32.mrb[0].mxu0
        %v1971 = vadd.f32 0.0, %v1970
        %v1972 = vpop.f32.mrb[0].mxu0
        %v1973 = vpop.f32.mrb[0].mxu0
        %v1974 = vadd.f32 0.0, %v1973
        %v1975 = vpop.f32.mrb[0].mxu0
        %1976 = vmatprep.mubr.bf16.mxu0 0
        %1977 = vmatmul.mubr.bf16.gmra.mrb[0].mxu0 %v1888
        %v1978 = vpop.f32.mrb[0].mxu0
        %v1979 = vadd.f32 0.0, %v1978
        %v1980 = vpop.f32.mrb[0].mxu0
        %v1981 = vpop.f32.mrb[0].mxu0
        %v1982 = vadd.f32 0.0, %v1981
        %v1983 = vpop.f32.mrb[0].mxu0
        %1984 = vmatprep.mubr.bf16.mxu0 0
        %1985 = vmatmul.mubr.bf16.gmra.mrb[0].mxu0 %v1891
        %v1986 = vpop.f32.mrb[0].mxu0
        %v1987 = vadd.f32 0.0, %v1986
        %v1988 = vpop.f32.mrb[0].mxu0
        %v1989 = vpop.f32.mrb[0].mxu0
        %v1990 = vadd.f32 0.0, %v1989
        %v1991 = vpop.f32.mrb[0].mxu0
        %1992 = vdwg.mxu0
        %v1993 = vadd.f32 %v1611, %v1931
        %v1994 = vadd.f32 %v1612, %v1934
        %v1995 = vadd.f32 %v1613, %v1939
        %v1996 = vadd.f32 %v1614, %v1942
        %v1997 = vadd.f32 %v1615, %v1947
        %v1998 = vadd.f32 %v1616, %v1950
        %v1999 = vadd.f32 %v1617, %v1955
        %v2000 = vadd.f32 %v1618, %v1958
        %v2001 = vadd.f32 %v1619, %v1963
        %v2002 = vadd.f32 %v1620, %v1966
        %v2003 = vadd.f32 %v1621, %v1971
        %v2004 = vadd.f32 %v1622, %v1974
        %v2005 = vadd.f32 %v1623, %v1979
        %v2006 = vadd.f32 %v1624, %v1982
        %v2007 = vadd.f32 %v1625, %v1987
        %v2008 = vadd.f32 %v1626, %v1990
        %v2009 = vld [vmem:[%s585] sm:$0xe]
        %v2010 = vld [vmem:[%s585 + $0xc] sm:$0xe]
        %v2011 = vld [vmem:[%s585 + $0x18] sm:$0xe]
        %v2012 = vld [vmem:[%s585 + $0x24] sm:$0xe]
        %v2013 = vld [vmem:[%s585 + $0x30] sm:$0xe]
        %v2014 = vld [vmem:[%s585 + $0x3c] sm:$0xe]
        %v2015 = vld [vmem:[%s585 + $0x48] sm:$0xe]
        %v2016 = vld [vmem:[%s585 + $0x54] sm:$0xe]
        %v2041 = vrot.slane %v2009, 5
        %v2042 = vrot.slane %v2041, 4
        %v2043 = vrot.slane %v1628, 5
        %v2044 = vsel %vm1206, %v2042, %v2043
        %v2045 = vrot.slane %v2043, 4
        %v2046 = vrot.slane %v1629, 5
        %v2047 = vsel %vm1206, %v2045, %v2046
        %v2048 = vrot.slane %v2010, 5
        %v2049 = vrot.slane %v2048, 4
        %v2050 = vrot.slane %v1631, 5
        %v2051 = vsel %vm1206, %v2049, %v2050
        %v2052 = vrot.slane %v2050, 4
        %v2053 = vrot.slane %v1632, 5
        %v2054 = vsel %vm1206, %v2052, %v2053
        %v2055 = vrot.slane %v2011, 5
        %v2056 = vrot.slane %v2055, 4
        %v2057 = vrot.slane %v1634, 5
        %v2058 = vsel %vm1206, %v2056, %v2057
        %v2059 = vrot.slane %v2057, 4
        %v2060 = vrot.slane %v1635, 5
        %v2061 = vsel %vm1206, %v2059, %v2060
        %v2062 = vrot.slane %v2012, 5
        %v2063 = vrot.slane %v2062, 4
        %v2064 = vrot.slane %v1637, 5
        %v2065 = vsel %vm1206, %v2063, %v2064
        %v2066 = vrot.slane %v2064, 4
        %v2067 = vrot.slane %v1638, 5
        %v2068 = vsel %vm1206, %v2066, %v2067
        %v2069 = vrot.slane %v2013, 5
        %v2070 = vrot.slane %v2069, 4
        %v2071 = vrot.slane %v1640, 5
        %v2072 = vsel %vm1206, %v2070, %v2071
        %v2073 = vrot.slane %v2071, 4
        %v2074 = vrot.slane %v1641, 5
        %v2075 = vsel %vm1206, %v2073, %v2074
        %v2076 = vrot.slane %v2014, 5
        %v2077 = vrot.slane %v2076, 4
        %v2078 = vrot.slane %v1643, 5
        %v2079 = vsel %vm1206, %v2077, %v2078
        %v2080 = vrot.slane %v2078, 4
        %v2081 = vrot.slane %v1644, 5
        %v2082 = vsel %vm1206, %v2080, %v2081
        %v2083 = vrot.slane %v2015, 5
        %v2084 = vrot.slane %v2083, 4
        %v2085 = vrot.slane %v1646, 5
        %v2086 = vsel %vm1206, %v2084, %v2085
        %v2087 = vrot.slane %v2085, 4
        %v2088 = vrot.slane %v1647, 5
        %v2089 = vsel %vm1206, %v2087, %v2088
        %v2090 = vrot.slane %v2016, 5
        %v2091 = vrot.slane %v2090, 4
        %v2092 = vrot.slane %v1649, 5
        %v2093 = vsel %vm1206, %v2091, %v2092
        %v2094 = vrot.slane %v2092, 4
        %v2095 = vrot.slane %v1650, 5
        %v2096 = vsel %vm1206, %v2094, %v2095
        %s2097 = scalar_lea.vmem %s1, 10
        %v2098 = vld [vmem:[%s2097] sm:$0x3]
        %v2099 = vunpack.c.l.b16 %v2044
        %v2100 = vunpack.c.l.b16 %v2047
        %v2101 = vunpack.c.l.b16 %v2051
        %v2102 = vunpack.c.l.b16 %v2054
        %v2103 = vunpack.c.l.b16 %v2058
        %v2104 = vunpack.c.l.b16 %v2061
        %v2105 = vunpack.c.l.b16 %v2065
        %v2106 = vunpack.c.l.b16 %v2068
        %v2107 = vunpack.c.l.b16 %v2072
        %v2108 = vunpack.c.l.b16 %v2075
        %v2109 = vunpack.c.l.b16 %v2079
        %v2110 = vunpack.c.l.b16 %v2082
        %v2111 = vunpack.c.l.b16 %v2086
        %v2112 = vunpack.c.l.b16 %v2089
        %v2113 = vunpack.c.l.b16 %v2093
        %v2114 = vunpack.c.l.b16 %v2096
        %v2115 = vpack.c.b16 %v2100, %v2099
        %v2116 = vpack.c.b16 %v2102, %v2101
        %v2117 = vpack.c.b16 %v2104, %v2103
        %v2118 = vpack.c.b16 %v2106, %v2105
        %v2119 = vpack.c.b16 %v2108, %v2107
        %v2120 = vpack.c.b16 %v2110, %v2109
        %v2121 = vpack.c.b16 %v2112, %v2111
        %v2122 = vpack.c.b16 %v2114, %v2113
        %v2124 = vsel %vm890, %v2115, 0
        %v2127 = vsel %vm890, %v2116, 0
        %v2130 = vsel %vm890, %v2117, 0
        %v2133 = vsel %vm890, %v2118, 0
        %v2136 = vsel %vm890, %v2119, 0
        %v2139 = vsel %vm890, %v2120, 0
        %v2142 = vsel %vm890, %v2121, 0
        %v2145 = vsel %vm890, %v2122, 0
        %v2148 = vsel %vm915, %v2098, 0
        %2150 = vmatprep.subr.bf16.mxu0 0
        %2151 = vmatpush1.bf16.msra.mxu0 %v2148
        %2152 = vmatprep.subr.bf16.mxu0 0
        %2153 = vmatpush1.bf16.msra.mxu0 0
        %2154 = vmatprep.subr.bf16.mxu0 0
        %2155 = vmatpush1.bf16.msra.mxu0 0
        %2156 = vmatprep.subr.bf16.mxu0 0
        %2157 = vmatpush1.bf16.msra.mxu0 0
        %2158 = vmatprep.subr.bf16.mxu0 0
        %2159 = vmatpush1.bf16.msra.mxu0 0
        %2160 = vmatprep.subr.bf16.mxu0 0
        %2161 = vmatpush1.bf16.msra.mxu0 0
        %2162 = vmatprep.subr.bf16.mxu0 0
        %2163 = vmatpush1.bf16.msra.mxu0 0
        %2164 = vmatprep.subr.bf16.mxu0 0
        %2165 = vmatpush1.bf16.msra.mxu0 0
        %2166 = vmatprep.subr.bf16.mxu0 0
        %2167 = vmatpush1.bf16.msra.mxu0 0
        %2168 = vmatprep.subr.bf16.mxu0 0
        %2169 = vmatpush1.bf16.msra.mxu0 0
        %2170 = vmatprep.subr.bf16.mxu0 0
        %2171 = vmatpush1.bf16.msra.mxu0 0
        %2172 = vmatprep.subr.bf16.mxu0 0
        %2173 = vmatpush1.bf16.msra.mxu0 0
        %2174 = vmatprep.subr.bf16.mxu0 0
        %2175 = vmatpush1.bf16.msra.mxu0 0
        %2176 = vmatprep.subr.bf16.mxu0 0
        %2177 = vmatpush1.bf16.msra.mxu0 0
        %2178 = vmatprep.subr.bf16.mxu0 0
        %2179 = vmatpush1.bf16.msra.mxu0 0
        %2180 = vmatprep.subr.bf16.mxu0 0
        %2181 = vmatpush1.bf16.msra.mxu0 0
        %2182 = vmatprep.mubr.bf16.mxu0 0
        %2183 = vmatmul.mubr.bf16.gmra.mrb[0].mxu0 %v2124
        %v2184 = vpop.f32.mrb[0].mxu0
        %v2185 = vadd.f32 0.0, %v2184
        %v2186 = vpop.f32.mrb[0].mxu0
        %v2187 = vpop.f32.mrb[0].mxu0
        %v2188 = vadd.f32 0.0, %v2187
        %v2189 = vpop.f32.mrb[0].mxu0
        %2190 = vmatprep.mubr.bf16.mxu0 0
        %2191 = vmatmul.mubr.bf16.gmra.mrb[0].mxu0 %v2127
        %v2192 = vpop.f32.mrb[0].mxu0
        %v2193 = vadd.f32 0.0, %v2192
        %v2194 = vpop.f32.mrb[0].mxu0
        %v2195 = vpop.f32.mrb[0].mxu0
        %v2196 = vadd.f32 0.0, %v2195
        %v2197 = vpop.f32.mrb[0].mxu0
        %2198 = vmatprep.mubr.bf16.mxu0 0
        %2199 = vmatmul.mubr.bf16.gmra.mrb[0].mxu0 %v2130
        %v2200 = vpop.f32.mrb[0].mxu0
        %v2201 = vadd.f32 0.0, %v2200
        %v2202 = vpop.f32.mrb[0].mxu0
        %v2203 = vpop.f32.mrb[0].mxu0
        %v2204 = vadd.f32 0.0, %v2203
        %v2205 = vpop.f32.mrb[0].mxu0
        %2206 = vmatprep.mubr.bf16.mxu0 0
        %2207 = vmatmul.mubr.bf16.gmra.mrb[0].mxu0 %v2133
        %v2208 = vpop.f32.mrb[0].mxu0
        %v2209 = vadd.f32 0.0, %v2208
        %v2210 = vpop.f32.mrb[0].mxu0
        %v2211 = vpop.f32.mrb[0].mxu0
        %v2212 = vadd.f32 0.0, %v2211
        %v2213 = vpop.f32.mrb[0].mxu0
        %2214 = vmatprep.mubr.bf16.mxu0 0
        %2215 = vmatmul.mubr.bf16.gmra.mrb[0].mxu0 %v2136
        %v2216 = vpop.f32.mrb[0].mxu0
        %v2217 = vadd.f32 0.0, %v2216
        %v2218 = vpop.f32.mrb[0].mxu0
        %v2219 = vpop.f32.mrb[0].mxu0
        %v2220 = vadd.f32 0.0, %v2219
        %v2221 = vpop.f32.mrb[0].mxu0
        %2222 = vmatprep.mubr.bf16.mxu0 0
        %2223 = vmatmul.mubr.bf16.gmra.mrb[0].mxu0 %v2139
        %v2224 = vpop.f32.mrb[0].mxu0
        %v2225 = vadd.f32 0.0, %v2224
        %v2226 = vpop.f32.mrb[0].mxu0
        %v2227 = vpop.f32.mrb[0].mxu0
        %v2228 = vadd.f32 0.0, %v2227
        %v2229 = vpop.f32.mrb[0].mxu0
        %2230 = vmatprep.mubr.bf16.mxu0 0
        %2231 = vmatmul.mubr.bf16.gmra.mrb[0].mxu0 %v2142
        %v2232 = vpop.f32.mrb[0].mxu0
        %v2233 = vadd.f32 0.0, %v2232
        %v2234 = vpop.f32.mrb[0].mxu0
        %v2235 = vpop.f32.mrb[0].mxu0
        %v2236 = vadd.f32 0.0, %v2235
        %v2237 = vpop.f32.mrb[0].mxu0
        %2238 = vmatprep.mubr.bf16.mxu0 0
        %2239 = vmatmul.mubr.bf16.gmra.mrb[0].mxu0 %v2145
        %v2240 = vpop.f32.mrb[0].mxu0
        %v2241 = vadd.f32 0.0, %v2240
        %v2242 = vpop.f32.mrb[0].mxu0
        %v2243 = vpop.f32.mrb[0].mxu0
        %v2244 = vadd.f32 0.0, %v2243
        %v2245 = vpop.f32.mrb[0].mxu0
        %2246 = vdwg.mxu0
        %v2247 = vadd.f32 %v1993, %v2185
        %v2248 = vadd.f32 %v1994, %v2188
        %v2249 = vadd.f32 %v1995, %v2193
        %v2250 = vadd.f32 %v1996, %v2196
        %v2251 = vadd.f32 %v1997, %v2201
        %v2252 = vadd.f32 %v1998, %v2204
        %v2253 = vadd.f32 %v1999, %v2209
        %v2254 = vadd.f32 %v2000, %v2212
        %v2255 = vadd.f32 %v2001, %v2217
        %v2256 = vadd.f32 %v2002, %v2220
        %v2257 = vadd.f32 %v2003, %v2225
        %v2258 = vadd.f32 %v2004, %v2228
        %v2259 = vadd.f32 %v2005, %v2233
        %v2260 = vadd.f32 %v2006, %v2236
        %v2261 = vadd.f32 %v2007, %v2241
        %v2262 = vadd.f32 %v2008, %v2244
        %s2263 = scalar_lea.vmem [#allocation2], 24
        %v2264 = vld [vmem:[%s2263] sm:$0xf]
        %v2265 = vld [vmem:[%s2263 + $0x4] sm:$0xf]
        %v2266 = vld [vmem:[%s2263 + $0xc] sm:$0xf]
        %v2267 = vld [vmem:[%s2263 + $0x10] sm:$0xf]
        %v2268 = vld [vmem:[%s2263 + $0x18] sm:$0xf]
        %v2269 = vld [vmem:[%s2263 + $0x1c] sm:$0xf]
        %v2270 = vld [vmem:[%s2263 + $0x24] sm:$0xf]
        %v2271 = vld [vmem:[%s2263 + $0x28] sm:$0xf]
        %v2272 = vld [vmem:[%s2263 + $0x30] sm:$0xf]
        %v2273 = vld [vmem:[%s2263 + $0x34] sm:$0xf]
        %v2274 = vld [vmem:[%s2263 + $0x3c] sm:$0xf]
        %v2275 = vld [vmem:[%s2263 + $0x40] sm:$0xf]
        %v2276 = vld [vmem:[%s2263 + $0x48] sm:$0xf]
        %v2277 = vld [vmem:[%s2263 + $0x4c] sm:$0xf]
        %v2278 = vld [vmem:[%s2263 + $0x54] sm:$0xf]
        %v2279 = vld [vmem:[%s2263 + $0x58] sm:$0xf]
        %s2280 = scalar_lea.vmem %s1, 12
        %v2281 = vld [vmem:[%s2280] sm:$0x3]
        %v2298 = vunpack.c.l.b16 %v2264
        %v2299 = vunpack.c.l.b16 %v2265
        %v2300 = vunpack.c.l.b16 %v2266
        %v2301 = vunpack.c.l.b16 %v2267
        %v2302 = vunpack.c.l.b16 %v2268
        %v2303 = vunpack.c.l.b16 %v2269
        %v2304 = vunpack.c.l.b16 %v2270
        %v2305 = vunpack.c.l.b16 %v2271
        %v2306 = vunpack.c.l.b16 %v2272
        %v2307 = vunpack.c.l.b16 %v2273
        %v2308 = vunpack.c.l.b16 %v2274
        %v2309 = vunpack.c.l.b16 %v2275
        %v2310 = vunpack.c.l.b16 %v2276
        %v2311 = vunpack.c.l.b16 %v2277
        %v2312 = vunpack.c.l.b16 %v2278
        %v2313 = vunpack.c.l.b16 %v2279
        %v2314 = vpack.c.b16 %v2299, %v2298
        %v2315 = vpack.c.b16 %v2301, %v2300
        %v2316 = vpack.c.b16 %v2303, %v2302
        %v2317 = vpack.c.b16 %v2305, %v2304
        %v2318 = vpack.c.b16 %v2307, %v2306
        %v2319 = vpack.c.b16 %v2309, %v2308
        %v2320 = vpack.c.b16 %v2311, %v2310
        %v2321 = vpack.c.b16 %v2313, %v2312
        %v2323 = vsel %vm890, %v2314, 0
        %v2326 = vsel %vm890, %v2315, 0
        %v2329 = vsel %vm890, %v2316, 0
        %v2332 = vsel %vm890, %v2317, 0
        %v2335 = vsel %vm890, %v2318, 0
        %v2338 = vsel %vm890, %v2319, 0
        %v2341 = vsel %vm890, %v2320, 0
        %v2344 = vsel %vm890, %v2321, 0
        %v2347 = vsel %vm915, %v2281, 0
        %2349 = vmatprep.subr.bf16.mxu0 0
        %2350 = vmatpush1.bf16.msra.mxu0 %v2347
        %2351 = vmatprep.subr.bf16.mxu0 0
        %2352 = vmatpush1.bf16.msra.mxu0 0
        %2353 = vmatprep.subr.bf16.mxu0 0
        %2354 = vmatpush1.bf16.msra.mxu0 0
        %2355 = vmatprep.subr.bf16.mxu0 0
        %2356 = vmatpush1.bf16.msra.mxu0 0
        %2357 = vmatprep.subr.bf16.mxu0 0
        %2358 = vmatpush1.bf16.msra.mxu0 0
        %2359 = vmatprep.subr.bf16.mxu0 0
        %2360 = vmatpush1.bf16.msra.mxu0 0
        %2361 = vmatprep.subr.bf16.mxu0 0
        %2362 = vmatpush1.bf16.msra.mxu0 0
        %2363 = vmatprep.subr.bf16.mxu0 0
        %2364 = vmatpush1.bf16.msra.mxu0 0
        %2365 = vmatprep.subr.bf16.mxu0 0
        %2366 = vmatpush1.bf16.msra.mxu0 0
        %2367 = vmatprep.subr.bf16.mxu0 0
        %2368 = vmatpush1.bf16.msra.mxu0 0
        %2369 = vmatprep.subr.bf16.mxu0 0
        %2370 = vmatpush1.bf16.msra.mxu0 0
        %2371 = vmatprep.subr.bf16.mxu0 0
        %2372 = vmatpush1.bf16.msra.mxu0 0
        %2373 = vmatprep.subr.bf16.mxu0 0
        %2374 = vmatpush1.bf16.msra.mxu0 0
        %2375 = vmatprep.subr.bf16.mxu0 0
        %2376 = vmatpush1.bf16.msra.mxu0 0
        %2377 = vmatprep.subr.bf16.mxu0 0
        %2378 = vmatpush1.bf16.msra.mxu0 0
        %2379 = vmatprep.subr.bf16.mxu0 0
        %2380 = vmatpush1.bf16.msra.mxu0 0
        %2381 = vmatprep.mubr.bf16.mxu0 0
        %2382 = vmatmul.mubr.bf16.gmra.mrb[0].mxu0 %v2323
        %v2383 = vpop.f32.mrb[0].mxu0
        %v2384 = vadd.f32 0.0, %v2383
        %v2385 = vpop.f32.mrb[0].mxu0
        %v2386 = vpop.f32.mrb[0].mxu0
        %v2387 = vadd.f32 0.0, %v2386
        %v2388 = vpop.f32.mrb[0].mxu0
        %2389 = vmatprep.mubr.bf16.mxu0 0
        %2390 = vmatmul.mubr.bf16.gmra.mrb[0].mxu0 %v2326
        %v2391 = vpop.f32.mrb[0].mxu0
        %v2392 = vadd.f32 0.0, %v2391
        %v2393 = vpop.f32.mrb[0].mxu0
        %v2394 = vpop.f32.mrb[0].mxu0
        %v2395 = vadd.f32 0.0, %v2394
        %v2396 = vpop.f32.mrb[0].mxu0
        %2397 = vmatprep.mubr.bf16.mxu0 0
        %2398 = vmatmul.mubr.bf16.gmra.mrb[0].mxu0 %v2329
        %v2399 = vpop.f32.mrb[0].mxu0
        %v2400 = vadd.f32 0.0, %v2399
        %v2401 = vpop.f32.mrb[0].mxu0
        %v2402 = vpop.f32.mrb[0].mxu0
        %v2403 = vadd.f32 0.0, %v2402
        %v2404 = vpop.f32.mrb[0].mxu0
        %2405 = vmatprep.mubr.bf16.mxu0 0
        %2406 = vmatmul.mubr.bf16.gmra.mrb[0].mxu0 %v2332
        %v2407 = vpop.f32.mrb[0].mxu0
        %v2408 = vadd.f32 0.0, %v2407
        %v2409 = vpop.f32.mrb[0].mxu0
        %v2410 = vpop.f32.mrb[0].mxu0
        %v2411 = vadd.f32 0.0, %v2410
        %v2412 = vpop.f32.mrb[0].mxu0
        %2413 = vmatprep.mubr.bf16.mxu0 0
        %2414 = vmatmul.mubr.bf16.gmra.mrb[0].mxu0 %v2335
        %v2415 = vpop.f32.mrb[0].mxu0
        %v2416 = vadd.f32 0.0, %v2415
        %v2417 = vpop.f32.mrb[0].mxu0
        %v2418 = vpop.f32.mrb[0].mxu0
        %v2419 = vadd.f32 0.0, %v2418
        %v2420 = vpop.f32.mrb[0].mxu0
        %2421 = vmatprep.mubr.bf16.mxu0 0
        %2422 = vmatmul.mubr.bf16.gmra.mrb[0].mxu0 %v2338
        %v2423 = vpop.f32.mrb[0].mxu0
        %v2424 = vadd.f32 0.0, %v2423
        %v2425 = vpop.f32.mrb[0].mxu0
        %v2426 = vpop.f32.mrb[0].mxu0
        %v2427 = vadd.f32 0.0, %v2426
        %v2428 = vpop.f32.mrb[0].mxu0
        %2429 = vmatprep.mubr.bf16.mxu0 0
        %2430 = vmatmul.mubr.bf16.gmra.mrb[0].mxu0 %v2341
        %v2431 = vpop.f32.mrb[0].mxu0
        %v2432 = vadd.f32 0.0, %v2431
        %v2433 = vpop.f32.mrb[0].mxu0
        %v2434 = vpop.f32.mrb[0].mxu0
        %v2435 = vadd.f32 0.0, %v2434
        %v2436 = vpop.f32.mrb[0].mxu0
        %2437 = vmatprep.mubr.bf16.mxu0 0
        %2438 = vmatmul.mubr.bf16.gmra.mrb[0].mxu0 %v2344
        %v2439 = vpop.f32.mrb[0].mxu0
        %v2440 = vadd.f32 0.0, %v2439
        %v2441 = vpop.f32.mrb[0].mxu0
        %v2442 = vpop.f32.mrb[0].mxu0
        %v2443 = vadd.f32 0.0, %v2442
        %v2444 = vpop.f32.mrb[0].mxu0
        %2445 = vdwg.mxu0
        %v2446 = vadd.f32 %v2247, %v2384
        %v2447 = vadd.f32 %v2248, %v2387
        %v2448 = vadd.f32 %v2249, %v2392
        %v2449 = vadd.f32 %v2250, %v2395
        %v2450 = vadd.f32 %v2251, %v2400
        %v2451 = vadd.f32 %v2252, %v2403
        %v2452 = vadd.f32 %v2253, %v2408
        %v2453 = vadd.f32 %v2254, %v2411
        %v2454 = vadd.f32 %v2255, %v2416
        %v2455 = vadd.f32 %v2256, %v2419
        %v2456 = vadd.f32 %v2257, %v2424
        %v2457 = vadd.f32 %v2258, %v2427
        %v2458 = vadd.f32 %v2259, %v2432
        %v2459 = vadd.f32 %v2260, %v2435
        %v2460 = vadd.f32 %v2261, %v2440
        %v2461 = vadd.f32 %v2262, %v2443
        %v2462 = vld [vmem:[%s2263] sm:$0xf]
        %v2463 = vld [vmem:[%s2263 + $0x4] sm:$0xf]
        %v2464 = vld [vmem:[%s2263 + $0x8] sm:$0x1]
        %v2465 = vld [vmem:[%s2263 + $0xc] sm:$0xf]
        %v2466 = vld [vmem:[%s2263 + $0x10] sm:$0xf]
        %v2467 = vld [vmem:[%s2263 + $0x14] sm:$0x1]
        %v2468 = vld [vmem:[%s2263 + $0x18] sm:$0xf]
        %v2469 = vld [vmem:[%s2263 + $0x1c] sm:$0xf]
        %v2470 = vld [vmem:[%s2263 + $0x20] sm:$0x1]
        %v2471 = vld [vmem:[%s2263 + $0x24] sm:$0xf]
        %v2472 = vld [vmem:[%s2263 + $0x28] sm:$0xf]
        %v2473 = vld [vmem:[%s2263 + $0x2c] sm:$0x1]
        %v2474 = vld [vmem:[%s2263 + $0x30] sm:$0xf]
        %v2475 = vld [vmem:[%s2263 + $0x34] sm:$0xf]
        %v2476 = vld [vmem:[%s2263 + $0x38] sm:$0x1]
        %v2477 = vld [vmem:[%s2263 + $0x3c] sm:$0xf]
        %v2478 = vld [vmem:[%s2263 + $0x40] sm:$0xf]
        %v2479 = vld [vmem:[%s2263 + $0x44] sm:$0x1]
        %v2480 = vld [vmem:[%s2263 + $0x48] sm:$0xf]
        %v2481 = vld [vmem:[%s2263 + $0x4c] sm:$0xf]
        %v2482 = vld [vmem:[%s2263 + $0x50] sm:$0x1]
        %v2483 = vld [vmem:[%s2263 + $0x54] sm:$0xf]
        %v2484 = vld [vmem:[%s2263 + $0x58] sm:$0xf]
        %v2485 = vld [vmem:[%s2263 + $0x5c] sm:$0x1]
        %v2487 = vshrl.u32 %v2462, 16
        %v2489 = vrot.slane %v2487, 4
        %v2490 = vshll.u32 %v2462, 16
        %v2492 = vrot.slane %v2490, 5
        %v2493 = vor.u32 %v2489, %v2492
        %v2494 = vrot.slane %v2493, 4
        %v2496 = vshll.u32 %v2463, 16
        %v2498 = vrot.slane %v2496, 5
        %v2499 = vsel %vm671, %v2494, %v2498
        %v2500 = vshrl.u32 %v2463, 16
        %v2502 = vrot.slane %v2500, 4
        %v2503 = vor.u32 %v2502, %v2498
        %v2504 = vrot.slane %v2503, 4
        %v2506 = vshll.u32 %v2464, 16
        %v2508 = vrot.slane %v2506, 5
        %v2509 = vsel %vm671, %v2504, %v2508
        %v2511 = vshrl.u32 %v2465, 16
        %v2513 = vrot.slane %v2511, 4
        %v2514 = vshll.u32 %v2465, 16
        %v2516 = vrot.slane %v2514, 5
        %v2517 = vor.u32 %v2513, %v2516
        %v2518 = vrot.slane %v2517, 4
        %v2520 = vshll.u32 %v2466, 16
        %v2522 = vrot.slane %v2520, 5
        %v2523 = vsel %vm671, %v2518, %v2522
        %v2524 = vshrl.u32 %v2466, 16
        %v2526 = vrot.slane %v2524, 4
        %v2527 = vor.u32 %v2526, %v2522
        %v2528 = vrot.slane %v2527, 4
        %v2530 = vshll.u32 %v2467, 16
        %v2532 = vrot.slane %v2530, 5
        %v2533 = vsel %vm671, %v2528, %v2532
        %v2535 = vshrl.u32 %v2468, 16
        %v2537 = vrot.slane %v2535, 4
        %v2538 = vshll.u32 %v2468, 16
        %v2540 = vrot.slane %v2538, 5
        %v2541 = vor.u32 %v2537, %v2540
        %v2542 = vrot.slane %v2541, 4
        %v2544 = vshll.u32 %v2469, 16
        %v2546 = vrot.slane %v2544, 5
        %v2547 = vsel %vm671, %v2542, %v2546
        %v2548 = vshrl.u32 %v2469, 16
        %v2550 = vrot.slane %v2548, 4
        %v2551 = vor.u32 %v2550, %v2546
        %v2552 = vrot.slane %v2551, 4
        %v2554 = vshll.u32 %v2470, 16
        %v2556 = vrot.slane %v2554, 5
        %v2557 = vsel %vm671, %v2552, %v2556
        %v2559 = vshrl.u32 %v2471, 16
        %v2561 = vrot.slane %v2559, 4
        %v2562 = vshll.u32 %v2471, 16
        %v2564 = vrot.slane %v2562, 5
        %v2565 = vor.u32 %v2561, %v2564
        %v2566 = vrot.slane %v2565, 4
        %v2568 = vshll.u32 %v2472, 16
        %v2570 = vrot.slane %v2568, 5
        %v2571 = vsel %vm671, %v2566, %v2570
        %v2572 = vshrl.u32 %v2472, 16
        %v2574 = vrot.slane %v2572, 4
        %v2575 = vor.u32 %v2574, %v2570
        %v2576 = vrot.slane %v2575, 4
        %v2578 = vshll.u32 %v2473, 16
        %v2580 = vrot.slane %v2578, 5
        %v2581 = vsel %vm671, %v2576, %v2580
        %v2583 = vshrl.u32 %v2474, 16
        %v2585 = vrot.slane %v2583, 4
        %v2586 = vshll.u32 %v2474, 16
        %v2588 = vrot.slane %v2586, 5
        %v2589 = vor.u32 %v2585, %v2588
        %v2590 = vrot.slane %v2589, 4
        %v2592 = vshll.u32 %v2475, 16
        %v2594 = vrot.slane %v2592, 5
        %v2595 = vsel %vm671, %v2590, %v2594
        %v2596 = vshrl.u32 %v2475, 16
        %v2598 = vrot.slane %v2596, 4
        %v2599 = vor.u32 %v2598, %v2594
        %v2600 = vrot.slane %v2599, 4
        %v2602 = vshll.u32 %v2476, 16
        %v2604 = vrot.slane %v2602, 5
        %v2605 = vsel %vm671, %v2600, %v2604
        %v2607 = vshrl.u32 %v2477, 16
        %v2609 = vrot.slane %v2607, 4
        %v2610 = vshll.u32 %v2477, 16
        %v2612 = vrot.slane %v2610, 5
        %v2613 = vor.u32 %v2609, %v2612
        %v2614 = vrot.slane %v2613, 4
        %v2616 = vshll.u32 %v2478, 16
        %v2618 = vrot.slane %v2616, 5
        %v2619 = vsel %vm671, %v2614, %v2618
        %v2620 = vshrl.u32 %v2478, 16
        %v2622 = vrot.slane %v2620, 4
        %v2623 = vor.u32 %v2622, %v2618
        %v2624 = vrot.slane %v2623, 4
        %v2626 = vshll.u32 %v2479, 16
        %v2628 = vrot.slane %v2626, 5
        %v2629 = vsel %vm671, %v2624, %v2628
        %v2631 = vshrl.u32 %v2480, 16
        %v2633 = vrot.slane %v2631, 4
        %v2634 = vshll.u32 %v2480, 16
        %v2636 = vrot.slane %v2634, 5
        %v2637 = vor.u32 %v2633, %v2636
        %v2638 = vrot.slane %v2637, 4
        %v2640 = vshll.u32 %v2481, 16
        %v2642 = vrot.slane %v2640, 5
        %v2643 = vsel %vm671, %v2638, %v2642
        %v2644 = vshrl.u32 %v2481, 16
        %v2646 = vrot.slane %v2644, 4
        %v2647 = vor.u32 %v2646, %v2642
        %v2648 = vrot.slane %v2647, 4
        %v2650 = vshll.u32 %v2482, 16
        %v2652 = vrot.slane %v2650, 5
        %v2653 = vsel %vm671, %v2648, %v2652
        %v2655 = vshrl.u32 %v2483, 16
        %v2657 = vrot.slane %v2655, 4
        %v2658 = vshll.u32 %v2483, 16
        %v2660 = vrot.slane %v2658, 5
        %v2661 = vor.u32 %v2657, %v2660
        %v2662 = vrot.slane %v2661, 4
        %v2664 = vshll.u32 %v2484, 16
        %v2666 = vrot.slane %v2664, 5
        %v2667 = vsel %vm671, %v2662, %v2666
        %v2668 = vshrl.u32 %v2484, 16
        %v2670 = vrot.slane %v2668, 4
        %v2671 = vor.u32 %v2670, %v2666
        %v2672 = vrot.slane %v2671, 4
        %v2674 = vshll.u32 %v2485, 16
        %v2676 = vrot.slane %v2674, 5
        %v2677 = vsel %vm671, %v2672, %v2676
        %s2678 = scalar_lea.vmem %s1, 14
        %v2679 = vld [vmem:[%s2678] sm:$0x3]
        %v2680 = vunpack.c.l.b16 %v2499
        %v2681 = vunpack.c.l.b16 %v2509
        %v2682 = vunpack.c.l.b16 %v2523
        %v2683 = vunpack.c.l.b16 %v2533
        %v2684 = vunpack.c.l.b16 %v2547
        %v2685 = vunpack.c.l.b16 %v2557
        %v2686 = vunpack.c.l.b16 %v2571
        %v2687 = vunpack.c.l.b16 %v2581
        %v2688 = vunpack.c.l.b16 %v2595
        %v2689 = vunpack.c.l.b16 %v2605
        %v2690 = vunpack.c.l.b16 %v2619
        %v2691 = vunpack.c.l.b16 %v2629
        %v2692 = vunpack.c.l.b16 %v2643
        %v2693 = vunpack.c.l.b16 %v2653
        %v2694 = vunpack.c.l.b16 %v2667
        %v2695 = vunpack.c.l.b16 %v2677
        %v2696 = vpack.c.b16 %v2681, %v2680
        %v2697 = vpack.c.b16 %v2683, %v2682
        %v2698 = vpack.c.b16 %v2685, %v2684
        %v2699 = vpack.c.b16 %v2687, %v2686
        %v2700 = vpack.c.b16 %v2689, %v2688
        %v2701 = vpack.c.b16 %v2691, %v2690
        %v2702 = vpack.c.b16 %v2693, %v2692
        %v2703 = vpack.c.b16 %v2695, %v2694
        %v2705 = vsel %vm890, %v2696, 0
        %v2708 = vsel %vm890, %v2697, 0
        %v2711 = vsel %vm890, %v2698, 0
        %v2714 = vsel %vm890, %v2699, 0
        %v2717 = vsel %vm890, %v2700, 0
        %v2720 = vsel %vm890, %v2701, 0
        %v2723 = vsel %vm890, %v2702, 0
        %v2726 = vsel %vm890, %v2703, 0
        %v2729 = vsel %vm915, %v2679, 0
        %2731 = vmatprep.subr.bf16.mxu0 0
        %2732 = vmatpush1.bf16.msra.mxu0 %v2729
        %2733 = vmatprep.subr.bf16.mxu0 0
        %2734 = vmatpush1.bf16.msra.mxu0 0
        %2735 = vmatprep.subr.bf16.mxu0 0
        %2736 = vmatpush1.bf16.msra.mxu0 0
        %2737 = vmatprep.subr.bf16.mxu0 0
        %2738 = vmatpush1.bf16.msra.mxu0 0
        %2739 = vmatprep.subr.bf16.mxu0 0
        %2740 = vmatpush1.bf16.msra.mxu0 0
        %2741 = vmatprep.subr.bf16.mxu0 0
        %2742 = vmatpush1.bf16.msra.mxu0 0
        %2743 = vmatprep.subr.bf16.mxu0 0
        %2744 = vmatpush1.bf16.msra.mxu0 0
        %2745 = vmatprep.subr.bf16.mxu0 0
        %2746 = vmatpush1.bf16.msra.mxu0 0
        %2747 = vmatprep.subr.bf16.mxu0 0
        %2748 = vmatpush1.bf16.msra.mxu0 0
        %2749 = vmatprep.subr.bf16.mxu0 0
        %2750 = vmatpush1.bf16.msra.mxu0 0
        %2751 = vmatprep.subr.bf16.mxu0 0
        %2752 = vmatpush1.bf16.msra.mxu0 0
        %2753 = vmatprep.subr.bf16.mxu0 0
        %2754 = vmatpush1.bf16.msra.mxu0 0
        %2755 = vmatprep.subr.bf16.mxu0 0
        %2756 = vmatpush1.bf16.msra.mxu0 0
        %2757 = vmatprep.subr.bf16.mxu0 0
        %2758 = vmatpush1.bf16.msra.mxu0 0
        %2759 = vmatprep.subr.bf16.mxu0 0
        %2760 = vmatpush1.bf16.msra.mxu0 0
        %2761 = vmatprep.subr.bf16.mxu0 0
        %2762 = vmatpush1.bf16.msra.mxu0 0
        %2763 = vmatprep.mubr.bf16.mxu0 0
        %2764 = vmatmul.mubr.bf16.gmra.mrb[0].mxu0 %v2705
        %v2765 = vpop.f32.mrb[0].mxu0
        %v2766 = vadd.f32 0.0, %v2765
        %v2767 = vpop.f32.mrb[0].mxu0
        %v2768 = vpop.f32.mrb[0].mxu0
        %v2769 = vadd.f32 0.0, %v2768
        %v2770 = vpop.f32.mrb[0].mxu0
        %2771 = vmatprep.mubr.bf16.mxu0 0
        %2772 = vmatmul.mubr.bf16.gmra.mrb[0].mxu0 %v2708
        %v2773 = vpop.f32.mrb[0].mxu0
        %v2774 = vadd.f32 0.0, %v2773
        %v2775 = vpop.f32.mrb[0].mxu0
        %v2776 = vpop.f32.mrb[0].mxu0
        %v2777 = vadd.f32 0.0, %v2776
        %v2778 = vpop.f32.mrb[0].mxu0
        %2779 = vmatprep.mubr.bf16.mxu0 0
        %2780 = vmatmul.mubr.bf16.gmra.mrb[0].mxu0 %v2711
        %v2781 = vpop.f32.mrb[0].mxu0
        %v2782 = vadd.f32 0.0, %v2781
        %v2783 = vpop.f32.mrb[0].mxu0
        %v2784 = vpop.f32.mrb[0].mxu0
        %v2785 = vadd.f32 0.0, %v2784
        %v2786 = vpop.f32.mrb[0].mxu0
        %2787 = vmatprep.mubr.bf16.mxu0 0
        %2788 = vmatmul.mubr.bf16.gmra.mrb[0].mxu0 %v2714
        %v2789 = vpop.f32.mrb[0].mxu0
        %v2790 = vadd.f32 0.0, %v2789
        %v2791 = vpop.f32.mrb[0].mxu0
        %v2792 = vpop.f32.mrb[0].mxu0
        %v2793 = vadd.f32 0.0, %v2792
        %v2794 = vpop.f32.mrb[0].mxu0
        %2795 = vmatprep.mubr.bf16.mxu0 0
        %2796 = vmatmul.mubr.bf16.gmra.mrb[0].mxu0 %v2717
        %v2797 = vpop.f32.mrb[0].mxu0
        %v2798 = vadd.f32 0.0, %v2797
        %v2799 = vpop.f32.mrb[0].mxu0
        %v2800 = vpop.f32.mrb[0].mxu0
        %v2801 = vadd.f32 0.0, %v2800
        %v2802 = vpop.f32.mrb[0].mxu0
        %2803 = vmatprep.mubr.bf16.mxu0 0
        %2804 = vmatmul.mubr.bf16.gmra.mrb[0].mxu0 %v2720
        %v2805 = vpop.f32.mrb[0].mxu0
        %v2806 = vadd.f32 0.0, %v2805
        %v2807 = vpop.f32.mrb[0].mxu0
        %v2808 = vpop.f32.mrb[0].mxu0
        %v2809 = vadd.f32 0.0, %v2808
        %v2810 = vpop.f32.mrb[0].mxu0
        %2811 = vmatprep.mubr.bf16.mxu0 0
        %2812 = vmatmul.mubr.bf16.gmra.mrb[0].mxu0 %v2723
        %v2813 = vpop.f32.mrb[0].mxu0
        %v2814 = vadd.f32 0.0, %v2813
        %v2815 = vpop.f32.mrb[0].mxu0
        %v2816 = vpop.f32.mrb[0].mxu0
        %v2817 = vadd.f32 0.0, %v2816
        %v2818 = vpop.f32.mrb[0].mxu0
        %2819 = vmatprep.mubr.bf16.mxu0 0
        %2820 = vmatmul.mubr.bf16.gmra.mrb[0].mxu0 %v2726
        %v2821 = vpop.f32.mrb[0].mxu0
        %v2822 = vadd.f32 0.0, %v2821
        %v2823 = vpop.f32.mrb[0].mxu0
        %v2824 = vpop.f32.mrb[0].mxu0
        %v2825 = vadd.f32 0.0, %v2824
        %v2826 = vpop.f32.mrb[0].mxu0
        %2827 = vdwg.mxu0
        %v2828 = vadd.f32 %v2446, %v2766
        %v2829 = vadd.f32 %v2447, %v2769
        %v2830 = vadd.f32 %v2448, %v2774
        %v2831 = vadd.f32 %v2449, %v2777
        %v2832 = vadd.f32 %v2450, %v2782
        %v2833 = vadd.f32 %v2451, %v2785
        %v2834 = vadd.f32 %v2452, %v2790
        %v2835 = vadd.f32 %v2453, %v2793
        %v2836 = vadd.f32 %v2454, %v2798
        %v2837 = vadd.f32 %v2455, %v2801
        %v2838 = vadd.f32 %v2456, %v2806
        %v2839 = vadd.f32 %v2457, %v2809
        %v2840 = vadd.f32 %v2458, %v2814
        %v2841 = vadd.f32 %v2459, %v2817
        %v2842 = vadd.f32 %v2460, %v2822
        %v2843 = vadd.f32 %v2461, %v2825
        %v2844 = vld [vmem:[%s2263] sm:$0xe]
        %v2845 = vld [vmem:[%s2263 + $0xc] sm:$0xe]
        %v2846 = vld [vmem:[%s2263 + $0x18] sm:$0xe]
        %v2847 = vld [vmem:[%s2263 + $0x24] sm:$0xe]
        %v2848 = vld [vmem:[%s2263 + $0x30] sm:$0xe]
        %v2849 = vld [vmem:[%s2263 + $0x3c] sm:$0xe]
        %v2850 = vld [vmem:[%s2263 + $0x48] sm:$0xe]
        %v2851 = vld [vmem:[%s2263 + $0x54] sm:$0xe]
        %v2876 = vrot.slane %v2844, 5
        %v2877 = vrot.slane %v2876, 4
        %v2878 = vrot.slane %v2463, 5
        %v2879 = vsel %vm1206, %v2877, %v2878
        %v2880 = vrot.slane %v2878, 4
        %v2881 = vrot.slane %v2464, 5
        %v2882 = vsel %vm1206, %v2880, %v2881
        %v2883 = vrot.slane %v2845, 5
        %v2884 = vrot.slane %v2883, 4
        %v2885 = vrot.slane %v2466, 5
        %v2886 = vsel %vm1206, %v2884, %v2885
        %v2887 = vrot.slane %v2885, 4
        %v2888 = vrot.slane %v2467, 5
        %v2889 = vsel %vm1206, %v2887, %v2888
        %v2890 = vrot.slane %v2846, 5
        %v2891 = vrot.slane %v2890, 4
        %v2892 = vrot.slane %v2469, 5
        %v2893 = vsel %vm1206, %v2891, %v2892
        %v2894 = vrot.slane %v2892, 4
        %v2895 = vrot.slane %v2470, 5
        %v2896 = vsel %vm1206, %v2894, %v2895
        %v2897 = vrot.slane %v2847, 5
        %v2898 = vrot.slane %v2897, 4
        %v2899 = vrot.slane %v2472, 5
        %v2900 = vsel %vm1206, %v2898, %v2899
        %v2901 = vrot.slane %v2899, 4
        %v2902 = vrot.slane %v2473, 5
        %v2903 = vsel %vm1206, %v2901, %v2902
        %v2904 = vrot.slane %v2848, 5
        %v2905 = vrot.slane %v2904, 4
        %v2906 = vrot.slane %v2475, 5
        %v2907 = vsel %vm1206, %v2905, %v2906
        %v2908 = vrot.slane %v2906, 4
        %v2909 = vrot.slane %v2476, 5
        %v2910 = vsel %vm1206, %v2908, %v2909
        %v2911 = vrot.slane %v2849, 5
        %v2912 = vrot.slane %v2911, 4
        %v2913 = vrot.slane %v2478, 5
        %v2914 = vsel %vm1206, %v2912, %v2913
        %v2915 = vrot.slane %v2913, 4
        %v2916 = vrot.slane %v2479, 5
        %v2917 = vsel %vm1206, %v2915, %v2916
        %v2918 = vrot.slane %v2850, 5
        %v2919 = vrot.slane %v2918, 4
        %v2920 = vrot.slane %v2481, 5
        %v2921 = vsel %vm1206, %v2919, %v2920
        %v2922 = vrot.slane %v2920, 4
        %v2923 = vrot.slane %v2482, 5
        %v2924 = vsel %vm1206, %v2922, %v2923
        %v2925 = vrot.slane %v2851, 5
        %v2926 = vrot.slane %v2925, 4
        %v2927 = vrot.slane %v2484, 5
        %v2928 = vsel %vm1206, %v2926, %v2927
        %v2929 = vrot.slane %v2927, 4
        %v2930 = vrot.slane %v2485, 5
        %v2931 = vsel %vm1206, %v2929, %v2930
        %s2932 = scalar_lea.vmem %s1, 16
        %v2933 = vld [vmem:[%s2932] sm:$0x3]
        %v2934 = vunpack.c.l.b16 %v2879
        %v2935 = vunpack.c.l.b16 %v2882
        %v2936 = vunpack.c.l.b16 %v2886
        %v2937 = vunpack.c.l.b16 %v2889
        %v2938 = vunpack.c.l.b16 %v2893
        %v2939 = vunpack.c.l.b16 %v2896
        %v2940 = vunpack.c.l.b16 %v2900
        %v2941 = vunpack.c.l.b16 %v2903
        %v2942 = vunpack.c.l.b16 %v2907
        %v2943 = vunpack.c.l.b16 %v2910
        %v2944 = vunpack.c.l.b16 %v2914
        %v2945 = vunpack.c.l.b16 %v2917
        %v2946 = vunpack.c.l.b16 %v2921
        %v2947 = vunpack.c.l.b16 %v2924
        %v2948 = vunpack.c.l.b16 %v2928
        %v2949 = vunpack.c.l.b16 %v2931
        %v2950 = vpack.c.b16 %v2935, %v2934
        %v2951 = vpack.c.b16 %v2937, %v2936
        %v2952 = vpack.c.b16 %v2939, %v2938
        %v2953 = vpack.c.b16 %v2941, %v2940
        %v2954 = vpack.c.b16 %v2943, %v2942
        %v2955 = vpack.c.b16 %v2945, %v2944
        %v2956 = vpack.c.b16 %v2947, %v2946
        %v2957 = vpack.c.b16 %v2949, %v2948
        %v2959 = vsel %vm890, %v2950, 0
        %v2962 = vsel %vm890, %v2951, 0
        %v2965 = vsel %vm890, %v2952, 0
        %v2968 = vsel %vm890, %v2953, 0
        %v2971 = vsel %vm890, %v2954, 0
        %v2974 = vsel %vm890, %v2955, 0
        %v2977 = vsel %vm890, %v2956, 0
        %v2980 = vsel %vm890, %v2957, 0
        %v2983 = vsel %vm915, %v2933, 0
        %2985 = vmatprep.subr.bf16.mxu0 0
        %2986 = vmatpush1.bf16.msra.mxu0 %v2983
        %2987 = vmatprep.subr.bf16.mxu0 0
        %2988 = vmatpush1.bf16.msra.mxu0 0
        %2989 = vmatprep.subr.bf16.mxu0 0
        %2990 = vmatpush1.bf16.msra.mxu0 0
        %2991 = vmatprep.subr.bf16.mxu0 0
        %2992 = vmatpush1.bf16.msra.mxu0 0
        %2993 = vmatprep.subr.bf16.mxu0 0
        %2994 = vmatpush1.bf16.msra.mxu0 0
        %2995 = vmatprep.subr.bf16.mxu0 0
        %2996 = vmatpush1.bf16.msra.mxu0 0
        %2997 = vmatprep.subr.bf16.mxu0 0
        %2998 = vmatpush1.bf16.msra.mxu0 0
        %2999 = vmatprep.subr.bf16.mxu0 0
        %3000 = vmatpush1.bf16.msra.mxu0 0
        %3001 = vmatprep.subr.bf16.mxu0 0
        %3002 = vmatpush1.bf16.msra.mxu0 0
        %3003 = vmatprep.subr.bf16.mxu0 0
        %3004 = vmatpush1.bf16.msra.mxu0 0
        %3005 = vmatprep.subr.bf16.mxu0 0
        %3006 = vmatpush1.bf16.msra.mxu0 0
        %3007 = vmatprep.subr.bf16.mxu0 0
        %3008 = vmatpush1.bf16.msra.mxu0 0
        %3009 = vmatprep.subr.bf16.mxu0 0
        %3010 = vmatpush1.bf16.msra.mxu0 0
        %3011 = vmatprep.subr.bf16.mxu0 0
        %3012 = vmatpush1.bf16.msra.mxu0 0
        %3013 = vmatprep.subr.bf16.mxu0 0
        %3014 = vmatpush1.bf16.msra.mxu0 0
        %3015 = vmatprep.subr.bf16.mxu0 0
        %3016 = vmatpush1.bf16.msra.mxu0 0
        %3017 = vmatprep.mubr.bf16.mxu0 0
        %3018 = vmatmul.mubr.bf16.gmra.mrb[0].mxu0 %v2959
        %v3019 = vpop.f32.mrb[0].mxu0
        %v3020 = vadd.f32 0.0, %v3019
        %v3021 = vpop.f32.mrb[0].mxu0
        %v3022 = vpop.f32.mrb[0].mxu0
        %v3023 = vadd.f32 0.0, %v3022
        %v3024 = vpop.f32.mrb[0].mxu0
        %3025 = vmatprep.mubr.bf16.mxu0 0
        %3026 = vmatmul.mubr.bf16.gmra.mrb[0].mxu0 %v2962
        %v3027 = vpop.f32.mrb[0].mxu0
        %v3028 = vadd.f32 0.0, %v3027
        %v3029 = vpop.f32.mrb[0].mxu0
        %v3030 = vpop.f32.mrb[0].mxu0
        %v3031 = vadd.f32 0.0, %v3030
        %v3032 = vpop.f32.mrb[0].mxu0
        %3033 = vmatprep.mubr.bf16.mxu0 0
        %3034 = vmatmul.mubr.bf16.gmra.mrb[0].mxu0 %v2965
        %v3035 = vpop.f32.mrb[0].mxu0
        %v3036 = vadd.f32 0.0, %v3035
        %v3037 = vpop.f32.mrb[0].mxu0
        %v3038 = vpop.f32.mrb[0].mxu0
        %v3039 = vadd.f32 0.0, %v3038
        %v3040 = vpop.f32.mrb[0].mxu0
        %3041 = vmatprep.mubr.bf16.mxu0 0
        %3042 = vmatmul.mubr.bf16.gmra.mrb[0].mxu0 %v2968
        %v3043 = vpop.f32.mrb[0].mxu0
        %v3044 = vadd.f32 0.0, %v3043
        %v3045 = vpop.f32.mrb[0].mxu0
        %v3046 = vpop.f32.mrb[0].mxu0
        %v3047 = vadd.f32 0.0, %v3046
        %v3048 = vpop.f32.mrb[0].mxu0
        %3049 = vmatprep.mubr.bf16.mxu0 0
        %3050 = vmatmul.mubr.bf16.gmra.mrb[0].mxu0 %v2971
        %v3051 = vpop.f32.mrb[0].mxu0
        %v3052 = vadd.f32 0.0, %v3051
        %v3053 = vpop.f32.mrb[0].mxu0
        %v3054 = vpop.f32.mrb[0].mxu0
        %v3055 = vadd.f32 0.0, %v3054
        %v3056 = vpop.f32.mrb[0].mxu0
        %3057 = vmatprep.mubr.bf16.mxu0 0
        %3058 = vmatmul.mubr.bf16.gmra.mrb[0].mxu0 %v2974
        %v3059 = vpop.f32.mrb[0].mxu0
        %v3060 = vadd.f32 0.0, %v3059
        %v3061 = vpop.f32.mrb[0].mxu0
        %v3062 = vpop.f32.mrb[0].mxu0
        %v3063 = vadd.f32 0.0, %v3062
        %v3064 = vpop.f32.mrb[0].mxu0
        %3065 = vmatprep.mubr.bf16.mxu0 0
        %3066 = vmatmul.mubr.bf16.gmra.mrb[0].mxu0 %v2977
        %v3067 = vpop.f32.mrb[0].mxu0
        %v3068 = vadd.f32 0.0, %v3067
        %v3069 = vpop.f32.mrb[0].mxu0
        %v3070 = vpop.f32.mrb[0].mxu0
        %v3071 = vadd.f32 0.0, %v3070
        %v3072 = vpop.f32.mrb[0].mxu0
        %3073 = vmatprep.mubr.bf16.mxu0 0
        %3074 = vmatmul.mubr.bf16.gmra.mrb[0].mxu0 %v2980
        %v3075 = vpop.f32.mrb[0].mxu0
        %v3076 = vadd.f32 0.0, %v3075
        %v3077 = vpop.f32.mrb[0].mxu0
        %v3078 = vpop.f32.mrb[0].mxu0
        %v3079 = vadd.f32 0.0, %v3078
        %v3080 = vpop.f32.mrb[0].mxu0
        %3081 = vdwg.mxu0
        %v3082 = vadd.f32 %v2828, %v3020
        %v3083 = vadd.f32 %v2829, %v3023
        %v3084 = vadd.f32 %v2830, %v3028
        %v3085 = vadd.f32 %v2831, %v3031
        %v3086 = vadd.f32 %v2832, %v3036
        %v3087 = vadd.f32 %v2833, %v3039
        %v3088 = vadd.f32 %v2834, %v3044
        %v3089 = vadd.f32 %v2835, %v3047
        %v3090 = vadd.f32 %v2836, %v3052
        %v3091 = vadd.f32 %v2837, %v3055
        %v3092 = vadd.f32 %v2838, %v3060
        %v3093 = vadd.f32 %v2839, %v3063
        %v3094 = vadd.f32 %v2840, %v3068
        %v3095 = vadd.f32 %v2841, %v3071
        %v3096 = vadd.f32 %v2842, %v3076
        %v3097 = vadd.f32 %v2843, %v3079
        %v3098 = vld [vmem:[%s2] sm:$0x1]
        %v3100 = vlaneseq
        %v3101 = vshrl.u32 %v3100, 7
        %v3102 = vsub.s32 0, %v3101
        %v3103 = vrot.slane %v3098, %v3102
        %v3105 = vadd.f32 %v3082, %v3103
        %v3106 = vadd.f32 %v3083, %v3103
        %v3107 = vadd.f32 %v3084, %v3103
        %v3108 = vadd.f32 %v3085, %v3103
        %v3109 = vadd.f32 %v3086, %v3103
        %v3110 = vadd.f32 %v3087, %v3103
        %v3111 = vadd.f32 %v3088, %v3103
        %v3112 = vadd.f32 %v3089, %v3103
        %v3113 = vadd.f32 %v3090, %v3103
        %v3114 = vadd.f32 %v3091, %v3103
        %v3115 = vadd.f32 %v3092, %v3103
        %v3116 = vadd.f32 %v3093, %v3103
        %v3117 = vadd.f32 %v3094, %v3103
        %v3118 = vadd.f32 %v3095, %v3103
        %v3119 = vadd.f32 %v3096, %v3103
        %v3120 = vadd.f32 %v3097, %v3103
        %v3121 = vmul.f32 %v3105, 0.1
        %v3122 = vmul.f32 %v3106, 0.1
        %v3123 = vmul.f32 %v3107, 0.1
        %v3124 = vmul.f32 %v3108, 0.1
        %v3125 = vmul.f32 %v3109, 0.1
        %v3126 = vmul.f32 %v3110, 0.1
        %v3127 = vmul.f32 %v3111, 0.1
        %v3128 = vmul.f32 %v3112, 0.1
        %v3129 = vmul.f32 %v3113, 0.1
        %v3130 = vmul.f32 %v3114, 0.1
        %v3131 = vmul.f32 %v3115, 0.1
        %v3132 = vmul.f32 %v3116, 0.1
        %v3133 = vmul.f32 %v3117, 0.1
        %v3134 = vmul.f32 %v3118, 0.1
        %v3135 = vmul.f32 %v3119, 0.1
        %v3136 = vmul.f32 %v3120, 0.1
        %v3137 = vmax.f32 %v3105, %v3121
        %v3138 = vmax.f32 %v3106, %v3122
        %v3139 = vmax.f32 %v3107, %v3123
        %v3140 = vmax.f32 %v3108, %v3124
        %v3141 = vmax.f32 %v3109, %v3125
        %v3142 = vmax.f32 %v3110, %v3126
        %v3143 = vmax.f32 %v3111, %v3127
        %v3144 = vmax.f32 %v3112, %v3128
        %v3145 = vmax.f32 %v3113, %v3129
        %v3146 = vmax.f32 %v3114, %v3130
        %v3147 = vmax.f32 %v3115, %v3131
        %v3148 = vmax.f32 %v3116, %v3132
        %v3149 = vmax.f32 %v3117, %v3133
        %v3150 = vmax.f32 %v3118, %v3134
        %v3151 = vmax.f32 %v3119, %v3135
        %v3152 = vmax.f32 %v3120, %v3136
        %v3153 = vpack.c.bf16 %v3138, %v3137
        %v3154 = vpack.c.bf16 %v3140, %v3139
        %v3155 = vpack.c.bf16 %v3142, %v3141
        %v3156 = vpack.c.bf16 %v3144, %v3143
        %v3157 = vpack.c.bf16 %v3146, %v3145
        %v3158 = vpack.c.bf16 %v3148, %v3147
        %v3159 = vpack.c.bf16 %v3150, %v3149
        %v3160 = vpack.c.bf16 %v3152, %v3151
        %v3161 = vld [vmem:[%s3] sm:$0xf]
        %v3162 = vld [vmem:[%s4] sm:$0x1]
        %v3164 = vlaneseq
        %v3165 = vshrl.u32 %v3164, 7
        %v3166 = vsub.s32 0, %v3165
        %v3167 = vrot.slane %v3162, %v3166
        %vm3169 = vcmask 64512
        %v3171 = vsel %vm3169, %v3153, 0
        %v3174 = vsel %vm3169, %v3154, 0
        %v3177 = vsel %vm3169, %v3155, 0
        %v3180 = vsel %vm3169, %v3156, 0
        %v3183 = vsel %vm3169, %v3157, 0
        %v3186 = vsel %vm3169, %v3158, 0
        %v3189 = vsel %vm3169, %v3159, 0
        %v3192 = vsel %vm3169, %v3160, 0
        %vm3194 = vcmask 1043456
        %v3196 = vsel %vm3194, %v3161, 0
        %3198 = vmatprep.subr.bf16.mxu0 0
        %3199 = vmatpush1.bf16.msra.mxu0 %v3196
        %3200 = vmatprep.subr.bf16.mxu0 0
        %3201 = vmatpush1.bf16.msra.mxu0 0
        %3202 = vmatprep.subr.bf16.mxu0 0
        %3203 = vmatpush1.bf16.msra.mxu0 0
        %3204 = vmatprep.subr.bf16.mxu0 0
        %3205 = vmatpush1.bf16.msra.mxu0 0
        %3206 = vmatprep.subr.bf16.mxu0 0
        %3207 = vmatpush1.bf16.msra.mxu0 0
        %3208 = vmatprep.subr.bf16.mxu0 0
        %3209 = vmatpush1.bf16.msra.mxu0 0
        %3210 = vmatprep.subr.bf16.mxu0 0
        %3211 = vmatpush1.bf16.msra.mxu0 0
        %3212 = vmatprep.subr.bf16.mxu0 0
        %3213 = vmatpush1.bf16.msra.mxu0 0
        %3214 = vmatprep.subr.bf16.mxu0 0
        %3215 = vmatpush1.bf16.msra.mxu0 0
        %3216 = vmatprep.subr.bf16.mxu0 0
        %3217 = vmatpush1.bf16.msra.mxu0 0
        %3218 = vmatprep.subr.bf16.mxu0 0
        %3219 = vmatpush1.bf16.msra.mxu0 0
        %3220 = vmatprep.subr.bf16.mxu0 0
        %3221 = vmatpush1.bf16.msra.mxu0 0
        %3222 = vmatprep.subr.bf16.mxu0 0
        %3223 = vmatpush1.bf16.msra.mxu0 0
        %3224 = vmatprep.subr.bf16.mxu0 0
        %3225 = vmatpush1.bf16.msra.mxu0 0
        %3226 = vmatprep.subr.bf16.mxu0 0
        %3227 = vmatpush1.bf16.msra.mxu0 0
        %3228 = vmatprep.subr.bf16.mxu0 0
        %3229 = vmatpush1.bf16.msra.mxu0 0
        %3230 = vmatprep.mubr.bf16.mxu0 0
        %3231 = vmatmul.mubr.bf16.gmra.mrb[0].mxu0 %v3171
        %v3232 = vpop.f32.mrb[0].mxu0
        %v3233 = vadd.f32 %v3167, %v3232
        %v3234 = vpop.f32.mrb[0].mxu0
        %v3235 = vpop.f32.mrb[0].mxu0
        %v3236 = vadd.f32 %v3167, %v3235
        %v3237 = vpop.f32.mrb[0].mxu0
        %3238 = vmatprep.mubr.bf16.mxu0 0
        %3239 = vmatmul.mubr.bf16.gmra.mrb[0].mxu0 %v3174
        %v3240 = vpop.f32.mrb[0].mxu0
        %v3241 = vadd.f32 %v3167, %v3240
        %v3242 = vpop.f32.mrb[0].mxu0
        %v3243 = vpop.f32.mrb[0].mxu0
        %v3244 = vadd.f32 %v3167, %v3243
        %v3245 = vpop.f32.mrb[0].mxu0
        %3246 = vmatprep.mubr.bf16.mxu0 0
        %3247 = vmatmul.mubr.bf16.gmra.mrb[0].mxu0 %v3177
        %v3248 = vpop.f32.mrb[0].mxu0
        %v3249 = vadd.f32 %v3167, %v3248
        %v3250 = vpop.f32.mrb[0].mxu0
        %v3251 = vpop.f32.mrb[0].mxu0
        %v3252 = vadd.f32 %v3167, %v3251
        %v3253 = vpop.f32.mrb[0].mxu0
        %3254 = vmatprep.mubr.bf16.mxu0 0
        %3255 = vmatmul.mubr.bf16.gmra.mrb[0].mxu0 %v3180
        %v3256 = vpop.f32.mrb[0].mxu0
        %v3257 = vadd.f32 %v3167, %v3256
        %v3258 = vpop.f32.mrb[0].mxu0
        %v3259 = vpop.f32.mrb[0].mxu0
        %v3260 = vadd.f32 %v3167, %v3259
        %v3261 = vpop.f32.mrb[0].mxu0
        %3262 = vmatprep.mubr.bf16.mxu0 0
        %3263 = vmatmul.mubr.bf16.gmra.mrb[0].mxu0 %v3183
        %v3264 = vpop.f32.mrb[0].mxu0
        %v3265 = vadd.f32 %v3167, %v3264
        %v3266 = vpop.f32.mrb[0].mxu0
        %v3267 = vpop.f32.mrb[0].mxu0
        %v3268 = vadd.f32 %v3167, %v3267
        %v3269 = vpop.f32.mrb[0].mxu0
        %3270 = vmatprep.mubr.bf16.mxu0 0
        %3271 = vmatmul.mubr.bf16.gmra.mrb[0].mxu0 %v3186
        %v3272 = vpop.f32.mrb[0].mxu0
        %v3273 = vadd.f32 %v3167, %v3272
        %v3274 = vpop.f32.mrb[0].mxu0
        %v3275 = vpop.f32.mrb[0].mxu0
        %v3276 = vadd.f32 %v3167, %v3275
        %v3277 = vpop.f32.mrb[0].mxu0
        %3278 = vmatprep.mubr.bf16.mxu0 0
        %3279 = vmatmul.mubr.bf16.gmra.mrb[0].mxu0 %v3189
        %v3280 = vpop.f32.mrb[0].mxu0
        %v3281 = vadd.f32 %v3167, %v3280
        %v3282 = vpop.f32.mrb[0].mxu0
        %v3283 = vpop.f32.mrb[0].mxu0
        %v3284 = vadd.f32 %v3167, %v3283
        %v3285 = vpop.f32.mrb[0].mxu0
        %3286 = vmatprep.mubr.bf16.mxu0 0
        %3287 = vmatmul.mubr.bf16.gmra.mrb[0].mxu0 %v3192
        %v3288 = vpop.f32.mrb[0].mxu0
        %v3289 = vadd.f32 %v3167, %v3288
        %v3290 = vpop.f32.mrb[0].mxu0
        %v3291 = vpop.f32.mrb[0].mxu0
        %v3292 = vadd.f32 %v3167, %v3291
        %v3293 = vpop.f32.mrb[0].mxu0
        %3294 = vdwg.mxu0
        %3295 = vst [vmem:[%s231] sm:$0xff] %v3233
        %3296 = vst [vmem:[%s231 + $0x8] sm:$0xff] %v3236
        %3297 = vst [vmem:[%s231 + $0x10] sm:$0xff] %v3241
        %3298 = vst [vmem:[%s231 + $0x18] sm:$0xff] %v3244
        %3299 = vst [vmem:[%s231 + $0x20] sm:$0xff] %v3249
        %3300 = vst [vmem:[%s231 + $0x28] sm:$0xff] %v3252
        %3301 = vst [vmem:[%s231 + $0x30] sm:$0xff] %v3257
        %3302 = vst [vmem:[%s231 + $0x38] sm:$0xff] %v3260
        %3303 = vst [vmem:[%s231 + $0x40] sm:$0xff] %v3265
        %3304 = vst [vmem:[%s231 + $0x48] sm:$0xff] %v3268
        %3305 = vst [vmem:[%s231 + $0x50] sm:$0xff] %v3273
        %3306 = vst [vmem:[%s231 + $0x58] sm:$0xff] %v3276
        %3307 = vst [vmem:[%s231 + $0x60] sm:$0xff] %v3281
        %3308 = vst [vmem:[%s231 + $0x68] sm:$0xff] %v3284
        %3309 = vst [vmem:[%s231 + $0x70] sm:$0xff] %v3289
        %3310 = vst [vmem:[%s231 + $0x78] sm:$0xff] %v3292
        %s3311 = sand.u32 %s151, 1
        %s3312 = scalar_lea.sflag [#allocation4], %s3311
        %s3313 = sand.u32 %s151, 1
        %s3314 = smul.addr %s3313, 128
        %s3315 = scalar_lea.vmem [#allocation3], %s3314
        // Predicated region
        $region49: #{tpu_custom_call.1} parent=39 // pred_check
          %p3316 = pneg %p161
        $region50: #{tpu_custom_call.1} parent=39 // pred_check_branch
          %3318 = sbr.rel (%p3316) target = $region52
        $region51: #{tpu_custom_call.1} parent=39 // pred_region
          %s3319 = smul.u32 16, %s24
          %s3321 = ssub.s32 2048, 2048
          %3322 = vsyncadd %s3312, %s3321
          %s3323 = smul.addr %s23, 32
          %s3324 = sadd.s32 %s3319, %s3323
          %s3325 = smul.addr %s3324, 128
          %s3326 = scalar_lea.hbm %s5, %s3325
          %s3327 = sshll.u32 %s3315, 4
          %s3328 = int_to_ptr.vmem [resolvable:$true] %s3327
          %3333 = dma.vmem_to_hbm [thread:$0]  %s3328, 2048, %s3326, %s3312, 128, 128, 8
        $region52: #{tpu_custom_call.1} parent=39 // pred_fallthru
          _
      $region40: #{tpu_custom_call.1} parent=5 // pred_fallthru
        _
      %p3334 = scmp.le.s32.totalorder 2, %s14
      // Predicated region
      $region53: #{tpu_custom_call.1} parent=5 // pred_check
        %p3335 = pneg %p3334
      $region54: #{tpu_custom_call.1} parent=5 // pred_check_branch
        %3337 = sbr.rel (%p3335) target = $region56
      $region55: #{tpu_custom_call.1} parent=5 // pred_region
        %s3338 = ssub.s32 %s14, 2
        // Predicated region
        $region57: #{tpu_custom_call.1} parent=55 // pred_check
          %p3339 = pneg %p167
        $region58: #{tpu_custom_call.1} parent=55 // pred_check_branch
          %3341 = sbr.rel (%p3339) target = $region60
        $region59: #{tpu_custom_call.1} parent=55 // pred_region
          %s3342 = sand.u32 %s152, 1
          %s3343 = scalar_lea.sflag [#allocation4], %s3342
          %s3344 = sand.u32 %s152, 1
          %s3345 = smul.addr %s3344, 128
          %s3346 = scalar_lea.vmem [#allocation3], %s3345
          %3347 = dma.done %s3343, 2048
        $region60: #{tpu_custom_call.1} parent=55 // pred_fallthru
          _
      $region56: #{tpu_custom_call.1} parent=5 // pred_fallthru
        _
    $region6: #{tpu_custom_call.1} parent=1 // loop_footer
      %s18 = sadd.s32 1, %s14
    $region7: #{tpu_custom_call.1} parent=1 // loop_footer_branch
      %13 = sbr.rel target = $region3
    $region8: #{tpu_custom_call.1} parent=1 // loop_exit
      _
    %3348 = vsyncpa [#allocation4], 1
    %s3349 = scalar_lea.sflag [#allocation4], 1
    %3350 = vsyncpa %s3349, 1

</llo_original>
